<compile_context>
chip_gen: v5e
topology: v5e:2x2
jax: 0.10.0
libtpu: 0.0.40
codegen_flags: <defaults>
</compile_context>

<pallas_src>
import jax
import jax.numpy as jnp
from jax import lax
from jax.experimental import pallas as pl
from jax.experimental.pallas import tpu as pltpu


def stacked_gru_kernel(x_ref,
                       wxz1_ref, wxr1_ref, wxk1_ref,
                       bz1_ref, br1_ref, bk1_ref,
                       whz1_ref, whr1_ref, whk1_ref, h01_ref,
                       w12z_ref, w12r_ref, w12k_ref,
                       bz2_ref, br2_ref, bk2_ref,
                       whz2_ref, whr2_ref, whk2_ref, why2_ref, h02_ref,
                       out_ref,
                       gz_scr, gr_scr, gk_scr, h2_scr):
    """Fused, software-pipelined 2-layer GRU over the whole sequence.

    x_ref      : (T, V)   one-hot input rows (f32)
    wx*1_ref   : (V, H)   layer-1 input weights, transposed, bf16
    b*1_ref    : (1, H)   layer-1 biases, f32
    wh*1_ref   : (H, H)   layer-1 recurrent weights, transposed, bf16
    w12*_ref   : (H, H)   folded  W_hy1^T @ W_x*2^T  (layer1 hidden -> layer2 gate), bf16
    b*2_ref    : (1, H)   layer-2 biases, f32
    wh*2_ref   : (H, H)   layer-2 recurrent weights, transposed, bf16
    why2_ref   : (H, V)   layer-2 output weights, transposed, bf16
    h0*_ref    : (1, H)   initial hidden states, f32
    out_ref    : (T, V)   layer-2 logit sequence, f32
    g*_scr     : (T, H)   hoisted layer-1 input-gate pre-activations (z, r, k)
    h2_scr     : (T, H)   layer-2 hidden-state sequence
    """
    T = x_ref.shape[0]
    f32 = jnp.float32
    bf16 = jnp.bfloat16

    x_bf = x_ref[...].astype(bf16)          # one-hot rows: exact in bf16

    # ---- Hoisted layer-1 input->gate projections (off the recurrence). ----
    # Per-gate matmuls so every per-step read below is a full (1, H) row:
    # no non-lane-aligned column slicing on the critical path.
    gz_scr[...] = jnp.dot(x_bf, wxz1_ref[...],
                          preferred_element_type=f32) + bz1_ref[...]
    gr_scr[...] = jnp.dot(x_bf, wxr1_ref[...],
                          preferred_element_type=f32) + br1_ref[...]
    gk_scr[...] = jnp.dot(x_bf, wxk1_ref[...],
                          preferred_element_type=f32) + bk1_ref[...]

    # ---- Hoist all recurrent weights / biases out of the unrolled loop. ----
    whz1 = whz1_ref[...]; whr1 = whr1_ref[...]; whk1 = whk1_ref[...]
    w12z = w12z_ref[...]; w12r = w12r_ref[...]; w12k = w12k_ref[...]
    whz2 = whz2_ref[...]; whr2 = whr2_ref[...]; whk2 = whk2_ref[...]
    bz2 = bz2_ref[...];   br2 = br2_ref[...];   bk2 = bk2_ref[...]

    def l1_step(t, h1):
        """One layer-1 step at time t.  h1 = h1[t-1] (f32)."""
        h1b = h1.astype(bf16)
        az = gz_scr[pl.ds(t, 1), :] + jnp.dot(h1b, whz1,
                                              preferred_element_type=f32)
        ar = gr_scr[pl.ds(t, 1), :] + jnp.dot(h1b, whr1,
                                              preferred_element_type=f32)
        z = jax.nn.sigmoid(az)
        r = jax.nn.sigmoid(ar)
        ak = gk_scr[pl.ds(t, 1), :] + jnp.dot((r * h1).astype(bf16), whk1,
                                              preferred_element_type=f32)
        k = jnp.tanh(ak)
        return (1.0 - z) * h1 + z * k

    def l2_step(t, h1_t, h2):
        """One layer-2 step at time t, consuming layer-1 hidden h1[t] directly
        (inter-layer projection folded into w12*).  h2 = h2[t-1]."""
        h1b = h1_t.astype(bf16)
        h2b = h2.astype(bf16)
        az = (jnp.dot(h1b, w12z, preferred_element_type=f32)
              + jnp.dot(h2b, whz2, preferred_element_type=f32) + bz2)
        ar = (jnp.dot(h1b, w12r, preferred_element_type=f32)
              + jnp.dot(h2b, whr2, preferred_element_type=f32) + br2)
        z = jax.nn.sigmoid(az)
        r = jax.nn.sigmoid(ar)
        ak = (jnp.dot(h1b, w12k, preferred_element_type=f32)
              + jnp.dot((r * h2).astype(bf16), whk2,
                        preferred_element_type=f32) + bk2)
        k = jnp.tanh(ak)
        h2_new = (1.0 - z) * h2 + z * k
        h2_scr[pl.ds(t, 1), :] = h2_new
        return h2_new

    # ---- Software-pipelined recurrence ------------------------------------
    # Iteration t emits layer-2 step t-1 and layer-1 step t; both depend only
    # on the previous iteration's carry, so the VLIW scheduler can co-issue
    # their MXU/EUP/VALU work.  Serial chain ~ T+1 steps instead of 2T.
    h1 = l1_step(0, h01_ref[...])

    def body(t, carry):
        h1_prev, h2_prev = carry                 # h1[t-1], h2[t-2]
        h2_new = l2_step(t - 1, h1_prev, h2_prev)
        h1_new = l1_step(t, h1_prev)
        return (h1_new, h2_new)

    h1_last, h2_last = lax.fori_loop(1, T, body, (h1, h02_ref[...]),
                                     unroll=True)
    l2_step(T - 1, h1_last, h2_last)             # pipeline epilogue

    # ---- Dense output projection: (T,H)@(H,V), one lane-dense store. -------
    out_ref[...] = jnp.dot(h2_scr[...].astype(bf16), why2_ref[...],
                           preferred_element_type=f32)


_PARAM_ORDER = (
    "wxz1", "wxr1", "wxk1", "bz1", "br1", "bk1",
    "whz1", "whr1", "whk1", "h01",
    "w12z", "w12r", "w12k", "bz2", "br2", "bk2",
    "whz2", "whr2", "whk2", "why2", "h02",
)


def stacked_gru_forward(x, packed):
    """StackedGRU.forward: y1 = l1(x); return l2(y1) — one fused kernel."""
    T, V = x.shape
    H = packed["h01"].shape[1]

    args = (x,) + tuple(packed[k] for k in _PARAM_ORDER)
    vmem = pl.BlockSpec(memory_space=pltpu.MemorySpace.VMEM)
    return pl.pallas_call(
        stacked_gru_kernel,
        out_shape=jax.ShapeDtypeStruct((T, V), jnp.float32),
        in_specs=[vmem] * len(args),
        out_specs=vmem,
        scratch_shapes=[
            pltpu.VMEM((T, H), jnp.float32),   # layer-1 z pre-activations
            pltpu.VMEM((T, H), jnp.float32),   # layer-1 r pre-activations
            pltpu.VMEM((T, H), jnp.float32),   # layer-1 k pre-activations
            pltpu.VMEM((T, H), jnp.float32),   # layer-2 hidden-state sequence
        ],
    )(*args)
    # TODO(synk): if V/H are scaled to a real vocab, tile wxz1/wxr1/wxk1 (V,H)
    # and why2 (H,V) plus the (T,V) output over V with a BlockSpec grid axis
    # (128-multiple blocks) and set vmem_limit_bytes (v7x has 64 MiB VMEM,
    # v5e's default scoped limit is 16 MiB).
    # TODO(synk): if a batch of independent sequences exists, add a leading
    # "parallel" grid axis so v7x's second TensorCore is used.


def init_gru_params_raw(key, num_tokens, hidden_dim):
    """Deterministic synthetic GRUModel parameters in the PyTorch layout:
    W_x* are (H, V), W_h* are (H, H), W_hy is (V, H), biases (H,)."""
    ks = jax.random.split(key, 10)
    s = 0.1
    return {
        "W_xz": s * jax.random.normal(ks[0], (hidden_dim, num_tokens), jnp.float32),
        "W_xr": s * jax.random.normal(ks[1], (hidden_dim, num_tokens), jnp.float32),
        "W_xk": s * jax.random.normal(ks[2], (hidden_dim, num_tokens), jnp.float32),
        "W_hz": s * jax.random.normal(ks[3], (hidden_dim, hidden_dim), jnp.float32),
        "W_hr": s * jax.random.normal(ks[4], (hidden_dim, hidden_dim), jnp.float32),
        "W_hk": s * jax.random.normal(ks[5], (hidden_dim, hidden_dim), jnp.float32),
        "B_z": s * jax.random.normal(ks[6], (hidden_dim,), jnp.float32),
        "B_r": s * jax.random.normal(ks[7], (hidden_dim,), jnp.float32),
        "B_k": s * jax.random.normal(ks[8], (hidden_dim,), jnp.float32),
        "W_hy": s * jax.random.normal(ks[9], (num_tokens, hidden_dim), jnp.float32),
        "initial_h": jnp.zeros((hidden_dim,), jnp.float32),
    }


def pack_stacked_params(raw1, raw2):
    """One-time packing: transpose, fold W_hy1 into layer-2's input weights,
    and cast matmul operands to bf16 (biases / initial h stay f32)."""
    bf16 = jnp.bfloat16
    f32 = jnp.float32
    H = raw1["W_hz"].shape[0]

    def row(b):
        return b.reshape(1, H).astype(f32)

    why1T = raw1["W_hy"].T.astype(f32)            # (H, V), kept f32 for folding
    return {
        # layer-1 input path
        "wxz1": raw1["W_xz"].T.astype(bf16),      # (V, H)
        "wxr1": raw1["W_xr"].T.astype(bf16),
        "wxk1": raw1["W_xk"].T.astype(bf16),
        "bz1": row(raw1["B_z"]), "br1": row(raw1["B_r"]), "bk1": row(raw1["B_k"]),
        # layer-1 recurrent path
        "whz1": raw1["W_hz"].T.astype(bf16),      # (H, H)
        "whr1": raw1["W_hr"].T.astype(bf16),
        "whk1": raw1["W_hk"].T.astype(bf16),
        "h01": raw1["initial_h"].reshape(1, H).astype(f32),
        # folded inter-layer weights:  h1 @ (W_hy1^T @ W_xg2^T) == W_xg2 @ (W_hy1 @ h1)
        "w12z": (why1T @ raw2["W_xz"].T.astype(f32)).astype(bf16),   # (H, H)
        "w12r": (why1T @ raw2["W_xr"].T.astype(f32)).astype(bf16),
        "w12k": (why1T @ raw2["W_xk"].T.astype(f32)).astype(bf16),
        "bz2": row(raw2["B_z"]), "br2": row(raw2["B_r"]), "bk2": row(raw2["B_k"]),
        # layer-2 recurrent + output path
        "whz2": raw2["W_hz"].T.astype(bf16),
        "whr2": raw2["W_hr"].T.astype(bf16),
        "whk2": raw2["W_hk"].T.astype(bf16),
        "why2": raw2["W_hy"].T.astype(bf16),      # (H, V)
        "h02": raw2["initial_h"].reshape(1, H).astype(f32),
    }


def _gru_layer_reference(x, raw):
    """Pure-JAX f32 reference of one GRUModel layer (PyTorch equations)."""
    def step(h, x_t):
        z = jax.nn.sigmoid(raw["W_xz"] @ x_t + raw["W_hz"] @ h + raw["B_z"])
        r = jax.nn.sigmoid(raw["W_xr"] @ x_t + raw["W_hr"] @ h + raw["B_r"])
        k = jnp.tanh(raw["W_xk"] @ x_t + raw["W_hk"] @ (r * h) + raw["B_k"])
        h_new = (1.0 - z) * h + z * k
        return h_new, raw["W_hy"] @ h_new
    _, ys = lax.scan(step, raw["initial_h"], x)
    return ys


def _stacked_reference(x, raw1, raw2):
    return _gru_layer_reference(_gru_layer_reference(x, raw1), raw2)


if __name__ == "__main__":
    NUM_TOKENS = 32   # tokenizer.num_unique_tokens
    HIDDEN_DIM = 32
    SEQ_LEN = 8       # batch of stacked one-hot tokens (package_batch)

    key = jax.random.PRNGKey(0)
    k_tok, k_l1, k_l2 = jax.random.split(key, 3)

    # Input: stacked one-hot token vectors, shape (SEQ_LEN, NUM_TOKENS).
    tokens = jax.random.randint(k_tok, (SEQ_LEN,), 0, NUM_TOKENS)
    x = jax.nn.one_hot(tokens, NUM_TOKENS, dtype=jnp.float32)

    raw_l1 = init_gru_params_raw(k_l1, NUM_TOKENS, HIDDEN_DIM)
    raw_l2 = init_gru_params_raw(k_l2, NUM_TOKENS, HIDDEN_DIM)
    packed = pack_stacked_params(raw_l1, raw_l2)   # packed once, reused per call

    out = stacked_gru_forward(x, packed)
    jax.block_until_ready(out)

    assert out.shape == (SEQ_LEN, NUM_TOKENS)
    assert jnp.all(jnp.isfinite(out))

    # Correctness vs. a pure-JAX f32 reference of the module's math.
    # Tolerance loosened for bf16 MXU operands (gate math stays f32).
    ref = _stacked_reference(x, raw_l1, raw_l2)
    assert jnp.allclose(out, ref, atol=2e-2, rtol=2e-2), (
        f"max abs err = {jnp.max(jnp.abs(out - ref))}")

    print("KERNEL_OK")
</pallas_src>

<mosaic_0001>
module attributes {stable_mosaic.version = 11 : i64} {
  func.func @stacked_gru_kernel(%arg0: memref<8x32xf32, #tpu.memory_space<vmem>>, %arg1: memref<32x32xbf16, #tpu.memory_space<vmem>>, %arg2: memref<32x32xbf16, #tpu.memory_space<vmem>>, %arg3: memref<32x32xbf16, #tpu.memory_space<vmem>>, %arg4: memref<1x32xf32, #tpu.memory_space<vmem>>, %arg5: memref<1x32xf32, #tpu.memory_space<vmem>>, %arg6: memref<1x32xf32, #tpu.memory_space<vmem>>, %arg7: memref<32x32xbf16, #tpu.memory_space<vmem>>, %arg8: memref<32x32xbf16, #tpu.memory_space<vmem>>, %arg9: memref<32x32xbf16, #tpu.memory_space<vmem>>, %arg10: memref<1x32xf32, #tpu.memory_space<vmem>>, %arg11: memref<32x32xbf16, #tpu.memory_space<vmem>>, %arg12: memref<32x32xbf16, #tpu.memory_space<vmem>>, %arg13: memref<32x32xbf16, #tpu.memory_space<vmem>>, %arg14: memref<1x32xf32, #tpu.memory_space<vmem>>, %arg15: memref<1x32xf32, #tpu.memory_space<vmem>>, %arg16: memref<1x32xf32, #tpu.memory_space<vmem>>, %arg17: memref<32x32xbf16, #tpu.memory_space<vmem>>, %arg18: memref<32x32xbf16, #tpu.memory_space<vmem>>, %arg19: memref<32x32xbf16, #tpu.memory_space<vmem>>, %arg20: memref<32x32xbf16, #tpu.memory_space<vmem>>, %arg21: memref<1x32xf32, #tpu.memory_space<vmem>>, %arg22: memref<8x32xf32, #tpu.memory_space<vmem>>, %arg23: memref<8x32xf32, #tpu.memory_space<vmem>>, %arg24: memref<8x32xf32, #tpu.memory_space<vmem>>, %arg25: memref<8x32xf32, #tpu.memory_space<vmem>>, %arg26: memref<8x32xf32, #tpu.memory_space<vmem>>) attributes {dimension_semantics = [], scalar_prefetch = 0 : i64, scratch_operands = 4 : i64, tpu.core_type = #tpu.core_type<tc>} {
    %c0 = arith.constant 0 : index
    %c0_0 = arith.constant 0 : index
    %0 = vector.load %arg0[%c0, %c0_0] : memref<8x32xf32, #tpu.memory_space<vmem>>, vector<8x32xf32>
    %1 = arith.truncf %0 : vector<8x32xf32> to vector<8x32xbf16>
    %c0_1 = arith.constant 0 : index
    %c0_2 = arith.constant 0 : index
    %2 = vector.load %arg1[%c0_1, %c0_2] : memref<32x32xbf16, #tpu.memory_space<vmem>>, vector<32x32xbf16>
    %cst = arith.constant dense<0.000000e+00> : vector<8x32xf32>
    %3 = tpu.matmul %1, %2, %cst {dimension_numbers = #tpu.dot_dimension_numbers<[1], [0], [0], [1], [0, 0, 1, 1], [], []>} : vector<8x32xbf16>, vector<32x32xbf16>, vector<8x32xf32> -> vector<8x32xf32>
    %c0_3 = arith.constant 0 : index
    %c0_4 = arith.constant 0 : index
    %4 = vector.load %arg4[%c0_3, %c0_4] : memref<1x32xf32, #tpu.memory_space<vmem>>, vector<1x32xf32>
    %5 = vector.broadcast %4 : vector<1x32xf32> to vector<8x32xf32>
    %6 = arith.addf %3, %5 : vector<8x32xf32>
    %c0_5 = arith.constant 0 : index
    %c0_6 = arith.constant 0 : index
    %7 = vector.load %arg23[%c0_5, %c0_6] : memref<8x32xf32, #tpu.memory_space<vmem>>, vector<8x32xf32>
    tpu.vector_store %arg23[%c0_5, %c0_6], %6 {strides = array<i32>} : memref<8x32xf32, #tpu.memory_space<vmem>>, vector<8x32xf32>,
    %c0_7 = arith.constant 0 : index
    %c0_8 = arith.constant 0 : index
    %8 = vector.load %arg2[%c0_7, %c0_8] : memref<32x32xbf16, #tpu.memory_space<vmem>>, vector<32x32xbf16>
    %cst_9 = arith.constant dense<0.000000e+00> : vector<8x32xf32>
    %9 = tpu.matmul %1, %8, %cst_9 {dimension_numbers = #tpu.dot_dimension_numbers<[1], [0], [0], [1], [0, 0, 1, 1], [], []>} : vector<8x32xbf16>, vector<32x32xbf16>, vector<8x32xf32> -> vector<8x32xf32>
    %c0_10 = arith.constant 0 : index
    %c0_11 = arith.constant 0 : index
    %10 = vector.load %arg5[%c0_10, %c0_11] : memref<1x32xf32, #tpu.memory_space<vmem>>, vector<1x32xf32>
    %11 = vector.broadcast %10 : vector<1x32xf32> to vector<8x32xf32>
    %12 = arith.addf %9, %11 : vector<8x32xf32>
    %c0_12 = arith.constant 0 : index
    %c0_13 = arith.constant 0 : index
    %13 = vector.load %arg24[%c0_12, %c0_13] : memref<8x32xf32, #tpu.memory_space<vmem>>, vector<8x32xf32>
    tpu.vector_store %arg24[%c0_12, %c0_13], %12 {strides = array<i32>} : memref<8x32xf32, #tpu.memory_space<vmem>>, vector<8x32xf32>,
    %c0_14 = arith.constant 0 : index
    %c0_15 = arith.constant 0 : index
    %14 = vector.load %arg3[%c0_14, %c0_15] : memref<32x32xbf16, #tpu.memory_space<vmem>>, vector<32x32xbf16>
    %cst_16 = arith.constant dense<0.000000e+00> : vector<8x32xf32>
    %15 = tpu.matmul %1, %14, %cst_16 {dimension_numbers = #tpu.dot_dimension_numbers<[1], [0], [0], [1], [0, 0, 1, 1], [], []>} : vector<8x32xbf16>, vector<32x32xbf16>, vector<8x32xf32> -> vector<8x32xf32>
    %c0_17 = arith.constant 0 : index
    %c0_18 = arith.constant 0 : index
    %16 = vector.load %arg6[%c0_17, %c0_18] : memref<1x32xf32, #tpu.memory_space<vmem>>, vector<1x32xf32>
    %17 = vector.broadcast %16 : vector<1x32xf32> to vector<8x32xf32>
    %18 = arith.addf %15, %17 : vector<8x32xf32>
    %c0_19 = arith.constant 0 : index
    %c0_20 = arith.constant 0 : index
    %19 = vector.load %arg25[%c0_19, %c0_20] : memref<8x32xf32, #tpu.memory_space<vmem>>, vector<8x32xf32>
    tpu.vector_store %arg25[%c0_19, %c0_20], %18 {strides = array<i32>} : memref<8x32xf32, #tpu.memory_space<vmem>>, vector<8x32xf32>,
    %c0_21 = arith.constant 0 : index
    %c0_22 = arith.constant 0 : index
    %20 = vector.load %arg7[%c0_21, %c0_22] : memref<32x32xbf16, #tpu.memory_space<vmem>>, vector<32x32xbf16>
    %c0_23 = arith.constant 0 : index
    %c0_24 = arith.constant 0 : index
    %21 = vector.load %arg8[%c0_23, %c0_24] : memref<32x32xbf16, #tpu.memory_space<vmem>>, vector<32x32xbf16>
    %c0_25 = arith.constant 0 : index
    %c0_26 = arith.constant 0 : index
    %22 = vector.load %arg9[%c0_25, %c0_26] : memref<32x32xbf16, #tpu.memory_space<vmem>>, vector<32x32xbf16>
    %c0_27 = arith.constant 0 : index
    %c0_28 = arith.constant 0 : index
    %23 = vector.load %arg11[%c0_27, %c0_28] : memref<32x32xbf16, #tpu.memory_space<vmem>>, vector<32x32xbf16>
    %c0_29 = arith.constant 0 : index
    %c0_30 = arith.constant 0 : index
    %24 = vector.load %arg12[%c0_29, %c0_30] : memref<32x32xbf16, #tpu.memory_space<vmem>>, vector<32x32xbf16>
    %c0_31 = arith.constant 0 : index
    %c0_32 = arith.constant 0 : index
    %25 = vector.load %arg13[%c0_31, %c0_32] : memref<32x32xbf16, #tpu.memory_space<vmem>>, vector<32x32xbf16>
    %c0_33 = arith.constant 0 : index
    %c0_34 = arith.constant 0 : index
    %26 = vector.load %arg17[%c0_33, %c0_34] : memref<32x32xbf16, #tpu.memory_space<vmem>>, vector<32x32xbf16>
    %c0_35 = arith.constant 0 : index
    %c0_36 = arith.constant 0 : index
    %27 = vector.load %arg18[%c0_35, %c0_36] : memref<32x32xbf16, #tpu.memory_space<vmem>>, vector<32x32xbf16>
    %c0_37 = arith.constant 0 : index
    %c0_38 = arith.constant 0 : index
    %28 = vector.load %arg19[%c0_37, %c0_38] : memref<32x32xbf16, #tpu.memory_space<vmem>>, vector<32x32xbf16>
    %c0_39 = arith.constant 0 : index
    %c0_40 = arith.constant 0 : index
    %29 = vector.load %arg14[%c0_39, %c0_40] : memref<1x32xf32, #tpu.memory_space<vmem>>, vector<1x32xf32>
    %c0_41 = arith.constant 0 : index
    %c0_42 = arith.constant 0 : index
    %30 = vector.load %arg15[%c0_41, %c0_42] : memref<1x32xf32, #tpu.memory_space<vmem>>, vector<1x32xf32>
    %c0_43 = arith.constant 0 : index
    %c0_44 = arith.constant 0 : index
    %31 = vector.load %arg16[%c0_43, %c0_44] : memref<1x32xf32, #tpu.memory_space<vmem>>, vector<1x32xf32>
    %c0_45 = arith.constant 0 : index
    %c0_46 = arith.constant 0 : index
    %32 = vector.load %arg10[%c0_45, %c0_46] : memref<1x32xf32, #tpu.memory_space<vmem>>, vector<1x32xf32>
    %33 = arith.truncf %32 : vector<1x32xf32> to vector<1x32xbf16>
    %c0_47 = arith.constant 0 : index
    %c0_48 = arith.constant 0 : index
    %34 = vector.load %arg23[%c0_47, %c0_48] : memref<8x32xf32, #tpu.memory_space<vmem>>, vector<1x32xf32>
    %cst_49 = arith.constant dense<0.000000e+00> : vector<1x32xf32>
    %35 = tpu.matmul %33, %20, %cst_49 {dimension_numbers = #tpu.dot_dimension_numbers<[1], [0], [0], [1], [0, 0, 1, 1], [], []>} : vector<1x32xbf16>, vector<32x32xbf16>, vector<1x32xf32> -> vector<1x32xf32>
    %36 = arith.addf %34, %35 : vector<1x32xf32>
    %c0_50 = arith.constant 0 : index
    %c0_51 = arith.constant 0 : index
    %37 = vector.load %arg24[%c0_50, %c0_51] : memref<8x32xf32, #tpu.memory_space<vmem>>, vector<1x32xf32>
    %cst_52 = arith.constant dense<0.000000e+00> : vector<1x32xf32>
    %38 = tpu.matmul %33, %21, %cst_52 {dimension_numbers = #tpu.dot_dimension_numbers<[1], [0], [0], [1], [0, 0, 1, 1], [], []>} : vector<1x32xbf16>, vector<32x32xbf16>, vector<1x32xf32> -> vector<1x32xf32>
    %39 = arith.addf %37, %38 : vector<1x32xf32>
    %40 = arith.negf %36 : vector<1x32xf32>
    %41 = math.exp %40 : vector<1x32xf32>
    %cst_53 = arith.constant 1.000000e+00 : f32
    %42 = vector.broadcast %cst_53 : f32 to vector<1x32xf32>
    %43 = arith.addf %42, %41 : vector<1x32xf32>
    %44 = arith.divf %42, %43 : vector<1x32xf32>
    %45 = arith.negf %39 : vector<1x32xf32>
    %46 = math.exp %45 : vector<1x32xf32>
    %cst_54 = arith.constant 1.000000e+00 : f32
    %47 = vector.broadcast %cst_54 : f32 to vector<1x32xf32>
    %48 = arith.addf %47, %46 : vector<1x32xf32>
    %49 = arith.divf %47, %48 : vector<1x32xf32>
    %c0_55 = arith.constant 0 : index
    %c0_56 = arith.constant 0 : index
    %50 = vector.load %arg25[%c0_55, %c0_56] : memref<8x32xf32, #tpu.memory_space<vmem>>, vector<1x32xf32>
    %51 = arith.mulf %49, %32 : vector<1x32xf32>
    %52 = arith.truncf %51 : vector<1x32xf32> to vector<1x32xbf16>
    %cst_57 = arith.constant dense<0.000000e+00> : vector<1x32xf32>
    %53 = tpu.matmul %52, %22, %cst_57 {dimension_numbers = #tpu.dot_dimension_numbers<[1], [0], [0], [1], [0, 0, 1, 1], [], []>} : vector<1x32xbf16>, vector<32x32xbf16>, vector<1x32xf32> -> vector<1x32xf32>
    %54 = arith.addf %50, %53 : vector<1x32xf32>
    %55 = math.tanh %54 : vector<1x32xf32>
    %cst_58 = arith.constant 1.000000e+00 : f32
    %56 = vector.broadcast %cst_58 : f32 to vector<1x32xf32>
    %57 = arith.subf %56, %44 : vector<1x32xf32>
    %58 = arith.mulf %57, %32 : vector<1x32xf32>
    %59 = arith.mulf %44, %55 : vector<1x32xf32>
    %60 = arith.addf %58, %59 : vector<1x32xf32>
    %c0_59 = arith.constant 0 : index
    %c0_60 = arith.constant 0 : index
    %61 = vector.load %arg21[%c0_59, %c0_60] : memref<1x32xf32, #tpu.memory_space<vmem>>, vector<1x32xf32>
    %c1_i32 = arith.constant 1 : i32
    %c1_i32_61 = arith.constant 1 : i32
    %62 = arith.subi %c1_i32, %c1_i32_61 : i32
    %63 = arith.truncf %60 : vector<1x32xf32> to vector<1x32xbf16>
    %64 = arith.truncf %61 : vector<1x32xf32> to vector<1x32xbf16>
    %cst_62 = arith.constant dense<0.000000e+00> : vector<1x32xf32>
    %65 = tpu.matmul %63, %23, %cst_62 {dimension_numbers = #tpu.dot_dimension_numbers<[1], [0], [0], [1], [0, 0, 1, 1], [], []>} : vector<1x32xbf16>, vector<32x32xbf16>, vector<1x32xf32> -> vector<1x32xf32>
    %cst_63 = arith.constant dense<0.000000e+00> : vector<1x32xf32>
    %66 = tpu.matmul %64, %26, %cst_63 {dimension_numbers = #tpu.dot_dimension_numbers<[1], [0], [0], [1], [0, 0, 1, 1], [], []>} : vector<1x32xbf16>, vector<32x32xbf16>, vector<1x32xf32> -> vector<1x32xf32>
    %67 = arith.addf %65, %66 : vector<1x32xf32>
    %68 = arith.addf %67, %29 : vector<1x32xf32>
    %cst_64 = arith.constant dense<0.000000e+00> : vector<1x32xf32>
    %69 = tpu.matmul %63, %24, %cst_64 {dimension_numbers = #tpu.dot_dimension_numbers<[1], [0], [0], [1], [0, 0, 1, 1], [], []>} : vector<1x32xbf16>, vector<32x32xbf16>, vector<1x32xf32> -> vector<1x32xf32>
    %cst_65 = arith.constant dense<0.000000e+00> : vector<1x32xf32>
    %70 = tpu.matmul %64, %27, %cst_65 {dimension_numbers = #tpu.dot_dimension_numbers<[1], [0], [0], [1], [0, 0, 1, 1], [], []>} : vector<1x32xbf16>, vector<32x32xbf16>, vector<1x32xf32> -> vector<1x32xf32>
    %71 = arith.addf %69, %70 : vector<1x32xf32>
    %72 = arith.addf %71, %30 : vector<1x32xf32>
    %73 = arith.negf %68 : vector<1x32xf32>
    %74 = math.exp %73 : vector<1x32xf32>
    %cst_66 = arith.constant 1.000000e+00 : f32
    %75 = vector.broadcast %cst_66 : f32 to vector<1x32xf32>
    %76 = arith.addf %75, %74 : vector<1x32xf32>
    %77 = arith.divf %75, %76 : vector<1x32xf32>
    %78 = arith.negf %72 : vector<1x32xf32>
    %79 = math.exp %78 : vector<1x32xf32>
    %cst_67 = arith.constant 1.000000e+00 : f32
    %80 = vector.broadcast %cst_67 : f32 to vector<1x32xf32>
    %81 = arith.addf %80, %79 : vector<1x32xf32>
    %82 = arith.divf %80, %81 : vector<1x32xf32>
    %cst_68 = arith.constant dense<0.000000e+00> : vector<1x32xf32>
    %83 = tpu.matmul %63, %25, %cst_68 {dimension_numbers = #tpu.dot_dimension_numbers<[1], [0], [0], [1], [0, 0, 1, 1], [], []>} : vector<1x32xbf16>, vector<32x32xbf16>, vector<1x32xf32> -> vector<1x32xf32>
    %84 = arith.mulf %82, %61 : vector<1x32xf32>
    %85 = arith.truncf %84 : vector<1x32xf32> to vector<1x32xbf16>
    %cst_69 = arith.constant dense<0.000000e+00> : vector<1x32xf32>
    %86 = tpu.matmul %85, %28, %cst_69 {dimension_numbers = #tpu.dot_dimension_numbers<[1], [0], [0], [1], [0, 0, 1, 1], [], []>} : vector<1x32xbf16>, vector<32x32xbf16>, vector<1x32xf32> -> vector<1x32xf32>
    %87 = arith.addf %83, %86 : vector<1x32xf32>
    %88 = arith.addf %87, %31 : vector<1x32xf32>
    %89 = math.tanh %88 : vector<1x32xf32>
    %cst_70 = arith.constant 1.000000e+00 : f32
    %90 = vector.broadcast %cst_70 : f32 to vector<1x32xf32>
    %91 = arith.subf %90, %77 : vector<1x32xf32>
    %92 = arith.mulf %91, %61 : vector<1x32xf32>
    %93 = arith.mulf %77, %89 : vector<1x32xf32>
    %94 = arith.addf %92, %93 : vector<1x32xf32>
    %95 = arith.index_cast %62 : i32 to index
    %c0_71 = arith.constant 0 : index
    %96 = vector.load %arg26[%95, %c0_71] : memref<8x32xf32, #tpu.memory_space<vmem>>, vector<1x32xf32>
    tpu.vector_store %arg26[%95, %c0_71], %94 {strides = array<i32>} : memref<8x32xf32, #tpu.memory_space<vmem>>, vector<1x32xf32>,
    %97 = arith.truncf %60 : vector<1x32xf32> to vector<1x32xbf16>
    %98 = arith.index_cast %c1_i32 : i32 to index
    %c0_72 = arith.constant 0 : index
    %99 = vector.load %arg23[%98, %c0_72] : memref<8x32xf32, #tpu.memory_space<vmem>>, vector<1x32xf32>
    %cst_73 = arith.constant dense<0.000000e+00> : vector<1x32xf32>
    %100 = tpu.matmul %97, %20, %cst_73 {dimension_numbers = #tpu.dot_dimension_numbers<[1], [0], [0], [1], [0, 0, 1, 1], [], []>} : vector<1x32xbf16>, vector<32x32xbf16>, vector<1x32xf32> -> vector<1x32xf32>
    %101 = arith.addf %99, %100 : vector<1x32xf32>
    %102 = arith.index_cast %c1_i32 : i32 to index
    %c0_74 = arith.constant 0 : index
    %103 = vector.load %arg24[%102, %c0_74] : memref<8x32xf32, #tpu.memory_space<vmem>>, vector<1x32xf32>
    %cst_75 = arith.constant dense<0.000000e+00> : vector<1x32xf32>
    %104 = tpu.matmul %97, %21, %cst_75 {dimension_numbers = #tpu.dot_dimension_numbers<[1], [0], [0], [1], [0, 0, 1, 1], [], []>} : vector<1x32xbf16>, vector<32x32xbf16>, vector<1x32xf32> -> vector<1x32xf32>
    %105 = arith.addf %103, %104 : vector<1x32xf32>
    %106 = arith.negf %101 : vector<1x32xf32>
    %107 = math.exp %106 : vector<1x32xf32>
    %cst_76 = arith.constant 1.000000e+00 : f32
    %108 = vector.broadcast %cst_76 : f32 to vector<1x32xf32>
    %109 = arith.addf %108, %107 : vector<1x32xf32>
    %110 = arith.divf %108, %109 : vector<1x32xf32>
    %111 = arith.negf %105 : vector<1x32xf32>
    %112 = math.exp %111 : vector<1x32xf32>
    %cst_77 = arith.constant 1.000000e+00 : f32
    %113 = vector.broadcast %cst_77 : f32 to vector<1x32xf32>
    %114 = arith.addf %113, %112 : vector<1x32xf32>
    %115 = arith.divf %113, %114 : vector<1x32xf32>
    %116 = arith.index_cast %c1_i32 : i32 to index
    %c0_78 = arith.constant 0 : index
    %117 = vector.load %arg25[%116, %c0_78] : memref<8x32xf32, #tpu.memory_space<vmem>>, vector<1x32xf32>
    %118 = arith.mulf %115, %60 : vector<1x32xf32>
    %119 = arith.truncf %118 : vector<1x32xf32> to vector<1x32xbf16>
    %cst_79 = arith.constant dense<0.000000e+00> : vector<1x32xf32>
    %120 = tpu.matmul %119, %22, %cst_79 {dimension_numbers = #tpu.dot_dimension_numbers<[1], [0], [0], [1], [0, 0, 1, 1], [], []>} : vector<1x32xbf16>, vector<32x32xbf16>, vector<1x32xf32> -> vector<1x32xf32>
    %121 = arith.addf %117, %120 : vector<1x32xf32>
    %122 = math.tanh %121 : vector<1x32xf32>
    %cst_80 = arith.constant 1.000000e+00 : f32
    %123 = vector.broadcast %cst_80 : f32 to vector<1x32xf32>
    %124 = arith.subf %123, %110 : vector<1x32xf32>
    %125 = arith.mulf %124, %60 : vector<1x32xf32>
    %126 = arith.mulf %110, %122 : vector<1x32xf32>
    %127 = arith.addf %125, %126 : vector<1x32xf32>
    %c2_i32 = arith.constant 2 : i32
    %c1_i32_81 = arith.constant 1 : i32
    %128 = arith.subi %c2_i32, %c1_i32_81 : i32
    %129 = arith.truncf %127 : vector<1x32xf32> to vector<1x32xbf16>
    %130 = arith.truncf %94 : vector<1x32xf32> to vector<1x32xbf16>
    %cst_82 = arith.constant dense<0.000000e+00> : vector<1x32xf32>
    %131 = tpu.matmul %129, %23, %cst_82 {dimension_numbers = #tpu.dot_dimension_numbers<[1], [0], [0], [1], [0, 0, 1, 1], [], []>} : vector<1x32xbf16>, vector<32x32xbf16>, vector<1x32xf32> -> vector<1x32xf32>
    %cst_83 = arith.constant dense<0.000000e+00> : vector<1x32xf32>
    %132 = tpu.matmul %130, %26, %cst_83 {dimension_numbers = #tpu.dot_dimension_numbers<[1], [0], [0], [1], [0, 0, 1, 1], [], []>} : vector<1x32xbf16>, vector<32x32xbf16>, vector<1x32xf32> -> vector<1x32xf32>
    %133 = arith.addf %131, %132 : vector<1x32xf32>
    %134 = arith.addf %133, %29 : vector<1x32xf32>
    %cst_84 = arith.constant dense<0.000000e+00> : vector<1x32xf32>
    %135 = tpu.matmul %129, %24, %cst_84 {dimension_numbers = #tpu.dot_dimension_numbers<[1], [0], [0], [1], [0, 0, 1, 1], [], []>} : vector<1x32xbf16>, vector<32x32xbf16>, vector<1x32xf32> -> vector<1x32xf32>
    %cst_85 = arith.constant dense<0.000000e+00> : vector<1x32xf32>
    %136 = tpu.matmul %130, %27, %cst_85 {dimension_numbers = #tpu.dot_dimension_numbers<[1], [0], [0], [1], [0, 0, 1, 1], [], []>} : vector<1x32xbf16>, vector<32x32xbf16>, vector<1x32xf32> -> vector<1x32xf32>
    %137 = arith.addf %135, %136 : vector<1x32xf32>
    %138 = arith.addf %137, %30 : vector<1x32xf32>
    %139 = arith.negf %134 : vector<1x32xf32>
    %140 = math.exp %139 : vector<1x32xf32>
    %cst_86 = arith.constant 1.000000e+00 : f32
    %141 = vector.broadcast %cst_86 : f32 to vector<1x32xf32>
    %142 = arith.addf %141, %140 : vector<1x32xf32>
    %143 = arith.divf %141, %142 : vector<1x32xf32>
    %144 = arith.negf %138 : vector<1x32xf32>
    %145 = math.exp %144 : vector<1x32xf32>
    %cst_87 = arith.constant 1.000000e+00 : f32
    %146 = vector.broadcast %cst_87 : f32 to vector<1x32xf32>
    %147 = arith.addf %146, %145 : vector<1x32xf32>
    %148 = arith.divf %146, %147 : vector<1x32xf32>
    %cst_88 = arith.constant dense<0.000000e+00> : vector<1x32xf32>
    %149 = tpu.matmul %129, %25, %cst_88 {dimension_numbers = #tpu.dot_dimension_numbers<[1], [0], [0], [1], [0, 0, 1, 1], [], []>} : vector<1x32xbf16>, vector<32x32xbf16>, vector<1x32xf32> -> vector<1x32xf32>
    %150 = arith.mulf %148, %94 : vector<1x32xf32>
    %151 = arith.truncf %150 : vector<1x32xf32> to vector<1x32xbf16>
    %cst_89 = arith.constant dense<0.000000e+00> : vector<1x32xf32>
    %152 = tpu.matmul %151, %28, %cst_89 {dimension_numbers = #tpu.dot_dimension_numbers<[1], [0], [0], [1], [0, 0, 1, 1], [], []>} : vector<1x32xbf16>, vector<32x32xbf16>, vector<1x32xf32> -> vector<1x32xf32>
    %153 = arith.addf %149, %152 : vector<1x32xf32>
    %154 = arith.addf %153, %31 : vector<1x32xf32>
    %155 = math.tanh %154 : vector<1x32xf32>
    %cst_90 = arith.constant 1.000000e+00 : f32
    %156 = vector.broadcast %cst_90 : f32 to vector<1x32xf32>
    %157 = arith.subf %156, %143 : vector<1x32xf32>
    %158 = arith.mulf %157, %94 : vector<1x32xf32>
    %159 = arith.mulf %143, %155 : vector<1x32xf32>
    %160 = arith.addf %158, %159 : vector<1x32xf32>
    %161 = arith.index_cast %128 : i32 to index
    %c0_91 = arith.constant 0 : index
    %162 = vector.load %arg26[%161, %c0_91] : memref<8x32xf32, #tpu.memory_space<vmem>>, vector<1x32xf32>
    tpu.vector_store %arg26[%161, %c0_91], %160 {strides = array<i32>} : memref<8x32xf32, #tpu.memory_space<vmem>>, vector<1x32xf32>,
    %163 = arith.truncf %127 : vector<1x32xf32> to vector<1x32xbf16>
    %164 = arith.index_cast %c2_i32 : i32 to index
    %c0_92 = arith.constant 0 : index
    %165 = vector.load %arg23[%164, %c0_92] : memref<8x32xf32, #tpu.memory_space<vmem>>, vector<1x32xf32>
    %cst_93 = arith.constant dense<0.000000e+00> : vector<1x32xf32>
    %166 = tpu.matmul %163, %20, %cst_93 {dimension_numbers = #tpu.dot_dimension_numbers<[1], [0], [0], [1], [0, 0, 1, 1], [], []>} : vector<1x32xbf16>, vector<32x32xbf16>, vector<1x32xf32> -> vector<1x32xf32>
    %167 = arith.addf %165, %166 : vector<1x32xf32>
    %168 = arith.index_cast %c2_i32 : i32 to index
    %c0_94 = arith.constant 0 : index
    %169 = vector.load %arg24[%168, %c0_94] : memref<8x32xf32, #tpu.memory_space<vmem>>, vector<1x32xf32>
    %cst_95 = arith.constant dense<0.000000e+00> : vector<1x32xf32>
    %170 = tpu.matmul %163, %21, %cst_95 {dimension_numbers = #tpu.dot_dimension_numbers<[1], [0], [0], [1], [0, 0, 1, 1], [], []>} : vector<1x32xbf16>, vector<32x32xbf16>, vector<1x32xf32> -> vector<1x32xf32>
    %171 = arith.addf %169, %170 : vector<1x32xf32>
    %172 = arith.negf %167 : vector<1x32xf32>
    %173 = math.exp %172 : vector<1x32xf32>
    %cst_96 = arith.constant 1.000000e+00 : f32
    %174 = vector.broadcast %cst_96 : f32 to vector<1x32xf32>
    %175 = arith.addf %174, %173 : vector<1x32xf32>
    %176 = arith.divf %174, %175 : vector<1x32xf32>
    %177 = arith.negf %171 : vector<1x32xf32>
    %178 = math.exp %177 : vector<1x32xf32>
    %cst_97 = arith.constant 1.000000e+00 : f32
    %179 = vector.broadcast %cst_97 : f32 to vector<1x32xf32>
    %180 = arith.addf %179, %178 : vector<1x32xf32>
    %181 = arith.divf %179, %180 : vector<1x32xf32>
    %182 = arith.index_cast %c2_i32 : i32 to index
    %c0_98 = arith.constant 0 : index
    %183 = vector.load %arg25[%182, %c0_98] : memref<8x32xf32, #tpu.memory_space<vmem>>, vector<1x32xf32>
    %184 = arith.mulf %181, %127 : vector<1x32xf32>
    %185 = arith.truncf %184 : vector<1x32xf32> to vector<1x32xbf16>
    %cst_99 = arith.constant dense<0.000000e+00> : vector<1x32xf32>
    %186 = tpu.matmul %185, %22, %cst_99 {dimension_numbers = #tpu.dot_dimension_numbers<[1], [0], [0], [1], [0, 0, 1, 1], [], []>} : vector<1x32xbf16>, vector<32x32xbf16>, vector<1x32xf32> -> vector<1x32xf32>
    %187 = arith.addf %183, %186 : vector<1x32xf32>
    %188 = math.tanh %187 : vector<1x32xf32>
    %cst_100 = arith.constant 1.000000e+00 : f32
    %189 = vector.broadcast %cst_100 : f32 to vector<1x32xf32>
    %190 = arith.subf %189, %176 : vector<1x32xf32>
    %191 = arith.mulf %190, %127 : vector<1x32xf32>
    %192 = arith.mulf %176, %188 : vector<1x32xf32>
    %193 = arith.addf %191, %192 : vector<1x32xf32>
    %c3_i32 = arith.constant 3 : i32
    %c1_i32_101 = arith.constant 1 : i32
    %194 = arith.subi %c3_i32, %c1_i32_101 : i32
    %195 = arith.truncf %193 : vector<1x32xf32> to vector<1x32xbf16>
    %196 = arith.truncf %160 : vector<1x32xf32> to vector<1x32xbf16>
    %cst_102 = arith.constant dense<0.000000e+00> : vector<1x32xf32>
    %197 = tpu.matmul %195, %23, %cst_102 {dimension_numbers = #tpu.dot_dimension_numbers<[1], [0], [0], [1], [0, 0, 1, 1], [], []>} : vector<1x32xbf16>, vector<32x32xbf16>, vector<1x32xf32> -> vector<1x32xf32>
    %cst_103 = arith.constant dense<0.000000e+00> : vector<1x32xf32>
    %198 = tpu.matmul %196, %26, %cst_103 {dimension_numbers = #tpu.dot_dimension_numbers<[1], [0], [0], [1], [0, 0, 1, 1], [], []>} : vector<1x32xbf16>, vector<32x32xbf16>, vector<1x32xf32> -> vector<1x32xf32>
    %199 = arith.addf %197, %198 : vector<1x32xf32>
    %200 = arith.addf %199, %29 : vector<1x32xf32>
    %cst_104 = arith.constant dense<0.000000e+00> : vector<1x32xf32>
    %201 = tpu.matmul %195, %24, %cst_104 {dimension_numbers = #tpu.dot_dimension_numbers<[1], [0], [0], [1], [0, 0, 1, 1], [], []>} : vector<1x32xbf16>, vector<32x32xbf16>, vector<1x32xf32> -> vector<1x32xf32>
    %cst_105 = arith.constant dense<0.000000e+00> : vector<1x32xf32>
    %202 = tpu.matmul %196, %27, %cst_105 {dimension_numbers = #tpu.dot_dimension_numbers<[1], [0], [0], [1], [0, 0, 1, 1], [], []>} : vector<1x32xbf16>, vector<32x32xbf16>, vector<1x32xf32> -> vector<1x32xf32>
    %203 = arith.addf %201, %202 : vector<1x32xf32>
    %204 = arith.addf %203, %30 : vector<1x32xf32>
    %205 = arith.negf %200 : vector<1x32xf32>
    %206 = math.exp %205 : vector<1x32xf32>
    %cst_106 = arith.constant 1.000000e+00 : f32
    %207 = vector.broadcast %cst_106 : f32 to vector<1x32xf32>
    %208 = arith.addf %207, %206 : vector<1x32xf32>
    %209 = arith.divf %207, %208 : vector<1x32xf32>
    %210 = arith.negf %204 : vector<1x32xf32>
    %211 = math.exp %210 : vector<1x32xf32>
    %cst_107 = arith.constant 1.000000e+00 : f32
    %212 = vector.broadcast %cst_107 : f32 to vector<1x32xf32>
    %213 = arith.addf %212, %211 : vector<1x32xf32>
    %214 = arith.divf %212, %213 : vector<1x32xf32>
    %cst_108 = arith.constant dense<0.000000e+00> : vector<1x32xf32>
    %215 = tpu.matmul %195, %25, %cst_108 {dimension_numbers = #tpu.dot_dimension_numbers<[1], [0], [0], [1], [0, 0, 1, 1], [], []>} : vector<1x32xbf16>, vector<32x32xbf16>, vector<1x32xf32> -> vector<1x32xf32>
    %216 = arith.mulf %214, %160 : vector<1x32xf32>
    %217 = arith.truncf %216 : vector<1x32xf32> to vector<1x32xbf16>
    %cst_109 = arith.constant dense<0.000000e+00> : vector<1x32xf32>
    %218 = tpu.matmul %217, %28, %cst_109 {dimension_numbers = #tpu.dot_dimension_numbers<[1], [0], [0], [1], [0, 0, 1, 1], [], []>} : vector<1x32xbf16>, vector<32x32xbf16>, vector<1x32xf32> -> vector<1x32xf32>
    %219 = arith.addf %215, %218 : vector<1x32xf32>
    %220 = arith.addf %219, %31 : vector<1x32xf32>
    %221 = math.tanh %220 : vector<1x32xf32>
    %cst_110 = arith.constant 1.000000e+00 : f32
    %222 = vector.broadcast %cst_110 : f32 to vector<1x32xf32>
    %223 = arith.subf %222, %209 : vector<1x32xf32>
    %224 = arith.mulf %223, %160 : vector<1x32xf32>
    %225 = arith.mulf %209, %221 : vector<1x32xf32>
    %226 = arith.addf %224, %225 : vector<1x32xf32>
    %227 = arith.index_cast %194 : i32 to index
    %c0_111 = arith.constant 0 : index
    %228 = vector.load %arg26[%227, %c0_111] : memref<8x32xf32, #tpu.memory_space<vmem>>, vector<1x32xf32>
    tpu.vector_store %arg26[%227, %c0_111], %226 {strides = array<i32>} : memref<8x32xf32, #tpu.memory_space<vmem>>, vector<1x32xf32>,
    %229 = arith.truncf %193 : vector<1x32xf32> to vector<1x32xbf16>
    %230 = arith.index_cast %c3_i32 : i32 to index
    %c0_112 = arith.constant 0 : index
    %231 = vector.load %arg23[%230, %c0_112] : memref<8x32xf32, #tpu.memory_space<vmem>>, vector<1x32xf32>
    %cst_113 = arith.constant dense<0.000000e+00> : vector<1x32xf32>
    %232 = tpu.matmul %229, %20, %cst_113 {dimension_numbers = #tpu.dot_dimension_numbers<[1], [0], [0], [1], [0, 0, 1, 1], [], []>} : vector<1x32xbf16>, vector<32x32xbf16>, vector<1x32xf32> -> vector<1x32xf32>
    %233 = arith.addf %231, %232 : vector<1x32xf32>
    %234 = arith.index_cast %c3_i32 : i32 to index
    %c0_114 = arith.constant 0 : index
    %235 = vector.load %arg24[%234, %c0_114] : memref<8x32xf32, #tpu.memory_space<vmem>>, vector<1x32xf32>
    %cst_115 = arith.constant dense<0.000000e+00> : vector<1x32xf32>
    %236 = tpu.matmul %229, %21, %cst_115 {dimension_numbers = #tpu.dot_dimension_numbers<[1], [0], [0], [1], [0, 0, 1, 1], [], []>} : vector<1x32xbf16>, vector<32x32xbf16>, vector<1x32xf32> -> vector<1x32xf32>
    %237 = arith.addf %235, %236 : vector<1x32xf32>
    %238 = arith.negf %233 : vector<1x32xf32>
    %239 = math.exp %238 : vector<1x32xf32>
    %cst_116 = arith.constant 1.000000e+00 : f32
    %240 = vector.broadcast %cst_116 : f32 to vector<1x32xf32>
    %241 = arith.addf %240, %239 : vector<1x32xf32>
    %242 = arith.divf %240, %241 : vector<1x32xf32>
    %243 = arith.negf %237 : vector<1x32xf32>
    %244 = math.exp %243 : vector<1x32xf32>
    %cst_117 = arith.constant 1.000000e+00 : f32
    %245 = vector.broadcast %cst_117 : f32 to vector<1x32xf32>
    %246 = arith.addf %245, %244 : vector<1x32xf32>
    %247 = arith.divf %245, %246 : vector<1x32xf32>
    %248 = arith.index_cast %c3_i32 : i32 to index
    %c0_118 = arith.constant 0 : index
    %249 = vector.load %arg25[%248, %c0_118] : memref<8x32xf32, #tpu.memory_space<vmem>>, vector<1x32xf32>
    %250 = arith.mulf %247, %193 : vector<1x32xf32>
    %251 = arith.truncf %250 : vector<1x32xf32> to vector<1x32xbf16>
    %cst_119 = arith.constant dense<0.000000e+00> : vector<1x32xf32>
    %252 = tpu.matmul %251, %22, %cst_119 {dimension_numbers = #tpu.dot_dimension_numbers<[1], [0], [0], [1], [0, 0, 1, 1], [], []>} : vector<1x32xbf16>, vector<32x32xbf16>, vector<1x32xf32> -> vector<1x32xf32>
    %253 = arith.addf %249, %252 : vector<1x32xf32>
    %254 = math.tanh %253 : vector<1x32xf32>
    %cst_120 = arith.constant 1.000000e+00 : f32
    %255 = vector.broadcast %cst_120 : f32 to vector<1x32xf32>
    %256 = arith.subf %255, %242 : vector<1x32xf32>
    %257 = arith.mulf %256, %193 : vector<1x32xf32>
    %258 = arith.mulf %242, %254 : vector<1x32xf32>
    %259 = arith.addf %257, %258 : vector<1x32xf32>
    %c4_i32 = arith.constant 4 : i32
    %c1_i32_121 = arith.constant 1 : i32
    %260 = arith.subi %c4_i32, %c1_i32_121 : i32
    %261 = arith.truncf %259 : vector<1x32xf32> to vector<1x32xbf16>
    %262 = arith.truncf %226 : vector<1x32xf32> to vector<1x32xbf16>
    %cst_122 = arith.constant dense<0.000000e+00> : vector<1x32xf32>
    %263 = tpu.matmul %261, %23, %cst_122 {dimension_numbers = #tpu.dot_dimension_numbers<[1], [0], [0], [1], [0, 0, 1, 1], [], []>} : vector<1x32xbf16>, vector<32x32xbf16>, vector<1x32xf32> -> vector<1x32xf32>
    %cst_123 = arith.constant dense<0.000000e+00> : vector<1x32xf32>
    %264 = tpu.matmul %262, %26, %cst_123 {dimension_numbers = #tpu.dot_dimension_numbers<[1], [0], [0], [1], [0, 0, 1, 1], [], []>} : vector<1x32xbf16>, vector<32x32xbf16>, vector<1x32xf32> -> vector<1x32xf32>
    %265 = arith.addf %263, %264 : vector<1x32xf32>
    %266 = arith.addf %265, %29 : vector<1x32xf32>
    %cst_124 = arith.constant dense<0.000000e+00> : vector<1x32xf32>
    %267 = tpu.matmul %261, %24, %cst_124 {dimension_numbers = #tpu.dot_dimension_numbers<[1], [0], [0], [1], [0, 0, 1, 1], [], []>} : vector<1x32xbf16>, vector<32x32xbf16>, vector<1x32xf32> -> vector<1x32xf32>
    %cst_125 = arith.constant dense<0.000000e+00> : vector<1x32xf32>
    %268 = tpu.matmul %262, %27, %cst_125 {dimension_numbers = #tpu.dot_dimension_numbers<[1], [0], [0], [1], [0, 0, 1, 1], [], []>} : vector<1x32xbf16>, vector<32x32xbf16>, vector<1x32xf32> -> vector<1x32xf32>
    %269 = arith.addf %267, %268 : vector<1x32xf32>
    %270 = arith.addf %269, %30 : vector<1x32xf32>
    %271 = arith.negf %266 : vector<1x32xf32>
    %272 = math.exp %271 : vector<1x32xf32>
    %cst_126 = arith.constant 1.000000e+00 : f32
    %273 = vector.broadcast %cst_126 : f32 to vector<1x32xf32>
    %274 = arith.addf %273, %272 : vector<1x32xf32>
    %275 = arith.divf %273, %274 : vector<1x32xf32>
    %276 = arith.negf %270 : vector<1x32xf32>
    %277 = math.exp %276 : vector<1x32xf32>
    %cst_127 = arith.constant 1.000000e+00 : f32
    %278 = vector.broadcast %cst_127 : f32 to vector<1x32xf32>
    %279 = arith.addf %278, %277 : vector<1x32xf32>
    %280 = arith.divf %278, %279 : vector<1x32xf32>
    %cst_128 = arith.constant dense<0.000000e+00> : vector<1x32xf32>
    %281 = tpu.matmul %261, %25, %cst_128 {dimension_numbers = #tpu.dot_dimension_numbers<[1], [0], [0], [1], [0, 0, 1, 1], [], []>} : vector<1x32xbf16>, vector<32x32xbf16>, vector<1x32xf32> -> vector<1x32xf32>
    %282 = arith.mulf %280, %226 : vector<1x32xf32>
    %283 = arith.truncf %282 : vector<1x32xf32> to vector<1x32xbf16>
    %cst_129 = arith.constant dense<0.000000e+00> : vector<1x32xf32>
    %284 = tpu.matmul %283, %28, %cst_129 {dimension_numbers = #tpu.dot_dimension_numbers<[1], [0], [0], [1], [0, 0, 1, 1], [], []>} : vector<1x32xbf16>, vector<32x32xbf16>, vector<1x32xf32> -> vector<1x32xf32>
    %285 = arith.addf %281, %284 : vector<1x32xf32>
    %286 = arith.addf %285, %31 : vector<1x32xf32>
    %287 = math.tanh %286 : vector<1x32xf32>
    %cst_130 = arith.constant 1.000000e+00 : f32
    %288 = vector.broadcast %cst_130 : f32 to vector<1x32xf32>
    %289 = arith.subf %288, %275 : vector<1x32xf32>
    %290 = arith.mulf %289, %226 : vector<1x32xf32>
    %291 = arith.mulf %275, %287 : vector<1x32xf32>
    %292 = arith.addf %290, %291 : vector<1x32xf32>
    %293 = arith.index_cast %260 : i32 to index
    %c0_131 = arith.constant 0 : index
    %294 = vector.load %arg26[%293, %c0_131] : memref<8x32xf32, #tpu.memory_space<vmem>>, vector<1x32xf32>
    tpu.vector_store %arg26[%293, %c0_131], %292 {strides = array<i32>} : memref<8x32xf32, #tpu.memory_space<vmem>>, vector<1x32xf32>,
    %295 = arith.truncf %259 : vector<1x32xf32> to vector<1x32xbf16>
    %296 = arith.index_cast %c4_i32 : i32 to index
    %c0_132 = arith.constant 0 : index
    %297 = vector.load %arg23[%296, %c0_132] : memref<8x32xf32, #tpu.memory_space<vmem>>, vector<1x32xf32>
    %cst_133 = arith.constant dense<0.000000e+00> : vector<1x32xf32>
    %298 = tpu.matmul %295, %20, %cst_133 {dimension_numbers = #tpu.dot_dimension_numbers<[1], [0], [0], [1], [0, 0, 1, 1], [], []>} : vector<1x32xbf16>, vector<32x32xbf16>, vector<1x32xf32> -> vector<1x32xf32>
    %299 = arith.addf %297, %298 : vector<1x32xf32>
    %300 = arith.index_cast %c4_i32 : i32 to index
    %c0_134 = arith.constant 0 : index
    %301 = vector.load %arg24[%300, %c0_134] : memref<8x32xf32, #tpu.memory_space<vmem>>, vector<1x32xf32>
    %cst_135 = arith.constant dense<0.000000e+00> : vector<1x32xf32>
    %302 = tpu.matmul %295, %21, %cst_135 {dimension_numbers = #tpu.dot_dimension_numbers<[1], [0], [0], [1], [0, 0, 1, 1], [], []>} : vector<1x32xbf16>, vector<32x32xbf16>, vector<1x32xf32> -> vector<1x32xf32>
    %303 = arith.addf %301, %302 : vector<1x32xf32>
    %304 = arith.negf %299 : vector<1x32xf32>
    %305 = math.exp %304 : vector<1x32xf32>
    %cst_136 = arith.constant 1.000000e+00 : f32
    %306 = vector.broadcast %cst_136 : f32 to vector<1x32xf32>
    %307 = arith.addf %306, %305 : vector<1x32xf32>
    %308 = arith.divf %306, %307 : vector<1x32xf32>
    %309 = arith.negf %303 : vector<1x32xf32>
    %310 = math.exp %309 : vector<1x32xf32>
    %cst_137 = arith.constant 1.000000e+00 : f32
    %311 = vector.broadcast %cst_137 : f32 to vector<1x32xf32>
    %312 = arith.addf %311, %310 : vector<1x32xf32>
    %313 = arith.divf %311, %312 : vector<1x32xf32>
    %314 = arith.index_cast %c4_i32 : i32 to index
    %c0_138 = arith.constant 0 : index
    %315 = vector.load %arg25[%314, %c0_138] : memref<8x32xf32, #tpu.memory_space<vmem>>, vector<1x32xf32>
    %316 = arith.mulf %313, %259 : vector<1x32xf32>
    %317 = arith.truncf %316 : vector<1x32xf32> to vector<1x32xbf16>
    %cst_139 = arith.constant dense<0.000000e+00> : vector<1x32xf32>
    %318 = tpu.matmul %317, %22, %cst_139 {dimension_numbers = #tpu.dot_dimension_numbers<[1], [0], [0], [1], [0, 0, 1, 1], [], []>} : vector<1x32xbf16>, vector<32x32xbf16>, vector<1x32xf32> -> vector<1x32xf32>
    %319 = arith.addf %315, %318 : vector<1x32xf32>
    %320 = math.tanh %319 : vector<1x32xf32>
    %cst_140 = arith.constant 1.000000e+00 : f32
    %321 = vector.broadcast %cst_140 : f32 to vector<1x32xf32>
    %322 = arith.subf %321, %308 : vector<1x32xf32>
    %323 = arith.mulf %322, %259 : vector<1x32xf32>
    %324 = arith.mulf %308, %320 : vector<1x32xf32>
    %325 = arith.addf %323, %324 : vector<1x32xf32>
    %c5_i32 = arith.constant 5 : i32
    %c1_i32_141 = arith.constant 1 : i32
    %326 = arith.subi %c5_i32, %c1_i32_141 : i32
    %327 = arith.truncf %325 : vector<1x32xf32> to vector<1x32xbf16>
    %328 = arith.truncf %292 : vector<1x32xf32> to vector<1x32xbf16>
    %cst_142 = arith.constant dense<0.000000e+00> : vector<1x32xf32>
    %329 = tpu.matmul %327, %23, %cst_142 {dimension_numbers = #tpu.dot_dimension_numbers<[1], [0], [0], [1], [0, 0, 1, 1], [], []>} : vector<1x32xbf16>, vector<32x32xbf16>, vector<1x32xf32> -> vector<1x32xf32>
    %cst_143 = arith.constant dense<0.000000e+00> : vector<1x32xf32>
    %330 = tpu.matmul %328, %26, %cst_143 {dimension_numbers = #tpu.dot_dimension_numbers<[1], [0], [0], [1], [0, 0, 1, 1], [], []>} : vector<1x32xbf16>, vector<32x32xbf16>, vector<1x32xf32> -> vector<1x32xf32>
    %331 = arith.addf %329, %330 : vector<1x32xf32>
    %332 = arith.addf %331, %29 : vector<1x32xf32>
    %cst_144 = arith.constant dense<0.000000e+00> : vector<1x32xf32>
    %333 = tpu.matmul %327, %24, %cst_144 {dimension_numbers = #tpu.dot_dimension_numbers<[1], [0], [0], [1], [0, 0, 1, 1], [], []>} : vector<1x32xbf16>, vector<32x32xbf16>, vector<1x32xf32> -> vector<1x32xf32>
    %cst_145 = arith.constant dense<0.000000e+00> : vector<1x32xf32>
    %334 = tpu.matmul %328, %27, %cst_145 {dimension_numbers = #tpu.dot_dimension_numbers<[1], [0], [0], [1], [0, 0, 1, 1], [], []>} : vector<1x32xbf16>, vector<32x32xbf16>, vector<1x32xf32> -> vector<1x32xf32>
    %335 = arith.addf %333, %334 : vector<1x32xf32>
    %336 = arith.addf %335, %30 : vector<1x32xf32>
    %337 = arith.negf %332 : vector<1x32xf32>
    %338 = math.exp %337 : vector<1x32xf32>
    %cst_146 = arith.constant 1.000000e+00 : f32
    %339 = vector.broadcast %cst_146 : f32 to vector<1x32xf32>
    %340 = arith.addf %339, %338 : vector<1x32xf32>
    %341 = arith.divf %339, %340 : vector<1x32xf32>
    %342 = arith.negf %336 : vector<1x32xf32>
    %343 = math.exp %342 : vector<1x32xf32>
    %cst_147 = arith.constant 1.000000e+00 : f32
    %344 = vector.broadcast %cst_147 : f32 to vector<1x32xf32>
    %345 = arith.addf %344, %343 : vector<1x32xf32>
    %346 = arith.divf %344, %345 : vector<1x32xf32>
    %cst_148 = arith.constant dense<0.000000e+00> : vector<1x32xf32>
    %347 = tpu.matmul %327, %25, %cst_148 {dimension_numbers = #tpu.dot_dimension_numbers<[1], [0], [0], [1], [0, 0, 1, 1], [], []>} : vector<1x32xbf16>, vector<32x32xbf16>, vector<1x32xf32> -> vector<1x32xf32>
    %348 = arith.mulf %346, %292 : vector<1x32xf32>
    %349 = arith.truncf %348 : vector<1x32xf32> to vector<1x32xbf16>
    %cst_149 = arith.constant dense<0.000000e+00> : vector<1x32xf32>
    %350 = tpu.matmul %349, %28, %cst_149 {dimension_numbers = #tpu.dot_dimension_numbers<[1], [0], [0], [1], [0, 0, 1, 1], [], []>} : vector<1x32xbf16>, vector<32x32xbf16>, vector<1x32xf32> -> vector<1x32xf32>
    %351 = arith.addf %347, %350 : vector<1x32xf32>
    %352 = arith.addf %351, %31 : vector<1x32xf32>
    %353 = math.tanh %352 : vector<1x32xf32>
    %cst_150 = arith.constant 1.000000e+00 : f32
    %354 = vector.broadcast %cst_150 : f32 to vector<1x32xf32>
    %355 = arith.subf %354, %341 : vector<1x32xf32>
    %356 = arith.mulf %355, %292 : vector<1x32xf32>
    %357 = arith.mulf %341, %353 : vector<1x32xf32>
    %358 = arith.addf %356, %357 : vector<1x32xf32>
    %359 = arith.index_cast %326 : i32 to index
    %c0_151 = arith.constant 0 : index
    %360 = vector.load %arg26[%359, %c0_151] : memref<8x32xf32, #tpu.memory_space<vmem>>, vector<1x32xf32>
    tpu.vector_store %arg26[%359, %c0_151], %358 {strides = array<i32>} : memref<8x32xf32, #tpu.memory_space<vmem>>, vector<1x32xf32>,
    %361 = arith.truncf %325 : vector<1x32xf32> to vector<1x32xbf16>
    %362 = arith.index_cast %c5_i32 : i32 to index
    %c0_152 = arith.constant 0 : index
    %363 = vector.load %arg23[%362, %c0_152] : memref<8x32xf32, #tpu.memory_space<vmem>>, vector<1x32xf32>
    %cst_153 = arith.constant dense<0.000000e+00> : vector<1x32xf32>
    %364 = tpu.matmul %361, %20, %cst_153 {dimension_numbers = #tpu.dot_dimension_numbers<[1], [0], [0], [1], [0, 0, 1, 1], [], []>} : vector<1x32xbf16>, vector<32x32xbf16>, vector<1x32xf32> -> vector<1x32xf32>
    %365 = arith.addf %363, %364 : vector<1x32xf32>
    %366 = arith.index_cast %c5_i32 : i32 to index
    %c0_154 = arith.constant 0 : index
    %367 = vector.load %arg24[%366, %c0_154] : memref<8x32xf32, #tpu.memory_space<vmem>>, vector<1x32xf32>
    %cst_155 = arith.constant dense<0.000000e+00> : vector<1x32xf32>
    %368 = tpu.matmul %361, %21, %cst_155 {dimension_numbers = #tpu.dot_dimension_numbers<[1], [0], [0], [1], [0, 0, 1, 1], [], []>} : vector<1x32xbf16>, vector<32x32xbf16>, vector<1x32xf32> -> vector<1x32xf32>
    %369 = arith.addf %367, %368 : vector<1x32xf32>
    %370 = arith.negf %365 : vector<1x32xf32>
    %371 = math.exp %370 : vector<1x32xf32>
    %cst_156 = arith.constant 1.000000e+00 : f32
    %372 = vector.broadcast %cst_156 : f32 to vector<1x32xf32>
    %373 = arith.addf %372, %371 : vector<1x32xf32>
    %374 = arith.divf %372, %373 : vector<1x32xf32>
    %375 = arith.negf %369 : vector<1x32xf32>
    %376 = math.exp %375 : vector<1x32xf32>
    %cst_157 = arith.constant 1.000000e+00 : f32
    %377 = vector.broadcast %cst_157 : f32 to vector<1x32xf32>
    %378 = arith.addf %377, %376 : vector<1x32xf32>
    %379 = arith.divf %377, %378 : vector<1x32xf32>
    %380 = arith.index_cast %c5_i32 : i32 to index
    %c0_158 = arith.constant 0 : index
    %381 = vector.load %arg25[%380, %c0_158] : memref<8x32xf32, #tpu.memory_space<vmem>>, vector<1x32xf32>
    %382 = arith.mulf %379, %325 : vector<1x32xf32>
    %383 = arith.truncf %382 : vector<1x32xf32> to vector<1x32xbf16>
    %cst_159 = arith.constant dense<0.000000e+00> : vector<1x32xf32>
    %384 = tpu.matmul %383, %22, %cst_159 {dimension_numbers = #tpu.dot_dimension_numbers<[1], [0], [0], [1], [0, 0, 1, 1], [], []>} : vector<1x32xbf16>, vector<32x32xbf16>, vector<1x32xf32> -> vector<1x32xf32>
    %385 = arith.addf %381, %384 : vector<1x32xf32>
    %386 = math.tanh %385 : vector<1x32xf32>
    %cst_160 = arith.constant 1.000000e+00 : f32
    %387 = vector.broadcast %cst_160 : f32 to vector<1x32xf32>
    %388 = arith.subf %387, %374 : vector<1x32xf32>
    %389 = arith.mulf %388, %325 : vector<1x32xf32>
    %390 = arith.mulf %374, %386 : vector<1x32xf32>
    %391 = arith.addf %389, %390 : vector<1x32xf32>
    %c6_i32 = arith.constant 6 : i32
    %c1_i32_161 = arith.constant 1 : i32
    %392 = arith.subi %c6_i32, %c1_i32_161 : i32
    %393 = arith.truncf %391 : vector<1x32xf32> to vector<1x32xbf16>
    %394 = arith.truncf %358 : vector<1x32xf32> to vector<1x32xbf16>
    %cst_162 = arith.constant dense<0.000000e+00> : vector<1x32xf32>
    %395 = tpu.matmul %393, %23, %cst_162 {dimension_numbers = #tpu.dot_dimension_numbers<[1], [0], [0], [1], [0, 0, 1, 1], [], []>} : vector<1x32xbf16>, vector<32x32xbf16>, vector<1x32xf32> -> vector<1x32xf32>
    %cst_163 = arith.constant dense<0.000000e+00> : vector<1x32xf32>
    %396 = tpu.matmul %394, %26, %cst_163 {dimension_numbers = #tpu.dot_dimension_numbers<[1], [0], [0], [1], [0, 0, 1, 1], [], []>} : vector<1x32xbf16>, vector<32x32xbf16>, vector<1x32xf32> -> vector<1x32xf32>
    %397 = arith.addf %395, %396 : vector<1x32xf32>
    %398 = arith.addf %397, %29 : vector<1x32xf32>
    %cst_164 = arith.constant dense<0.000000e+00> : vector<1x32xf32>
    %399 = tpu.matmul %393, %24, %cst_164 {dimension_numbers = #tpu.dot_dimension_numbers<[1], [0], [0], [1], [0, 0, 1, 1], [], []>} : vector<1x32xbf16>, vector<32x32xbf16>, vector<1x32xf32> -> vector<1x32xf32>
    %cst_165 = arith.constant dense<0.000000e+00> : vector<1x32xf32>
    %400 = tpu.matmul %394, %27, %cst_165 {dimension_numbers = #tpu.dot_dimension_numbers<[1], [0], [0], [1], [0, 0, 1, 1], [], []>} : vector<1x32xbf16>, vector<32x32xbf16>, vector<1x32xf32> -> vector<1x32xf32>
    %401 = arith.addf %399, %400 : vector<1x32xf32>
    %402 = arith.addf %401, %30 : vector<1x32xf32>
    %403 = arith.negf %398 : vector<1x32xf32>
    %404 = math.exp %403 : vector<1x32xf32>
    %cst_166 = arith.constant 1.000000e+00 : f32
    %405 = vector.broadcast %cst_166 : f32 to vector<1x32xf32>
    %406 = arith.addf %405, %404 : vector<1x32xf32>
    %407 = arith.divf %405, %406 : vector<1x32xf32>
    %408 = arith.negf %402 : vector<1x32xf32>
    %409 = math.exp %408 : vector<1x32xf32>
    %cst_167 = arith.constant 1.000000e+00 : f32
    %410 = vector.broadcast %cst_167 : f32 to vector<1x32xf32>
    %411 = arith.addf %410, %409 : vector<1x32xf32>
    %412 = arith.divf %410, %411 : vector<1x32xf32>
    %cst_168 = arith.constant dense<0.000000e+00> : vector<1x32xf32>
    %413 = tpu.matmul %393, %25, %cst_168 {dimension_numbers = #tpu.dot_dimension_numbers<[1], [0], [0], [1], [0, 0, 1, 1], [], []>} : vector<1x32xbf16>, vector<32x32xbf16>, vector<1x32xf32> -> vector<1x32xf32>
    %414 = arith.mulf %412, %358 : vector<1x32xf32>
    %415 = arith.truncf %414 : vector<1x32xf32> to vector<1x32xbf16>
    %cst_169 = arith.constant dense<0.000000e+00> : vector<1x32xf32>
    %416 = tpu.matmul %415, %28, %cst_169 {dimension_numbers = #tpu.dot_dimension_numbers<[1], [0], [0], [1], [0, 0, 1, 1], [], []>} : vector<1x32xbf16>, vector<32x32xbf16>, vector<1x32xf32> -> vector<1x32xf32>
    %417 = arith.addf %413, %416 : vector<1x32xf32>
    %418 = arith.addf %417, %31 : vector<1x32xf32>
    %419 = math.tanh %418 : vector<1x32xf32>
    %cst_170 = arith.constant 1.000000e+00 : f32
    %420 = vector.broadcast %cst_170 : f32 to vector<1x32xf32>
    %421 = arith.subf %420, %407 : vector<1x32xf32>
    %422 = arith.mulf %421, %358 : vector<1x32xf32>
    %423 = arith.mulf %407, %419 : vector<1x32xf32>
    %424 = arith.addf %422, %423 : vector<1x32xf32>
    %425 = arith.index_cast %392 : i32 to index
    %c0_171 = arith.constant 0 : index
    %426 = vector.load %arg26[%425, %c0_171] : memref<8x32xf32, #tpu.memory_space<vmem>>, vector<1x32xf32>
    tpu.vector_store %arg26[%425, %c0_171], %424 {strides = array<i32>} : memref<8x32xf32, #tpu.memory_space<vmem>>, vector<1x32xf32>,
    %427 = arith.truncf %391 : vector<1x32xf32> to vector<1x32xbf16>
    %428 = arith.index_cast %c6_i32 : i32 to index
    %c0_172 = arith.constant 0 : index
    %429 = vector.load %arg23[%428, %c0_172] : memref<8x32xf32, #tpu.memory_space<vmem>>, vector<1x32xf32>
    %cst_173 = arith.constant dense<0.000000e+00> : vector<1x32xf32>
    %430 = tpu.matmul %427, %20, %cst_173 {dimension_numbers = #tpu.dot_dimension_numbers<[1], [0], [0], [1], [0, 0, 1, 1], [], []>} : vector<1x32xbf16>, vector<32x32xbf16>, vector<1x32xf32> -> vector<1x32xf32>
    %431 = arith.addf %429, %430 : vector<1x32xf32>
    %432 = arith.index_cast %c6_i32 : i32 to index
    %c0_174 = arith.constant 0 : index
    %433 = vector.load %arg24[%432, %c0_174] : memref<8x32xf32, #tpu.memory_space<vmem>>, vector<1x32xf32>
    %cst_175 = arith.constant dense<0.000000e+00> : vector<1x32xf32>
    %434 = tpu.matmul %427, %21, %cst_175 {dimension_numbers = #tpu.dot_dimension_numbers<[1], [0], [0], [1], [0, 0, 1, 1], [], []>} : vector<1x32xbf16>, vector<32x32xbf16>, vector<1x32xf32> -> vector<1x32xf32>
    %435 = arith.addf %433, %434 : vector<1x32xf32>
    %436 = arith.negf %431 : vector<1x32xf32>
    %437 = math.exp %436 : vector<1x32xf32>
    %cst_176 = arith.constant 1.000000e+00 : f32
    %438 = vector.broadcast %cst_176 : f32 to vector<1x32xf32>
    %439 = arith.addf %438, %437 : vector<1x32xf32>
    %440 = arith.divf %438, %439 : vector<1x32xf32>
    %441 = arith.negf %435 : vector<1x32xf32>
    %442 = math.exp %441 : vector<1x32xf32>
    %cst_177 = arith.constant 1.000000e+00 : f32
    %443 = vector.broadcast %cst_177 : f32 to vector<1x32xf32>
    %444 = arith.addf %443, %442 : vector<1x32xf32>
    %445 = arith.divf %443, %444 : vector<1x32xf32>
    %446 = arith.index_cast %c6_i32 : i32 to index
    %c0_178 = arith.constant 0 : index
    %447 = vector.load %arg25[%446, %c0_178] : memref<8x32xf32, #tpu.memory_space<vmem>>, vector<1x32xf32>
    %448 = arith.mulf %445, %391 : vector<1x32xf32>
    %449 = arith.truncf %448 : vector<1x32xf32> to vector<1x32xbf16>
    %cst_179 = arith.constant dense<0.000000e+00> : vector<1x32xf32>
    %450 = tpu.matmul %449, %22, %cst_179 {dimension_numbers = #tpu.dot_dimension_numbers<[1], [0], [0], [1], [0, 0, 1, 1], [], []>} : vector<1x32xbf16>, vector<32x32xbf16>, vector<1x32xf32> -> vector<1x32xf32>
    %451 = arith.addf %447, %450 : vector<1x32xf32>
    %452 = math.tanh %451 : vector<1x32xf32>
    %cst_180 = arith.constant 1.000000e+00 : f32
    %453 = vector.broadcast %cst_180 : f32 to vector<1x32xf32>
    %454 = arith.subf %453, %440 : vector<1x32xf32>
    %455 = arith.mulf %454, %391 : vector<1x32xf32>
    %456 = arith.mulf %440, %452 : vector<1x32xf32>
    %457 = arith.addf %455, %456 : vector<1x32xf32>
    %c7_i32 = arith.constant 7 : i32
    %c1_i32_181 = arith.constant 1 : i32
    %458 = arith.subi %c7_i32, %c1_i32_181 : i32
    %459 = arith.truncf %457 : vector<1x32xf32> to vector<1x32xbf16>
    %460 = arith.truncf %424 : vector<1x32xf32> to vector<1x32xbf16>
    %cst_182 = arith.constant dense<0.000000e+00> : vector<1x32xf32>
    %461 = tpu.matmul %459, %23, %cst_182 {dimension_numbers = #tpu.dot_dimension_numbers<[1], [0], [0], [1], [0, 0, 1, 1], [], []>} : vector<1x32xbf16>, vector<32x32xbf16>, vector<1x32xf32> -> vector<1x32xf32>
    %cst_183 = arith.constant dense<0.000000e+00> : vector<1x32xf32>
    %462 = tpu.matmul %460, %26, %cst_183 {dimension_numbers = #tpu.dot_dimension_numbers<[1], [0], [0], [1], [0, 0, 1, 1], [], []>} : vector<1x32xbf16>, vector<32x32xbf16>, vector<1x32xf32> -> vector<1x32xf32>
    %463 = arith.addf %461, %462 : vector<1x32xf32>
    %464 = arith.addf %463, %29 : vector<1x32xf32>
    %cst_184 = arith.constant dense<0.000000e+00> : vector<1x32xf32>
    %465 = tpu.matmul %459, %24, %cst_184 {dimension_numbers = #tpu.dot_dimension_numbers<[1], [0], [0], [1], [0, 0, 1, 1], [], []>} : vector<1x32xbf16>, vector<32x32xbf16>, vector<1x32xf32> -> vector<1x32xf32>
    %cst_185 = arith.constant dense<0.000000e+00> : vector<1x32xf32>
    %466 = tpu.matmul %460, %27, %cst_185 {dimension_numbers = #tpu.dot_dimension_numbers<[1], [0], [0], [1], [0, 0, 1, 1], [], []>} : vector<1x32xbf16>, vector<32x32xbf16>, vector<1x32xf32> -> vector<1x32xf32>
    %467 = arith.addf %465, %466 : vector<1x32xf32>
    %468 = arith.addf %467, %30 : vector<1x32xf32>
    %469 = arith.negf %464 : vector<1x32xf32>
    %470 = math.exp %469 : vector<1x32xf32>
    %cst_186 = arith.constant 1.000000e+00 : f32
    %471 = vector.broadcast %cst_186 : f32 to vector<1x32xf32>
    %472 = arith.addf %471, %470 : vector<1x32xf32>
    %473 = arith.divf %471, %472 : vector<1x32xf32>
    %474 = arith.negf %468 : vector<1x32xf32>
    %475 = math.exp %474 : vector<1x32xf32>
    %cst_187 = arith.constant 1.000000e+00 : f32
    %476 = vector.broadcast %cst_187 : f32 to vector<1x32xf32>
    %477 = arith.addf %476, %475 : vector<1x32xf32>
    %478 = arith.divf %476, %477 : vector<1x32xf32>
    %cst_188 = arith.constant dense<0.000000e+00> : vector<1x32xf32>
    %479 = tpu.matmul %459, %25, %cst_188 {dimension_numbers = #tpu.dot_dimension_numbers<[1], [0], [0], [1], [0, 0, 1, 1], [], []>} : vector<1x32xbf16>, vector<32x32xbf16>, vector<1x32xf32> -> vector<1x32xf32>
    %480 = arith.mulf %478, %424 : vector<1x32xf32>
    %481 = arith.truncf %480 : vector<1x32xf32> to vector<1x32xbf16>
    %cst_189 = arith.constant dense<0.000000e+00> : vector<1x32xf32>
    %482 = tpu.matmul %481, %28, %cst_189 {dimension_numbers = #tpu.dot_dimension_numbers<[1], [0], [0], [1], [0, 0, 1, 1], [], []>} : vector<1x32xbf16>, vector<32x32xbf16>, vector<1x32xf32> -> vector<1x32xf32>
    %483 = arith.addf %479, %482 : vector<1x32xf32>
    %484 = arith.addf %483, %31 : vector<1x32xf32>
    %485 = math.tanh %484 : vector<1x32xf32>
    %cst_190 = arith.constant 1.000000e+00 : f32
    %486 = vector.broadcast %cst_190 : f32 to vector<1x32xf32>
    %487 = arith.subf %486, %473 : vector<1x32xf32>
    %488 = arith.mulf %487, %424 : vector<1x32xf32>
    %489 = arith.mulf %473, %485 : vector<1x32xf32>
    %490 = arith.addf %488, %489 : vector<1x32xf32>
    %491 = arith.index_cast %458 : i32 to index
    %c0_191 = arith.constant 0 : index
    %492 = vector.load %arg26[%491, %c0_191] : memref<8x32xf32, #tpu.memory_space<vmem>>, vector<1x32xf32>
    tpu.vector_store %arg26[%491, %c0_191], %490 {strides = array<i32>} : memref<8x32xf32, #tpu.memory_space<vmem>>, vector<1x32xf32>,
    %493 = arith.truncf %457 : vector<1x32xf32> to vector<1x32xbf16>
    %494 = arith.index_cast %c7_i32 : i32 to index
    %c0_192 = arith.constant 0 : index
    %495 = vector.load %arg23[%494, %c0_192] : memref<8x32xf32, #tpu.memory_space<vmem>>, vector<1x32xf32>
    %cst_193 = arith.constant dense<0.000000e+00> : vector<1x32xf32>
    %496 = tpu.matmul %493, %20, %cst_193 {dimension_numbers = #tpu.dot_dimension_numbers<[1], [0], [0], [1], [0, 0, 1, 1], [], []>} : vector<1x32xbf16>, vector<32x32xbf16>, vector<1x32xf32> -> vector<1x32xf32>
    %497 = arith.addf %495, %496 : vector<1x32xf32>
    %498 = arith.index_cast %c7_i32 : i32 to index
    %c0_194 = arith.constant 0 : index
    %499 = vector.load %arg24[%498, %c0_194] : memref<8x32xf32, #tpu.memory_space<vmem>>, vector<1x32xf32>
    %cst_195 = arith.constant dense<0.000000e+00> : vector<1x32xf32>
    %500 = tpu.matmul %493, %21, %cst_195 {dimension_numbers = #tpu.dot_dimension_numbers<[1], [0], [0], [1], [0, 0, 1, 1], [], []>} : vector<1x32xbf16>, vector<32x32xbf16>, vector<1x32xf32> -> vector<1x32xf32>
    %501 = arith.addf %499, %500 : vector<1x32xf32>
    %502 = arith.negf %497 : vector<1x32xf32>
    %503 = math.exp %502 : vector<1x32xf32>
    %cst_196 = arith.constant 1.000000e+00 : f32
    %504 = vector.broadcast %cst_196 : f32 to vector<1x32xf32>
    %505 = arith.addf %504, %503 : vector<1x32xf32>
    %506 = arith.divf %504, %505 : vector<1x32xf32>
    %507 = arith.negf %501 : vector<1x32xf32>
    %508 = math.exp %507 : vector<1x32xf32>
    %cst_197 = arith.constant 1.000000e+00 : f32
    %509 = vector.broadcast %cst_197 : f32 to vector<1x32xf32>
    %510 = arith.addf %509, %508 : vector<1x32xf32>
    %511 = arith.divf %509, %510 : vector<1x32xf32>
    %512 = arith.index_cast %c7_i32 : i32 to index
    %c0_198 = arith.constant 0 : index
    %513 = vector.load %arg25[%512, %c0_198] : memref<8x32xf32, #tpu.memory_space<vmem>>, vector<1x32xf32>
    %514 = arith.mulf %511, %457 : vector<1x32xf32>
    %515 = arith.truncf %514 : vector<1x32xf32> to vector<1x32xbf16>
    %cst_199 = arith.constant dense<0.000000e+00> : vector<1x32xf32>
    %516 = tpu.matmul %515, %22, %cst_199 {dimension_numbers = #tpu.dot_dimension_numbers<[1], [0], [0], [1], [0, 0, 1, 1], [], []>} : vector<1x32xbf16>, vector<32x32xbf16>, vector<1x32xf32> -> vector<1x32xf32>
    %517 = arith.addf %513, %516 : vector<1x32xf32>
    %518 = math.tanh %517 : vector<1x32xf32>
    %cst_200 = arith.constant 1.000000e+00 : f32
    %519 = vector.broadcast %cst_200 : f32 to vector<1x32xf32>
    %520 = arith.subf %519, %506 : vector<1x32xf32>
    %521 = arith.mulf %520, %457 : vector<1x32xf32>
    %522 = arith.mulf %506, %518 : vector<1x32xf32>
    %523 = arith.addf %521, %522 : vector<1x32xf32>
    %c7_i32_201 = arith.constant 7 : i32
    %524 = arith.truncf %523 : vector<1x32xf32> to vector<1x32xbf16>
    %525 = arith.truncf %490 : vector<1x32xf32> to vector<1x32xbf16>
    %cst_202 = arith.constant dense<0.000000e+00> : vector<1x32xf32>
    %526 = tpu.matmul %524, %23, %cst_202 {dimension_numbers = #tpu.dot_dimension_numbers<[1], [0], [0], [1], [0, 0, 1, 1], [], []>} : vector<1x32xbf16>, vector<32x32xbf16>, vector<1x32xf32> -> vector<1x32xf32>
    %cst_203 = arith.constant dense<0.000000e+00> : vector<1x32xf32>
    %527 = tpu.matmul %525, %26, %cst_203 {dimension_numbers = #tpu.dot_dimension_numbers<[1], [0], [0], [1], [0, 0, 1, 1], [], []>} : vector<1x32xbf16>, vector<32x32xbf16>, vector<1x32xf32> -> vector<1x32xf32>
    %528 = arith.addf %526, %527 : vector<1x32xf32>
    %529 = arith.addf %528, %29 : vector<1x32xf32>
    %cst_204 = arith.constant dense<0.000000e+00> : vector<1x32xf32>
    %530 = tpu.matmul %524, %24, %cst_204 {dimension_numbers = #tpu.dot_dimension_numbers<[1], [0], [0], [1], [0, 0, 1, 1], [], []>} : vector<1x32xbf16>, vector<32x32xbf16>, vector<1x32xf32> -> vector<1x32xf32>
    %cst_205 = arith.constant dense<0.000000e+00> : vector<1x32xf32>
    %531 = tpu.matmul %525, %27, %cst_205 {dimension_numbers = #tpu.dot_dimension_numbers<[1], [0], [0], [1], [0, 0, 1, 1], [], []>} : vector<1x32xbf16>, vector<32x32xbf16>, vector<1x32xf32> -> vector<1x32xf32>
    %532 = arith.addf %530, %531 : vector<1x32xf32>
    %533 = arith.addf %532, %30 : vector<1x32xf32>
    %534 = arith.negf %529 : vector<1x32xf32>
    %535 = math.exp %534 : vector<1x32xf32>
    %cst_206 = arith.constant 1.000000e+00 : f32
    %536 = vector.broadcast %cst_206 : f32 to vector<1x32xf32>
    %537 = arith.addf %536, %535 : vector<1x32xf32>
    %538 = arith.divf %536, %537 : vector<1x32xf32>
    %539 = arith.negf %533 : vector<1x32xf32>
    %540 = math.exp %539 : vector<1x32xf32>
    %cst_207 = arith.constant 1.000000e+00 : f32
    %541 = vector.broadcast %cst_207 : f32 to vector<1x32xf32>
    %542 = arith.addf %541, %540 : vector<1x32xf32>
    %543 = arith.divf %541, %542 : vector<1x32xf32>
    %cst_208 = arith.constant dense<0.000000e+00> : vector<1x32xf32>
    %544 = tpu.matmul %524, %25, %cst_208 {dimension_numbers = #tpu.dot_dimension_numbers<[1], [0], [0], [1], [0, 0, 1, 1], [], []>} : vector<1x32xbf16>, vector<32x32xbf16>, vector<1x32xf32> -> vector<1x32xf32>
    %545 = arith.mulf %543, %490 : vector<1x32xf32>
    %546 = arith.truncf %545 : vector<1x32xf32> to vector<1x32xbf16>
    %cst_209 = arith.constant dense<0.000000e+00> : vector<1x32xf32>
    %547 = tpu.matmul %546, %28, %cst_209 {dimension_numbers = #tpu.dot_dimension_numbers<[1], [0], [0], [1], [0, 0, 1, 1], [], []>} : vector<1x32xbf16>, vector<32x32xbf16>, vector<1x32xf32> -> vector<1x32xf32>
    %548 = arith.addf %544, %547 : vector<1x32xf32>
    %549 = arith.addf %548, %31 : vector<1x32xf32>
    %550 = math.tanh %549 : vector<1x32xf32>
    %cst_210 = arith.constant 1.000000e+00 : f32
    %551 = vector.broadcast %cst_210 : f32 to vector<1x32xf32>
    %552 = arith.subf %551, %538 : vector<1x32xf32>
    %553 = arith.mulf %552, %490 : vector<1x32xf32>
    %554 = arith.mulf %538, %550 : vector<1x32xf32>
    %555 = arith.addf %553, %554 : vector<1x32xf32>
    %c7 = arith.constant 7 : index
    %c0_211 = arith.constant 0 : index
    %556 = vector.load %arg26[%c7, %c0_211] : memref<8x32xf32, #tpu.memory_space<vmem>>, vector<1x32xf32>
    tpu.vector_store %arg26[%c7, %c0_211], %555 {strides = array<i32>} : memref<8x32xf32, #tpu.memory_space<vmem>>, vector<1x32xf32>,
    %c0_212 = arith.constant 0 : index
    %c0_213 = arith.constant 0 : index
    %557 = vector.load %arg26[%c0_212, %c0_213] : memref<8x32xf32, #tpu.memory_space<vmem>>, vector<8x32xf32>
    %558 = arith.truncf %557 : vector<8x32xf32> to vector<8x32xbf16>
    %c0_214 = arith.constant 0 : index
    %c0_215 = arith.constant 0 : index
    %559 = vector.load %arg20[%c0_214, %c0_215] : memref<32x32xbf16, #tpu.memory_space<vmem>>, vector<32x32xbf16>
    %cst_216 = arith.constant dense<0.000000e+00> : vector<8x32xf32>
    %560 = tpu.matmul %558, %559, %cst_216 {dimension_numbers = #tpu.dot_dimension_numbers<[1], [0], [0], [1], [0, 0, 1, 1], [], []>} : vector<8x32xbf16>, vector<32x32xbf16>, vector<8x32xf32> -> vector<8x32xf32>
    %c0_217 = arith.constant 0 : index
    %c0_218 = arith.constant 0 : index
    %561 = vector.load %arg22[%c0_217, %c0_218] : memref<8x32xf32, #tpu.memory_space<vmem>>, vector<8x32xf32>
    tpu.vector_store %arg22[%c0_217, %c0_218], %560 {strides = array<i32>} : memref<8x32xf32, #tpu.memory_space<vmem>>, vector<8x32xf32>,
    return
  }
}

</mosaic_0001>

<llo_original>
// kernel: tpu_custom_call.1
$region0: #{tpu_custom_call.1}
  #allocation0 [shape = 'u32[]', space=smem, size = 0x4, offset = 0x4, fixed_abs, tag = 'smem constant byte address 0x4 - core index']
  #allocation1 [shape = 'u32[72,128]{1,0:T(1,128)}', space=vmem, size = 0x9000, scoped, tag = 'internal scratch']
  #allocation2 [shape = 'f32[8,32]{1,0:T(8,128)}', space=vmem, size = 0x1000, scoped, tag = 'scratch operand']
  #allocation3 [shape = 'f32[8,32]{1,0:T(8,128)}', space=vmem, size = 0x1000, scoped, tag = 'scratch operand']
  #allocation4 [shape = 'f32[8,32]{1,0:T(8,128)}', space=vmem, size = 0x1000, scoped, tag = 'scratch operand']
  #allocation5 [shape = 'f32[8,32]{1,0:T(8,128)}', space=vmem, size = 0x1000, scoped, tag = 'scratch operand']
  %s0 = inlined_call_operand.hbm [shape: f32[8,32], index: 0, kind: input, shape index: {}]
  %s1 = inlined_call_operand.hbm [shape: bf16[32,32], index: 1, kind: input, shape index: {}]
  %s2 = inlined_call_operand.hbm [shape: bf16[32,32], index: 2, kind: input, shape index: {}]
  %s3 = inlined_call_operand.hbm [shape: bf16[32,32], index: 3, kind: input, shape index: {}]
  %s4 = inlined_call_operand.hbm [shape: f32[1,32], index: 4, kind: input, shape index: {}]
  %s5 = inlined_call_operand.hbm [shape: f32[1,32], index: 5, kind: input, shape index: {}]
  %s6 = inlined_call_operand.hbm [shape: f32[1,32], index: 6, kind: input, shape index: {}]
  %s7 = inlined_call_operand.hbm [shape: bf16[32,32], index: 7, kind: input, shape index: {}]
  %s8 = inlined_call_operand.hbm [shape: bf16[32,32], index: 8, kind: input, shape index: {}]
  %s9 = inlined_call_operand.hbm [shape: bf16[32,32], index: 9, kind: input, shape index: {}]
  %s10 = inlined_call_operand.hbm [shape: f32[1,32], index: 10, kind: input, shape index: {}]
  %s11 = inlined_call_operand.hbm [shape: bf16[32,32], index: 11, kind: input, shape index: {}]
  %s12 = inlined_call_operand.hbm [shape: bf16[32,32], index: 12, kind: input, shape index: {}]
  %s13 = inlined_call_operand.hbm [shape: bf16[32,32], index: 13, kind: input, shape index: {}]
  %s14 = inlined_call_operand.hbm [shape: f32[1,32], index: 14, kind: input, shape index: {}]
  %s15 = inlined_call_operand.hbm [shape: f32[1,32], index: 15, kind: input, shape index: {}]
  %s16 = inlined_call_operand.hbm [shape: f32[1,32], index: 16, kind: input, shape index: {}]
  %s17 = inlined_call_operand.vmem [shape: bf16[32,32], index: 17, kind: input, shape index: {}]
  %s18 = inlined_call_operand.hbm [shape: bf16[32,32], index: 18, kind: input, shape index: {}]
  %s19 = inlined_call_operand.hbm [shape: bf16[32,32], index: 19, kind: input, shape index: {}]
  %s20 = inlined_call_operand.hbm [shape: bf16[32,32], index: 20, kind: input, shape index: {}]
  %s21 = inlined_call_operand.vmem [shape: f32[1,32], index: 21, kind: input, shape index: {}]
  %s22 = inlined_call_operand.hbm [shape: f32[8,32], index: 22, kind: output, shape index: {}]
  %s23 = sld [smem:[#allocation0]]
  $region178: #{tpu_custom_call.1} parent=0
    _
  %s25 = ssub.s32 1, %s23
  %s26 = scalar_select 0, %s25, %s23
  $region1: #{tpu_custom_call.1} parent=0
    #allocation6 [shape = 'u8[4096]{0}', space=vmem, size = 0x1000, scoped, tag = 'input window, operand 0, single buffered']
    #allocation7 [shape = 's32[1]{0}', space=sflag, size = 0x4, scoped, tag = 'scoped memory for tpu_custom_call.1']
    #allocation8 [shape = 's32[1]{0}', space=sflag, size = 0x4, scoped, tag = 'scoped memory for tpu_custom_call.1']
    #allocation9 [shape = 'u8[8192]{0}', space=vmem, size = 0x2000, scoped, tag = 'input window, operand 1, single buffered']
    #allocation10 [shape = 's32[1]{0}', space=sflag, size = 0x4, scoped, tag = 'scoped memory for tpu_custom_call.1']
    #allocation11 [shape = 'u8[8192]{0}', space=vmem, size = 0x2000, scoped, tag = 'input window, operand 2, single buffered']
    #allocation12 [shape = 'u8[8192]{0}', space=vmem, size = 0x2000, scoped, tag = 'input window, operand 3, single buffered']
    #allocation13 [shape = 's32[1]{0}', space=sflag, size = 0x4, scoped, tag = 'scoped memory for tpu_custom_call.1']
    #allocation14 [shape = 'u8[512]{0}', space=vmem, size = 0x400, scoped, tag = 'input window, operand 4, single buffered']
    #allocation15 [shape = 'u8[512]{0}', space=vmem, size = 0x400, scoped, tag = 'input window, operand 5, single buffered']
    #allocation16 [shape = 's32[1]{0}', space=sflag, size = 0x4, scoped, tag = 'scoped memory for tpu_custom_call.1']
    #allocation17 [shape = 'u8[512]{0}', space=vmem, size = 0x400, scoped, tag = 'input window, operand 6, single buffered']
    #allocation18 [shape = 'u8[8192]{0}', space=vmem, size = 0x2000, scoped, tag = 'input window, operand 7, single buffered']
    #allocation19 [shape = 's32[1]{0}', space=sflag, size = 0x4, scoped, tag = 'scoped memory for tpu_custom_call.1']
    #allocation20 [shape = 'u8[8192]{0}', space=vmem, size = 0x2000, scoped, tag = 'input window, operand 8, single buffered']
    #allocation21 [shape = 'u8[8192]{0}', space=vmem, size = 0x2000, scoped, tag = 'input window, operand 9, single buffered']
    #allocation22 [shape = 's32[1]{0}', space=sflag, size = 0x4, scoped, tag = 'scoped memory for tpu_custom_call.1']
    #allocation23 [shape = 'u8[512]{0}', space=vmem, size = 0x400, scoped, tag = 'input window, operand 10, single buffered']
    #allocation24 [shape = 'u8[8192]{0}', space=vmem, size = 0x2000, scoped, tag = 'input window, operand 11, single buffered']
    #allocation25 [shape = 's32[1]{0}', space=sflag, size = 0x4, scoped, tag = 'scoped memory for tpu_custom_call.1']
    #allocation26 [shape = 'u8[8192]{0}', space=vmem, size = 0x2000, scoped, tag = 'input window, operand 12, single buffered']
    #allocation27 [shape = 'u8[8192]{0}', space=vmem, size = 0x2000, scoped, tag = 'input window, operand 13, single buffered']
    #allocation28 [shape = 's32[1]{0}', space=sflag, size = 0x4, scoped, tag = 'scoped memory for tpu_custom_call.1']
    #allocation29 [shape = 'u8[512]{0}', space=vmem, size = 0x400, scoped, tag = 'input window, operand 14, single buffered']
    #allocation30 [shape = 'u8[512]{0}', space=vmem, size = 0x400, scoped, tag = 'input window, operand 15, single buffered']
    #allocation31 [shape = 's32[1]{0}', space=sflag, size = 0x4, scoped, tag = 'scoped memory for tpu_custom_call.1']
    #allocation32 [shape = 'u8[512]{0}', space=vmem, size = 0x400, scoped, tag = 'input window, operand 16, single buffered']
    #allocation33 [shape = 'u8[8192]{0}', space=vmem, size = 0x2000, scoped, tag = 'input window, operand 18, single buffered']
    #allocation34 [shape = 's32[1]{0}', space=sflag, size = 0x4, scoped, tag = 'scoped memory for tpu_custom_call.1']
    #allocation35 [shape = 'u8[8192]{0}', space=vmem, size = 0x2000, scoped, tag = 'input window, operand 19, single buffered']
    #allocation36 [shape = 'u8[8192]{0}', space=vmem, size = 0x2000, scoped, tag = 'input window, operand 20, single buffered']
    #allocation37 [shape = 's32[1]{0}', space=sflag, size = 0x4, scoped, tag = 'scoped memory for tpu_custom_call.1']
    #allocation38 [shape = 'u8[4096]{0}', space=vmem, size = 0x1000, scoped, tag = 'output window, operand 0, single buffered']
    %27 = vsyncpa [#allocation7], 0
    %28 = vsyncpa [#allocation10], 0
    %29 = vsyncpa [#allocation13], 0
    %30 = vsyncpa [#allocation16], 0
    %31 = vsyncpa [#allocation19], 0
    %32 = vsyncpa [#allocation22], 0
    %33 = vsyncpa [#allocation25], 0
    %34 = vsyncpa [#allocation28], 0
    %35 = vsyncpa [#allocation31], 0
    %36 = vsyncpa [#allocation34], 0
    %37 = vsyncpa [#allocation37], 0
    %38 = vsyncpa [#allocation8], 0
    // Predicated region
    $region2: #{tpu_custom_call.1} parent=1 // pred_check
      _
    $region3: #{tpu_custom_call.1} parent=1 // pred_check_branch
      %40 = sbr.rel (0) target = $region5
    $region4: #{tpu_custom_call.1} parent=1 // pred_region
      %42 = vsyncadd [#allocation7], 0
      %s44 = sshll.u32 %s0, 4
      %s45 = int_to_ptr.hbm [resolvable:$true] %s44
      %s46 = sshll.u32 [#allocation6], 4
      %s47 = int_to_ptr.vmem [resolvable:$true] %s46
      %49 = dma.hbm_to_vmem [thread:$0]  %s45, 128, %s47, [#allocation7]
    $region5: #{tpu_custom_call.1} parent=1 // pred_fallthru
      _
    // Predicated region
    $region6: #{tpu_custom_call.1} parent=1 // pred_check
      _
    $region7: #{tpu_custom_call.1} parent=1 // pred_check_branch
      %51 = sbr.rel (0) target = $region9
    $region8: #{tpu_custom_call.1} parent=1 // pred_region
      %53 = vsyncadd [#allocation10], 0
      %s54 = sshll.u32 %s1, 4
      %s55 = int_to_ptr.hbm [resolvable:$true] %s54
      %s56 = sshll.u32 [#allocation9], 4
      %s57 = int_to_ptr.vmem [resolvable:$true] %s56
      %62 = dma.hbm_to_vmem [thread:$0]  %s55, 256, %s57, [#allocation10], 64, 64, 4
    $region9: #{tpu_custom_call.1} parent=1 // pred_fallthru
      _
    // Predicated region
    $region10: #{tpu_custom_call.1} parent=1 // pred_check
      _
    $region11: #{tpu_custom_call.1} parent=1 // pred_check_branch
      %64 = sbr.rel (0) target = $region13
    $region12: #{tpu_custom_call.1} parent=1 // pred_region
      %66 = vsyncadd [#allocation10], 0
      %s67 = sshll.u32 %s2, 4
      %s68 = int_to_ptr.hbm [resolvable:$true] %s67
      %s69 = sshll.u32 [#allocation11], 4
      %s70 = int_to_ptr.vmem [resolvable:$true] %s69
      %75 = dma.hbm_to_vmem [thread:$0]  %s68, 256, %s70, [#allocation10], 64, 64, 4
    $region13: #{tpu_custom_call.1} parent=1 // pred_fallthru
      _
    // Predicated region
    $region14: #{tpu_custom_call.1} parent=1 // pred_check
      _
    $region15: #{tpu_custom_call.1} parent=1 // pred_check_branch
      %77 = sbr.rel (0) target = $region17
    $region16: #{tpu_custom_call.1} parent=1 // pred_region
      %79 = vsyncadd [#allocation13], 0
      %s80 = sshll.u32 %s3, 4
      %s81 = int_to_ptr.hbm [resolvable:$true] %s80
      %s82 = sshll.u32 [#allocation12], 4
      %s83 = int_to_ptr.vmem [resolvable:$true] %s82
      %88 = dma.hbm_to_vmem [thread:$0]  %s81, 256, %s83, [#allocation13], 64, 64, 4
    $region17: #{tpu_custom_call.1} parent=1 // pred_fallthru
      _
    // Predicated region
    $region18: #{tpu_custom_call.1} parent=1 // pred_check
      _
    $region19: #{tpu_custom_call.1} parent=1 // pred_check_branch
      %90 = sbr.rel (0) target = $region21
    $region20: #{tpu_custom_call.1} parent=1 // pred_region
      %92 = vsyncadd [#allocation13], 0
      %s94 = sshll.u32 %s4, 4
      %s95 = int_to_ptr.hbm [resolvable:$true] %s94
      %s96 = sshll.u32 [#allocation14], 4
      %s97 = int_to_ptr.vmem [resolvable:$true] %s96
      %99 = dma.hbm_to_vmem [thread:$0]  %s95, 16, %s97, [#allocation13]
    $region21: #{tpu_custom_call.1} parent=1 // pred_fallthru
      _
    // Predicated region
    $region22: #{tpu_custom_call.1} parent=1 // pred_check
      _
    $region23: #{tpu_custom_call.1} parent=1 // pred_check_branch
      %101 = sbr.rel (0) target = $region25
    $region24: #{tpu_custom_call.1} parent=1 // pred_region
      %103 = vsyncadd [#allocation16], 0
      %s105 = sshll.u32 %s5, 4
      %s106 = int_to_ptr.hbm [resolvable:$true] %s105
      %s107 = sshll.u32 [#allocation15], 4
      %s108 = int_to_ptr.vmem [resolvable:$true] %s107
      %110 = dma.hbm_to_vmem [thread:$0]  %s106, 16, %s108, [#allocation16]
    $region25: #{tpu_custom_call.1} parent=1 // pred_fallthru
      _
    // Predicated region
    $region26: #{tpu_custom_call.1} parent=1 // pred_check
      _
    $region27: #{tpu_custom_call.1} parent=1 // pred_check_branch
      %112 = sbr.rel (0) target = $region29
    $region28: #{tpu_custom_call.1} parent=1 // pred_region
      %114 = vsyncadd [#allocation16], 0
      %s116 = sshll.u32 %s6, 4
      %s117 = int_to_ptr.hbm [resolvable:$true] %s116
      %s118 = sshll.u32 [#allocation17], 4
      %s119 = int_to_ptr.vmem [resolvable:$true] %s118
      %121 = dma.hbm_to_vmem [thread:$0]  %s117, 16, %s119, [#allocation16]
    $region29: #{tpu_custom_call.1} parent=1 // pred_fallthru
      _
    // Predicated region
    $region30: #{tpu_custom_call.1} parent=1 // pred_check
      _
    $region31: #{tpu_custom_call.1} parent=1 // pred_check_branch
      %123 = sbr.rel (0) target = $region33
    $region32: #{tpu_custom_call.1} parent=1 // pred_region
      %125 = vsyncadd [#allocation19], 0
      %s126 = sshll.u32 %s7, 4
      %s127 = int_to_ptr.hbm [resolvable:$true] %s126
      %s128 = sshll.u32 [#allocation18], 4
      %s129 = int_to_ptr.vmem [resolvable:$true] %s128
      %134 = dma.hbm_to_vmem [thread:$0]  %s127, 256, %s129, [#allocation19], 64, 64, 4
    $region33: #{tpu_custom_call.1} parent=1 // pred_fallthru
      _
    // Predicated region
    $region34: #{tpu_custom_call.1} parent=1 // pred_check
      _
    $region35: #{tpu_custom_call.1} parent=1 // pred_check_branch
      %136 = sbr.rel (0) target = $region37
    $region36: #{tpu_custom_call.1} parent=1 // pred_region
      %138 = vsyncadd [#allocation19], 0
      %s139 = sshll.u32 %s8, 4
      %s140 = int_to_ptr.hbm [resolvable:$true] %s139
      %s141 = sshll.u32 [#allocation20], 4
      %s142 = int_to_ptr.vmem [resolvable:$true] %s141
      %147 = dma.hbm_to_vmem [thread:$0]  %s140, 256, %s142, [#allocation19], 64, 64, 4
    $region37: #{tpu_custom_call.1} parent=1 // pred_fallthru
      _
    // Predicated region
    $region38: #{tpu_custom_call.1} parent=1 // pred_check
      _
    $region39: #{tpu_custom_call.1} parent=1 // pred_check_branch
      %149 = sbr.rel (0) target = $region41
    $region40: #{tpu_custom_call.1} parent=1 // pred_region
      %151 = vsyncadd [#allocation22], 0
      %s152 = sshll.u32 %s9, 4
      %s153 = int_to_ptr.hbm [resolvable:$true] %s152
      %s154 = sshll.u32 [#allocation21], 4
      %s155 = int_to_ptr.vmem [resolvable:$true] %s154
      %160 = dma.hbm_to_vmem [thread:$0]  %s153, 256, %s155, [#allocation22], 64, 64, 4
    $region41: #{tpu_custom_call.1} parent=1 // pred_fallthru
      _
    // Predicated region
    $region42: #{tpu_custom_call.1} parent=1 // pred_check
      _
    $region43: #{tpu_custom_call.1} parent=1 // pred_check_branch
      %162 = sbr.rel (0) target = $region45
    $region44: #{tpu_custom_call.1} parent=1 // pred_region
      %164 = vsyncadd [#allocation22], 0
      %s166 = sshll.u32 %s10, 4
      %s167 = int_to_ptr.hbm [resolvable:$true] %s166
      %s168 = sshll.u32 [#allocation23], 4
      %s169 = int_to_ptr.vmem [resolvable:$true] %s168
      %171 = dma.hbm_to_vmem [thread:$0]  %s167, 16, %s169, [#allocation22]
    $region45: #{tpu_custom_call.1} parent=1 // pred_fallthru
      _
    // Predicated region
    $region46: #{tpu_custom_call.1} parent=1 // pred_check
      _
    $region47: #{tpu_custom_call.1} parent=1 // pred_check_branch
      %173 = sbr.rel (0) target = $region49
    $region48: #{tpu_custom_call.1} parent=1 // pred_region
      %175 = vsyncadd [#allocation25], 0
      %s176 = sshll.u32 %s11, 4
      %s177 = int_to_ptr.hbm [resolvable:$true] %s176
      %s178 = sshll.u32 [#allocation24], 4
      %s179 = int_to_ptr.vmem [resolvable:$true] %s178
      %184 = dma.hbm_to_vmem [thread:$0]  %s177, 256, %s179, [#allocation25], 64, 64, 4
    $region49: #{tpu_custom_call.1} parent=1 // pred_fallthru
      _
    // Predicated region
    $region50: #{tpu_custom_call.1} parent=1 // pred_check
      _
    $region51: #{tpu_custom_call.1} parent=1 // pred_check_branch
      %186 = sbr.rel (0) target = $region53
    $region52: #{tpu_custom_call.1} parent=1 // pred_region
      %188 = vsyncadd [#allocation25], 0
      %s189 = sshll.u32 %s12, 4
      %s190 = int_to_ptr.hbm [resolvable:$true] %s189
      %s191 = sshll.u32 [#allocation26], 4
      %s192 = int_to_ptr.vmem [resolvable:$true] %s191
      %197 = dma.hbm_to_vmem [thread:$0]  %s190, 256, %s192, [#allocation25], 64, 64, 4
    $region53: #{tpu_custom_call.1} parent=1 // pred_fallthru
      _
    // Predicated region
    $region54: #{tpu_custom_call.1} parent=1 // pred_check
      _
    $region55: #{tpu_custom_call.1} parent=1 // pred_check_branch
      %199 = sbr.rel (0) target = $region57
    $region56: #{tpu_custom_call.1} parent=1 // pred_region
      %201 = vsyncadd [#allocation28], 0
      %s202 = sshll.u32 %s13, 4
      %s203 = int_to_ptr.hbm [resolvable:$true] %s202
      %s204 = sshll.u32 [#allocation27], 4
      %s205 = int_to_ptr.vmem [resolvable:$true] %s204
      %210 = dma.hbm_to_vmem [thread:$0]  %s203, 256, %s205, [#allocation28], 64, 64, 4
    $region57: #{tpu_custom_call.1} parent=1 // pred_fallthru
      _
    // Predicated region
    $region58: #{tpu_custom_call.1} parent=1 // pred_check
      _
    $region59: #{tpu_custom_call.1} parent=1 // pred_check_branch
      %212 = sbr.rel (0) target = $region61
    $region60: #{tpu_custom_call.1} parent=1 // pred_region
      %214 = vsyncadd [#allocation28], 0
      %s216 = sshll.u32 %s14, 4
      %s217 = int_to_ptr.hbm [resolvable:$true] %s216
      %s218 = sshll.u32 [#allocation29], 4
      %s219 = int_to_ptr.vmem [resolvable:$true] %s218
      %221 = dma.hbm_to_vmem [thread:$0]  %s217, 16, %s219, [#allocation28]
    $region61: #{tpu_custom_call.1} parent=1 // pred_fallthru
      _
    // Predicated region
    $region62: #{tpu_custom_call.1} parent=1 // pred_check
      _
    $region63: #{tpu_custom_call.1} parent=1 // pred_check_branch
      %223 = sbr.rel (0) target = $region65
    $region64: #{tpu_custom_call.1} parent=1 // pred_region
      %225 = vsyncadd [#allocation31], 0
      %s227 = sshll.u32 %s15, 4
      %s228 = int_to_ptr.hbm [resolvable:$true] %s227
      %s229 = sshll.u32 [#allocation30], 4
      %s230 = int_to_ptr.vmem [resolvable:$true] %s229
      %232 = dma.hbm_to_vmem [thread:$0]  %s228, 16, %s230, [#allocation31]
    $region65: #{tpu_custom_call.1} parent=1 // pred_fallthru
      _
    // Predicated region
    $region66: #{tpu_custom_call.1} parent=1 // pred_check
      _
    $region67: #{tpu_custom_call.1} parent=1 // pred_check_branch
      %234 = sbr.rel (0) target = $region69
    $region68: #{tpu_custom_call.1} parent=1 // pred_region
      %236 = vsyncadd [#allocation31], 0
      %s238 = sshll.u32 %s16, 4
      %s239 = int_to_ptr.hbm [resolvable:$true] %s238
      %s240 = sshll.u32 [#allocation32], 4
      %s241 = int_to_ptr.vmem [resolvable:$true] %s240
      %243 = dma.hbm_to_vmem [thread:$0]  %s239, 16, %s241, [#allocation31]
    $region69: #{tpu_custom_call.1} parent=1 // pred_fallthru
      _
    // Predicated region
    $region70: #{tpu_custom_call.1} parent=1 // pred_check
      _
    $region71: #{tpu_custom_call.1} parent=1 // pred_check_branch
      %245 = sbr.rel (0) target = $region73
    $region72: #{tpu_custom_call.1} parent=1 // pred_region
      _
    $region73: #{tpu_custom_call.1} parent=1 // pred_fallthru
      _
    // Predicated region
    $region74: #{tpu_custom_call.1} parent=1 // pred_check
      _
    $region75: #{tpu_custom_call.1} parent=1 // pred_check_branch
      %247 = sbr.rel (0) target = $region77
    $region76: #{tpu_custom_call.1} parent=1 // pred_region
      %249 = vsyncadd [#allocation34], 0
      %s250 = sshll.u32 %s18, 4
      %s251 = int_to_ptr.hbm [resolvable:$true] %s250
      %s252 = sshll.u32 [#allocation33], 4
      %s253 = int_to_ptr.vmem [resolvable:$true] %s252
      %258 = dma.hbm_to_vmem [thread:$0]  %s251, 256, %s253, [#allocation34], 64, 64, 4
    $region77: #{tpu_custom_call.1} parent=1 // pred_fallthru
      _
    // Predicated region
    $region78: #{tpu_custom_call.1} parent=1 // pred_check
      _
    $region79: #{tpu_custom_call.1} parent=1 // pred_check_branch
      %260 = sbr.rel (0) target = $region81
    $region80: #{tpu_custom_call.1} parent=1 // pred_region
      %262 = vsyncadd [#allocation34], 0
      %s263 = sshll.u32 %s19, 4
      %s264 = int_to_ptr.hbm [resolvable:$true] %s263
      %s265 = sshll.u32 [#allocation35], 4
      %s266 = int_to_ptr.vmem [resolvable:$true] %s265
      %271 = dma.hbm_to_vmem [thread:$0]  %s264, 256, %s266, [#allocation34], 64, 64, 4
    $region81: #{tpu_custom_call.1} parent=1 // pred_fallthru
      _
    // Predicated region
    $region82: #{tpu_custom_call.1} parent=1 // pred_check
      _
    $region83: #{tpu_custom_call.1} parent=1 // pred_check_branch
      %273 = sbr.rel (0) target = $region85
    $region84: #{tpu_custom_call.1} parent=1 // pred_region
      %275 = vsyncadd [#allocation37], 0
      %s276 = sshll.u32 %s20, 4
      %s277 = int_to_ptr.hbm [resolvable:$true] %s276
      %s278 = sshll.u32 [#allocation36], 4
      %s279 = int_to_ptr.vmem [resolvable:$true] %s278
      %284 = dma.hbm_to_vmem [thread:$0]  %s277, 256, %s279, [#allocation37], 64, 64, 4
    $region85: #{tpu_custom_call.1} parent=1 // pred_fallthru
      _
    // Predicated region
    $region86: #{tpu_custom_call.1} parent=1 // pred_check
      _
    $region87: #{tpu_custom_call.1} parent=1 // pred_check_branch
      %286 = sbr.rel (0) target = $region89
    $region88: #{tpu_custom_call.1} parent=1 // pred_region
      _
    $region89: #{tpu_custom_call.1} parent=1 // pred_fallthru
      _
    // Predicated region
    $region90: #{tpu_custom_call.1} parent=1 // pred_check
      _
    $region91: #{tpu_custom_call.1} parent=1 // pred_check_branch
      %288 = sbr.rel (0) target = $region93
    $region92: #{tpu_custom_call.1} parent=1 // pred_region
      %290 = dma.done [#allocation7], 128
    $region93: #{tpu_custom_call.1} parent=1 // pred_fallthru
      _
    // Predicated region
    $region94: #{tpu_custom_call.1} parent=1 // pred_check
      _
    $region95: #{tpu_custom_call.1} parent=1 // pred_check_branch
      %292 = sbr.rel (0) target = $region97
    $region96: #{tpu_custom_call.1} parent=1 // pred_region
      %294 = dma.done [#allocation10], 256
    $region97: #{tpu_custom_call.1} parent=1 // pred_fallthru
      _
    // Predicated region
    $region98: #{tpu_custom_call.1} parent=1 // pred_check
      _
    $region99: #{tpu_custom_call.1} parent=1 // pred_check_branch
      %296 = sbr.rel (0) target = $region101
    $region100: #{tpu_custom_call.1} parent=1 // pred_region
      %298 = dma.done [#allocation10], 256
    $region101: #{tpu_custom_call.1} parent=1 // pred_fallthru
      _
    // Predicated region
    $region102: #{tpu_custom_call.1} parent=1 // pred_check
      _
    $region103: #{tpu_custom_call.1} parent=1 // pred_check_branch
      %300 = sbr.rel (0) target = $region105
    $region104: #{tpu_custom_call.1} parent=1 // pred_region
      %302 = dma.done [#allocation13], 256
    $region105: #{tpu_custom_call.1} parent=1 // pred_fallthru
      _
    // Predicated region
    $region106: #{tpu_custom_call.1} parent=1 // pred_check
      _
    $region107: #{tpu_custom_call.1} parent=1 // pred_check_branch
      %304 = sbr.rel (0) target = $region109
    $region108: #{tpu_custom_call.1} parent=1 // pred_region
      %306 = dma.done [#allocation13], 16
    $region109: #{tpu_custom_call.1} parent=1 // pred_fallthru
      _
    // Predicated region
    $region110: #{tpu_custom_call.1} parent=1 // pred_check
      _
    $region111: #{tpu_custom_call.1} parent=1 // pred_check_branch
      %308 = sbr.rel (0) target = $region113
    $region112: #{tpu_custom_call.1} parent=1 // pred_region
      %310 = dma.done [#allocation16], 16
    $region113: #{tpu_custom_call.1} parent=1 // pred_fallthru
      _
    // Predicated region
    $region114: #{tpu_custom_call.1} parent=1 // pred_check
      _
    $region115: #{tpu_custom_call.1} parent=1 // pred_check_branch
      %312 = sbr.rel (0) target = $region117
    $region116: #{tpu_custom_call.1} parent=1 // pred_region
      %314 = dma.done [#allocation16], 16
    $region117: #{tpu_custom_call.1} parent=1 // pred_fallthru
      _
    // Predicated region
    $region118: #{tpu_custom_call.1} parent=1 // pred_check
      _
    $region119: #{tpu_custom_call.1} parent=1 // pred_check_branch
      %316 = sbr.rel (0) target = $region121
    $region120: #{tpu_custom_call.1} parent=1 // pred_region
      %318 = dma.done [#allocation19], 256
    $region121: #{tpu_custom_call.1} parent=1 // pred_fallthru
      _
    // Predicated region
    $region122: #{tpu_custom_call.1} parent=1 // pred_check
      _
    $region123: #{tpu_custom_call.1} parent=1 // pred_check_branch
      %320 = sbr.rel (0) target = $region125
    $region124: #{tpu_custom_call.1} parent=1 // pred_region
      %322 = dma.done [#allocation19], 256
    $region125: #{tpu_custom_call.1} parent=1 // pred_fallthru
      _
    // Predicated region
    $region126: #{tpu_custom_call.1} parent=1 // pred_check
      _
    $region127: #{tpu_custom_call.1} parent=1 // pred_check_branch
      %324 = sbr.rel (0) target = $region129
    $region128: #{tpu_custom_call.1} parent=1 // pred_region
      %326 = dma.done [#allocation22], 256
    $region129: #{tpu_custom_call.1} parent=1 // pred_fallthru
      _
    // Predicated region
    $region130: #{tpu_custom_call.1} parent=1 // pred_check
      _
    $region131: #{tpu_custom_call.1} parent=1 // pred_check_branch
      %328 = sbr.rel (0) target = $region133
    $region132: #{tpu_custom_call.1} parent=1 // pred_region
      %330 = dma.done [#allocation22], 16
    $region133: #{tpu_custom_call.1} parent=1 // pred_fallthru
      _
    // Predicated region
    $region134: #{tpu_custom_call.1} parent=1 // pred_check
      _
    $region135: #{tpu_custom_call.1} parent=1 // pred_check_branch
      %332 = sbr.rel (0) target = $region137
    $region136: #{tpu_custom_call.1} parent=1 // pred_region
      %334 = dma.done [#allocation25], 256
    $region137: #{tpu_custom_call.1} parent=1 // pred_fallthru
      _
    // Predicated region
    $region138: #{tpu_custom_call.1} parent=1 // pred_check
      _
    $region139: #{tpu_custom_call.1} parent=1 // pred_check_branch
      %336 = sbr.rel (0) target = $region141
    $region140: #{tpu_custom_call.1} parent=1 // pred_region
      %338 = dma.done [#allocation25], 256
    $region141: #{tpu_custom_call.1} parent=1 // pred_fallthru
      _
    // Predicated region
    $region142: #{tpu_custom_call.1} parent=1 // pred_check
      _
    $region143: #{tpu_custom_call.1} parent=1 // pred_check_branch
      %340 = sbr.rel (0) target = $region145
    $region144: #{tpu_custom_call.1} parent=1 // pred_region
      %342 = dma.done [#allocation28], 256
    $region145: #{tpu_custom_call.1} parent=1 // pred_fallthru
      _
    // Predicated region
    $region146: #{tpu_custom_call.1} parent=1 // pred_check
      _
    $region147: #{tpu_custom_call.1} parent=1 // pred_check_branch
      %344 = sbr.rel (0) target = $region149
    $region148: #{tpu_custom_call.1} parent=1 // pred_region
      %346 = dma.done [#allocation28], 16
    $region149: #{tpu_custom_call.1} parent=1 // pred_fallthru
      _
    // Predicated region
    $region150: #{tpu_custom_call.1} parent=1 // pred_check
      _
    $region151: #{tpu_custom_call.1} parent=1 // pred_check_branch
      %348 = sbr.rel (0) target = $region153
    $region152: #{tpu_custom_call.1} parent=1 // pred_region
      %350 = dma.done [#allocation31], 16
    $region153: #{tpu_custom_call.1} parent=1 // pred_fallthru
      _
    // Predicated region
    $region154: #{tpu_custom_call.1} parent=1 // pred_check
      _
    $region155: #{tpu_custom_call.1} parent=1 // pred_check_branch
      %352 = sbr.rel (0) target = $region157
    $region156: #{tpu_custom_call.1} parent=1 // pred_region
      %354 = dma.done [#allocation31], 16
    $region157: #{tpu_custom_call.1} parent=1 // pred_fallthru
      _
    // Predicated region
    $region158: #{tpu_custom_call.1} parent=1 // pred_check
      _
    $region159: #{tpu_custom_call.1} parent=1 // pred_check_branch
      %356 = sbr.rel (0) target = $region161
    $region160: #{tpu_custom_call.1} parent=1 // pred_region
      %358 = dma.done [#allocation34], 256
    $region161: #{tpu_custom_call.1} parent=1 // pred_fallthru
      _
    // Predicated region
    $region162: #{tpu_custom_call.1} parent=1 // pred_check
      _
    $region163: #{tpu_custom_call.1} parent=1 // pred_check_branch
      %360 = sbr.rel (0) target = $region165
    $region164: #{tpu_custom_call.1} parent=1 // pred_region
      %362 = dma.done [#allocation34], 256
    $region165: #{tpu_custom_call.1} parent=1 // pred_fallthru
      _
    // Predicated region
    $region166: #{tpu_custom_call.1} parent=1 // pred_check
      _
    $region167: #{tpu_custom_call.1} parent=1 // pred_check_branch
      %364 = sbr.rel (0) target = $region169
    $region168: #{tpu_custom_call.1} parent=1 // pred_region
      %366 = dma.done [#allocation37], 256
    $region169: #{tpu_custom_call.1} parent=1 // pred_fallthru
      _
    %v368 = vld [vmem:[#allocation6] sm:$0xff]
    %v369 = vpack.c.bf16 %v368, %v368
    %v370 = vld [vmem:[#allocation9] sm:$0xf]
    %v371 = vld [vmem:[#allocation9 + $0x4] sm:$0xf]
    %v372 = vld [vmem:[#allocation9 + $0x8] sm:$0xf]
    %v373 = vld [vmem:[#allocation9 + $0xc] sm:$0xf]
    %v374 = vld [vmem:[#allocation14] sm:$0x1]
    %v376 = vperm.slane %v374, 0
    %v382 = vunpack.c.l.b16 %v370
    %v383 = vunpack.c.l.b16 %v371
    %v384 = vunpack.c.l.b16 %v372
    %v385 = vunpack.c.l.b16 %v373
    %v386 = vpack.c.b16 %v383, %v382
    %v387 = vpack.c.b16 %v385, %v384
    %vm390 = vcmask 261120
    %v392 = vsel %vm390, %v369, 0
    %394 = vmatpush.bf16.msra.mxu0 0
    %395 = vmatpush.bf16.msra.mxu0 0
    %396 = vmatpush.bf16.msra.mxu0 0
    %397 = vmatpush.bf16.msra.mxu0 0
    %398 = vmatpush.bf16.msra.mxu0 0
    %399 = vmatpush.bf16.msra.mxu0 0
    %400 = vmatpush.bf16.msra.mxu0 %v387
    %401 = vmatpush.bf16.msra.mxu0 %v386
    %402 = vmatmul.bf16.gmra.mxu0 %v392
    %v403 = vpop.f32.mrf.mxu0
    %v404 = vadd.f32 %v376, %v403
    %v405 = vpop.f32.mrf.mxu0
    %406 = vdwg.mxu0
    %407 = vst.msk [vmem:[#allocation2] sm:$0xff] %vm390, %v404
    %v408 = vld [vmem:[#allocation11] sm:$0xf]
    %v409 = vld [vmem:[#allocation11 + $0x4] sm:$0xf]
    %v410 = vld [vmem:[#allocation11 + $0x8] sm:$0xf]
    %v411 = vld [vmem:[#allocation11 + $0xc] sm:$0xf]
    %v412 = vld [vmem:[#allocation15] sm:$0x1]
    %v414 = vperm.slane %v412, 0
    %v420 = vunpack.c.l.b16 %v408
    %v421 = vunpack.c.l.b16 %v409
    %v422 = vunpack.c.l.b16 %v410
    %v423 = vunpack.c.l.b16 %v411
    %v424 = vpack.c.b16 %v421, %v420
    %v425 = vpack.c.b16 %v423, %v422
    %428 = vmatpush.bf16.msra.mxu0 0
    %429 = vmatpush.bf16.msra.mxu0 0
    %430 = vmatpush.bf16.msra.mxu0 0
    %431 = vmatpush.bf16.msra.mxu0 0
    %432 = vmatpush.bf16.msra.mxu0 0
    %433 = vmatpush.bf16.msra.mxu0 0
    %434 = vmatpush.bf16.msra.mxu0 %v425
    %435 = vmatpush.bf16.msra.mxu0 %v424
    %436 = vmatmul.bf16.gmra.mxu0 %v392
    %v437 = vpop.f32.mrf.mxu0
    %v438 = vadd.f32 %v414, %v437
    %v439 = vpop.f32.mrf.mxu0
    %440 = vdwg.mxu0
    %441 = vst.msk [vmem:[#allocation3] sm:$0xff] %vm390, %v438
    %v442 = vld [vmem:[#allocation12] sm:$0xf]
    %v443 = vld [vmem:[#allocation12 + $0x4] sm:$0xf]
    %v444 = vld [vmem:[#allocation12 + $0x8] sm:$0xf]
    %v445 = vld [vmem:[#allocation12 + $0xc] sm:$0xf]
    %v446 = vld [vmem:[#allocation17] sm:$0x1]
    %v448 = vperm.slane %v446, 0
    %v454 = vunpack.c.l.b16 %v442
    %v455 = vunpack.c.l.b16 %v443
    %v456 = vunpack.c.l.b16 %v444
    %v457 = vunpack.c.l.b16 %v445
    %v458 = vpack.c.b16 %v455, %v454
    %v459 = vpack.c.b16 %v457, %v456
    %462 = vmatpush.bf16.msra.mxu0 0
    %463 = vmatpush.bf16.msra.mxu0 0
    %464 = vmatpush.bf16.msra.mxu0 0
    %465 = vmatpush.bf16.msra.mxu0 0
    %466 = vmatpush.bf16.msra.mxu0 0
    %467 = vmatpush.bf16.msra.mxu0 0
    %468 = vmatpush.bf16.msra.mxu0 %v459
    %469 = vmatpush.bf16.msra.mxu0 %v458
    %470 = vmatmul.bf16.gmra.mxu0 %v392
    %v471 = vpop.f32.mrf.mxu0
    %v472 = vadd.f32 %v448, %v471
    %v473 = vpop.f32.mrf.mxu0
    %474 = vdwg.mxu0
    %475 = vst.msk [vmem:[#allocation4] sm:$0xff] %vm390, %v472
    %v476 = vld [vmem:[#allocation18] sm:$0xf]
    %v477 = vld [vmem:[#allocation18 + $0x4] sm:$0xf]
    %v478 = vld [vmem:[#allocation18 + $0x8] sm:$0xf]
    %v479 = vld [vmem:[#allocation18 + $0xc] sm:$0xf]
    %v480 = vld [vmem:[#allocation20] sm:$0xf]
    %v481 = vld [vmem:[#allocation20 + $0x4] sm:$0xf]
    %v482 = vld [vmem:[#allocation20 + $0x8] sm:$0xf]
    %v483 = vld [vmem:[#allocation20 + $0xc] sm:$0xf]
    %v484 = vld [vmem:[#allocation21] sm:$0xf]
    %v485 = vld [vmem:[#allocation21 + $0x4] sm:$0xf]
    %v486 = vld [vmem:[#allocation21 + $0x8] sm:$0xf]
    %v487 = vld [vmem:[#allocation21 + $0xc] sm:$0xf]
    %v488 = vld [vmem:[#allocation24] sm:$0xf]
    %v489 = vld [vmem:[#allocation24 + $0x4] sm:$0xf]
    %v490 = vld [vmem:[#allocation24 + $0x8] sm:$0xf]
    %v491 = vld [vmem:[#allocation24 + $0xc] sm:$0xf]
    %v492 = vld [vmem:[#allocation26] sm:$0xf]
    %v493 = vld [vmem:[#allocation26 + $0x4] sm:$0xf]
    %v494 = vld [vmem:[#allocation26 + $0x8] sm:$0xf]
    %v495 = vld [vmem:[#allocation26 + $0xc] sm:$0xf]
    %v496 = vld [vmem:[#allocation27] sm:$0xf]
    %v497 = vld [vmem:[#allocation27 + $0x4] sm:$0xf]
    %v498 = vld [vmem:[#allocation27 + $0x8] sm:$0xf]
    %v499 = vld [vmem:[#allocation27 + $0xc] sm:$0xf]
    %v500 = vld [vmem:[%s17] sm:$0xf]
    %v501 = vld [vmem:[%s17 + $0x4] sm:$0xf]
    %v502 = vld [vmem:[%s17 + $0x8] sm:$0xf]
    %v503 = vld [vmem:[%s17 + $0xc] sm:$0xf]
    %v504 = vld [vmem:[#allocation33] sm:$0xf]
    %v505 = vld [vmem:[#allocation33 + $0x4] sm:$0xf]
    %v506 = vld [vmem:[#allocation33 + $0x8] sm:$0xf]
    %v507 = vld [vmem:[#allocation33 + $0xc] sm:$0xf]
    %v508 = vld [vmem:[#allocation35] sm:$0xf]
    %v509 = vld [vmem:[#allocation35 + $0x4] sm:$0xf]
    %v510 = vld [vmem:[#allocation35 + $0x8] sm:$0xf]
    %v511 = vld [vmem:[#allocation35 + $0xc] sm:$0xf]
    %v512 = vld [vmem:[#allocation29] sm:$0x1]
    %v513 = vld [vmem:[#allocation30] sm:$0x1]
    %v514 = vld [vmem:[#allocation32] sm:$0x1]
    %v515 = vld [vmem:[#allocation23] sm:$0x1]
    %v516 = vpack.c.bf16 %v515, %v515
    %v517 = vld [vmem:[#allocation2] sm:$0x1]
    %v522 = vunpack.c.l.b16 %v476
    %v523 = vunpack.c.l.b16 %v477
    %v524 = vunpack.c.l.b16 %v478
    %v525 = vunpack.c.l.b16 %v479
    %v526 = vpack.c.b16 %v523, %v522
    %v527 = vpack.c.b16 %v525, %v524
    %v531 = vsel %vm390, %v516, 0
    %533 = vmatpush.bf16.msra.mxu0 0
    %534 = vmatpush.bf16.msra.mxu0 0
    %535 = vmatpush.bf16.msra.mxu0 0
    %536 = vmatpush.bf16.msra.mxu0 0
    %537 = vmatpush.bf16.msra.mxu0 0
    %538 = vmatpush.bf16.msra.mxu0 0
    %539 = vmatpush.bf16.msra.mxu0 %v527
    %540 = vmatpush.bf16.msra.mxu0 %v526
    %541 = vmatmul.bf16.gmra.mxu0 %v531
    %v542 = vpop.f32.mrf.mxu0
    %v543 = vadd.f32 0.0, %v542
    %v544 = vpop.f32.mrf.mxu0
    %545 = vdwg.mxu0
    %v546 = vadd.f32 %v517, %v543
    %v547 = vld [vmem:[#allocation3] sm:$0x1]
    %v552 = vunpack.c.l.b16 %v480
    %v553 = vunpack.c.l.b16 %v481
    %v554 = vunpack.c.l.b16 %v482
    %v555 = vunpack.c.l.b16 %v483
    %v556 = vpack.c.b16 %v553, %v552
    %v557 = vpack.c.b16 %v555, %v554
    %560 = vmatpush.bf16.msra.mxu0 0
    %561 = vmatpush.bf16.msra.mxu0 0
    %562 = vmatpush.bf16.msra.mxu0 0
    %563 = vmatpush.bf16.msra.mxu0 0
    %564 = vmatpush.bf16.msra.mxu0 0
    %565 = vmatpush.bf16.msra.mxu0 0
    %566 = vmatpush.bf16.msra.mxu0 %v557
    %567 = vmatpush.bf16.msra.mxu0 %v556
    %568 = vmatmul.bf16.gmra.mxu0 %v531
    %v569 = vpop.f32.mrf.mxu0
    %v570 = vadd.f32 0.0, %v569
    %v571 = vpop.f32.mrf.mxu0
    %572 = vdwg.mxu0
    %v573 = vadd.f32 %v547, %v570
    %v574 = vxor.u32 %v546, 2147483648
    %v575 = vmul.f32 %v574, 1.442695
    %v576 = vpow.pop %v575
    %v577 = vadd.f32 %v576, 1.0
    %v578 = vrcp.pop %v577
    %v579 = vmul.f32 %v577, %v578
    %v580 = vsub.f32 1.0, %v579
    %v581 = vmul.f32 %v578, %v580
    %v582 = vadd.f32 %v578, %v581
    %vm583 = vweird.f32 %v577
    %vm584 = vweird.f32 %v578
    %vm585 = vmor %vm583, %vm584
    %v586 = vsel %vm585, %v578, %v582
    %v587 = vand.u32 2147483647, %v577
    %vm588 = vcmp.eq.f32.partialorder %v587, 8.507059e+37
    %v589 = vand.u32 %v577, 2147483648
    %v590 = vor.u32 1.1754944e-38, %v589
    %v591 = vsel %vm588, %v590, %v586
    %v592 = vmul.f32 1.0, %v591
    %v593 = vxor.u32 %v573, 2147483648
    %v594 = vmul.f32 %v593, 1.442695
    %v595 = vpow.pop %v594
    %v596 = vadd.f32 %v595, 1.0
    %v597 = vrcp.pop %v596
    %v598 = vmul.f32 %v596, %v597
    %v599 = vsub.f32 1.0, %v598
    %v600 = vmul.f32 %v597, %v599
    %v601 = vadd.f32 %v597, %v600
    %vm602 = vweird.f32 %v596
    %vm603 = vweird.f32 %v597
    %vm604 = vmor %vm602, %vm603
    %v605 = vsel %vm604, %v597, %v601
    %v606 = vand.u32 2147483647, %v596
    %vm607 = vcmp.eq.f32.partialorder %v606, 8.507059e+37
    %v608 = vand.u32 %v596, 2147483648
    %v609 = vor.u32 1.1754944e-38, %v608
    %v610 = vsel %vm607, %v609, %v605
    %v611 = vmul.f32 1.0, %v610
    %v612 = vld [vmem:[#allocation4] sm:$0x1]
    %v613 = vmul.f32 %v611, %v515
    %v614 = vpack.c.bf16 %v613, %v613
    %v619 = vunpack.c.l.b16 %v484
    %v620 = vunpack.c.l.b16 %v485
    %v621 = vunpack.c.l.b16 %v486
    %v622 = vunpack.c.l.b16 %v487
    %v623 = vpack.c.b16 %v620, %v619
    %v624 = vpack.c.b16 %v622, %v621
    %v628 = vsel %vm390, %v614, 0
    %630 = vmatpush.bf16.msra.mxu0 0
    %631 = vmatpush.bf16.msra.mxu0 0
    %632 = vmatpush.bf16.msra.mxu0 0
    %633 = vmatpush.bf16.msra.mxu0 0
    %634 = vmatpush.bf16.msra.mxu0 0
    %635 = vmatpush.bf16.msra.mxu0 0
    %636 = vmatpush.bf16.msra.mxu0 %v624
    %637 = vmatpush.bf16.msra.mxu0 %v623
    %638 = vmatmul.bf16.gmra.mxu0 %v628
    %v639 = vpop.f32.mrf.mxu0
    %v640 = vadd.f32 0.0, %v639
    %v641 = vpop.f32.mrf.mxu0
    %642 = vdwg.mxu0
    %v643 = vadd.f32 %v612, %v640
    %v644 = vtanh.pop %v643
    %v645 = vsub.f32 1.0, %v592
    %v646 = vmul.f32 %v645, %v515
    %v647 = vmul.f32 %v592, %v644
    %v648 = vadd.f32 %v646, %v647
    %v649 = vld [vmem:[%s21] sm:$0x1]
    %v650 = vpack.c.bf16 %v648, %v648
    %v651 = vpack.c.bf16 %v649, %v649
    %v656 = vunpack.c.l.b16 %v500
    %v657 = vunpack.c.l.b16 %v501
    %v658 = vunpack.c.l.b16 %v502
    %v659 = vunpack.c.l.b16 %v503
    %v660 = vpack.c.b16 %v657, %v656
    %v661 = vpack.c.b16 %v659, %v658
    %v665 = vsel %vm390, %v651, 0
    %667 = vmatpush.bf16.msra.mxu0 0
    %668 = vmatpush.bf16.msra.mxu0 0
    %669 = vmatpush.bf16.msra.mxu0 0
    %670 = vmatpush.bf16.msra.mxu0 0
    %671 = vmatpush.bf16.msra.mxu0 0
    %672 = vmatpush.bf16.msra.mxu0 0
    %673 = vmatpush.bf16.msra.mxu0 %v661
    %674 = vmatpush.bf16.msra.mxu0 %v660
    %675 = vmatmul.bf16.gmra.mxu0 %v665
    %v676 = vpop.f32.mrf.mxu0
    %v677 = vadd.f32 0.0, %v676
    %v678 = vpop.f32.mrf.mxu0
    %679 = vdwg.mxu0
    %v684 = vunpack.c.l.b16 %v488
    %v685 = vunpack.c.l.b16 %v489
    %v686 = vunpack.c.l.b16 %v490
    %v687 = vunpack.c.l.b16 %v491
    %v688 = vpack.c.b16 %v685, %v684
    %v689 = vpack.c.b16 %v687, %v686
    %v693 = vsel %vm390, %v650, 0
    %695 = vmatpush.bf16.msra.mxu0 0
    %696 = vmatpush.bf16.msra.mxu0 0
    %697 = vmatpush.bf16.msra.mxu0 0
    %698 = vmatpush.bf16.msra.mxu0 0
    %699 = vmatpush.bf16.msra.mxu0 0
    %700 = vmatpush.bf16.msra.mxu0 0
    %701 = vmatpush.bf16.msra.mxu0 %v689
    %702 = vmatpush.bf16.msra.mxu0 %v688
    %703 = vmatmul.bf16.gmra.mxu0 %v693
    %v704 = vpop.f32.mrf.mxu0
    %v705 = vadd.f32 %v677, %v704
    %v706 = vpop.f32.mrf.mxu0
    %707 = vdwg.mxu0
    %v708 = vadd.f32 %v705, %v512
    %v713 = vunpack.c.l.b16 %v504
    %v714 = vunpack.c.l.b16 %v505
    %v715 = vunpack.c.l.b16 %v506
    %v716 = vunpack.c.l.b16 %v507
    %v717 = vpack.c.b16 %v714, %v713
    %v718 = vpack.c.b16 %v716, %v715
    %721 = vmatpush.bf16.msra.mxu0 0
    %722 = vmatpush.bf16.msra.mxu0 0
    %723 = vmatpush.bf16.msra.mxu0 0
    %724 = vmatpush.bf16.msra.mxu0 0
    %725 = vmatpush.bf16.msra.mxu0 0
    %726 = vmatpush.bf16.msra.mxu0 0
    %727 = vmatpush.bf16.msra.mxu0 %v718
    %728 = vmatpush.bf16.msra.mxu0 %v717
    %729 = vmatmul.bf16.gmra.mxu0 %v665
    %v730 = vpop.f32.mrf.mxu0
    %v731 = vadd.f32 0.0, %v730
    %v732 = vpop.f32.mrf.mxu0
    %733 = vdwg.mxu0
    %v738 = vunpack.c.l.b16 %v492
    %v739 = vunpack.c.l.b16 %v493
    %v740 = vunpack.c.l.b16 %v494
    %v741 = vunpack.c.l.b16 %v495
    %v742 = vpack.c.b16 %v739, %v738
    %v743 = vpack.c.b16 %v741, %v740
    %746 = vmatpush.bf16.msra.mxu0 0
    %747 = vmatpush.bf16.msra.mxu0 0
    %748 = vmatpush.bf16.msra.mxu0 0
    %749 = vmatpush.bf16.msra.mxu0 0
    %750 = vmatpush.bf16.msra.mxu0 0
    %751 = vmatpush.bf16.msra.mxu0 0
    %752 = vmatpush.bf16.msra.mxu0 %v743
    %753 = vmatpush.bf16.msra.mxu0 %v742
    %754 = vmatmul.bf16.gmra.mxu0 %v693
    %v755 = vpop.f32.mrf.mxu0
    %v756 = vadd.f32 %v731, %v755
    %v757 = vpop.f32.mrf.mxu0
    %758 = vdwg.mxu0
    %v759 = vadd.f32 %v756, %v513
    %v760 = vxor.u32 %v708, 2147483648
    %v761 = vmul.f32 %v760, 1.442695
    %v762 = vpow.pop %v761
    %v763 = vadd.f32 %v762, 1.0
    %v764 = vrcp.pop %v763
    %v765 = vmul.f32 %v763, %v764
    %v766 = vsub.f32 1.0, %v765
    %v767 = vmul.f32 %v764, %v766
    %v768 = vadd.f32 %v764, %v767
    %vm769 = vweird.f32 %v763
    %vm770 = vweird.f32 %v764
    %vm771 = vmor %vm769, %vm770
    %v772 = vsel %vm771, %v764, %v768
    %v773 = vand.u32 2147483647, %v763
    %vm774 = vcmp.eq.f32.partialorder %v773, 8.507059e+37
    %v775 = vand.u32 %v763, 2147483648
    %v776 = vor.u32 1.1754944e-38, %v775
    %v777 = vsel %vm774, %v776, %v772
    %v778 = vmul.f32 1.0, %v777
    %v779 = vxor.u32 %v759, 2147483648
    %v780 = vmul.f32 %v779, 1.442695
    %v781 = vpow.pop %v780
    %v782 = vadd.f32 %v781, 1.0
    %v783 = vrcp.pop %v782
    %v784 = vmul.f32 %v782, %v783
    %v785 = vsub.f32 1.0, %v784
    %v786 = vmul.f32 %v783, %v785
    %v787 = vadd.f32 %v783, %v786
    %vm788 = vweird.f32 %v782
    %vm789 = vweird.f32 %v783
    %vm790 = vmor %vm788, %vm789
    %v791 = vsel %vm790, %v783, %v787
    %v792 = vand.u32 2147483647, %v782
    %vm793 = vcmp.eq.f32.partialorder %v792, 8.507059e+37
    %v794 = vand.u32 %v782, 2147483648
    %v795 = vor.u32 1.1754944e-38, %v794
    %v796 = vsel %vm793, %v795, %v791
    %v797 = vmul.f32 1.0, %v796
    %v798 = vmul.f32 %v797, %v649
    %v799 = vpack.c.bf16 %v798, %v798
    %v804 = vunpack.c.l.b16 %v508
    %v805 = vunpack.c.l.b16 %v509
    %v806 = vunpack.c.l.b16 %v510
    %v807 = vunpack.c.l.b16 %v511
    %v808 = vpack.c.b16 %v805, %v804
    %v809 = vpack.c.b16 %v807, %v806
    %v813 = vsel %vm390, %v799, 0
    %815 = vmatpush.bf16.msra.mxu0 0
    %816 = vmatpush.bf16.msra.mxu0 0
    %817 = vmatpush.bf16.msra.mxu0 0
    %818 = vmatpush.bf16.msra.mxu0 0
    %819 = vmatpush.bf16.msra.mxu0 0
    %820 = vmatpush.bf16.msra.mxu0 0
    %821 = vmatpush.bf16.msra.mxu0 %v809
    %822 = vmatpush.bf16.msra.mxu0 %v808
    %823 = vmatmul.bf16.gmra.mxu0 %v813
    %v824 = vpop.f32.mrf.mxu0
    %v825 = vadd.f32 0.0, %v824
    %v826 = vpop.f32.mrf.mxu0
    %827 = vdwg.mxu0
    %v832 = vunpack.c.l.b16 %v496
    %v833 = vunpack.c.l.b16 %v497
    %v834 = vunpack.c.l.b16 %v498
    %v835 = vunpack.c.l.b16 %v499
    %v836 = vpack.c.b16 %v833, %v832
    %v837 = vpack.c.b16 %v835, %v834
    %840 = vmatpush.bf16.msra.mxu0 0
    %841 = vmatpush.bf16.msra.mxu0 0
    %842 = vmatpush.bf16.msra.mxu0 0
    %843 = vmatpush.bf16.msra.mxu0 0
    %844 = vmatpush.bf16.msra.mxu0 0
    %845 = vmatpush.bf16.msra.mxu0 0
    %846 = vmatpush.bf16.msra.mxu0 %v837
    %847 = vmatpush.bf16.msra.mxu0 %v836
    %848 = vmatmul.bf16.gmra.mxu0 %v693
    %v849 = vpop.f32.mrf.mxu0
    %v850 = vadd.f32 %v825, %v849
    %v851 = vpop.f32.mrf.mxu0
    %852 = vdwg.mxu0
    %v853 = vadd.f32 %v850, %v514
    %v854 = vtanh.pop %v853
    %v855 = vsub.f32 1.0, %v778
    %v856 = vmul.f32 %v855, %v649
    %v857 = vmul.f32 %v778, %v854
    %v858 = vadd.f32 %v856, %v857
    %vm859 = vcmask 253952
    %860 = vst.msk [vmem:[#allocation5] sm:$0x1] %vm859, %v858
    %v861 = vld [vmem:[#allocation2 + $0x1] sm:$0x1]
    %862 = vmatpush.bf16.msra.mxu0 0
    %863 = vmatpush.bf16.msra.mxu0 0
    %864 = vmatpush.bf16.msra.mxu0 0
    %865 = vmatpush.bf16.msra.mxu0 0
    %866 = vmatpush.bf16.msra.mxu0 0
    %867 = vmatpush.bf16.msra.mxu0 0
    %868 = vmatpush.bf16.msra.mxu0 %v527
    %869 = vmatpush.bf16.msra.mxu0 %v526
    %870 = vmatmul.bf16.gmra.mxu0 %v693
    %v871 = vpop.f32.mrf.mxu0
    %v872 = vadd.f32 0.0, %v871
    %v873 = vpop.f32.mrf.mxu0
    %874 = vdwg.mxu0
    %v875 = vadd.f32 %v861, %v872
    %v876 = vld [vmem:[#allocation3 + $0x1] sm:$0x1]
    %877 = vmatpush.bf16.msra.mxu0 0
    %878 = vmatpush.bf16.msra.mxu0 0
    %879 = vmatpush.bf16.msra.mxu0 0
    %880 = vmatpush.bf16.msra.mxu0 0
    %881 = vmatpush.bf16.msra.mxu0 0
    %882 = vmatpush.bf16.msra.mxu0 0
    %883 = vmatpush.bf16.msra.mxu0 %v557
    %884 = vmatpush.bf16.msra.mxu0 %v556
    %885 = vmatmul.bf16.gmra.mxu0 %v693
    %v886 = vpop.f32.mrf.mxu0
    %v887 = vadd.f32 0.0, %v886
    %v888 = vpop.f32.mrf.mxu0
    %889 = vdwg.mxu0
    %v890 = vadd.f32 %v876, %v887
    %v891 = vxor.u32 %v875, 2147483648
    %v892 = vmul.f32 %v891, 1.442695
    %v893 = vpow.pop %v892
    %v894 = vadd.f32 %v893, 1.0
    %v895 = vrcp.pop %v894
    %v896 = vmul.f32 %v894, %v895
    %v897 = vsub.f32 1.0, %v896
    %v898 = vmul.f32 %v895, %v897
    %v899 = vadd.f32 %v895, %v898
    %vm900 = vweird.f32 %v894
    %vm901 = vweird.f32 %v895
    %vm902 = vmor %vm900, %vm901
    %v903 = vsel %vm902, %v895, %v899
    %v904 = vand.u32 2147483647, %v894
    %vm905 = vcmp.eq.f32.partialorder %v904, 8.507059e+37
    %v906 = vand.u32 %v894, 2147483648
    %v907 = vor.u32 1.1754944e-38, %v906
    %v908 = vsel %vm905, %v907, %v903
    %v909 = vmul.f32 1.0, %v908
    %v910 = vxor.u32 %v890, 2147483648
    %v911 = vmul.f32 %v910, 1.442695
    %v912 = vpow.pop %v911
    %v913 = vadd.f32 %v912, 1.0
    %v914 = vrcp.pop %v913
    %v915 = vmul.f32 %v913, %v914
    %v916 = vsub.f32 1.0, %v915
    %v917 = vmul.f32 %v914, %v916
    %v918 = vadd.f32 %v914, %v917
    %vm919 = vweird.f32 %v913
    %vm920 = vweird.f32 %v914
    %vm921 = vmor %vm919, %vm920
    %v922 = vsel %vm921, %v914, %v918
    %v923 = vand.u32 2147483647, %v913
    %vm924 = vcmp.eq.f32.partialorder %v923, 8.507059e+37
    %v925 = vand.u32 %v913, 2147483648
    %v926 = vor.u32 1.1754944e-38, %v925
    %v927 = vsel %vm924, %v926, %v922
    %v928 = vmul.f32 1.0, %v927
    %v929 = vld [vmem:[#allocation4 + $0x1] sm:$0x1]
    %v930 = vmul.f32 %v928, %v648
    %v931 = vpack.c.bf16 %v930, %v930
    %v933 = vsel %vm390, %v931, 0
    %935 = vmatpush.bf16.msra.mxu0 0
    %936 = vmatpush.bf16.msra.mxu0 0
    %937 = vmatpush.bf16.msra.mxu0 0
    %938 = vmatpush.bf16.msra.mxu0 0
    %939 = vmatpush.bf16.msra.mxu0 0
    %940 = vmatpush.bf16.msra.mxu0 0
    %941 = vmatpush.bf16.msra.mxu0 %v624
    %942 = vmatpush.bf16.msra.mxu0 %v623
    %943 = vmatmul.bf16.gmra.mxu0 %v933
    %v944 = vpop.f32.mrf.mxu0
    %v945 = vadd.f32 0.0, %v944
    %v946 = vpop.f32.mrf.mxu0
    %947 = vdwg.mxu0
    %v948 = vadd.f32 %v929, %v945
    %v949 = vtanh.pop %v948
    %v950 = vsub.f32 1.0, %v909
    %v951 = vmul.f32 %v950, %v648
    %v952 = vmul.f32 %v909, %v949
    %v953 = vadd.f32 %v951, %v952
    %v954 = vpack.c.bf16 %v953, %v953
    %v955 = vpack.c.bf16 %v858, %v858
    %v957 = vsel %vm390, %v955, 0
    %959 = vmatpush.bf16.msra.mxu0 0
    %960 = vmatpush.bf16.msra.mxu0 0
    %961 = vmatpush.bf16.msra.mxu0 0
    %962 = vmatpush.bf16.msra.mxu0 0
    %963 = vmatpush.bf16.msra.mxu0 0
    %964 = vmatpush.bf16.msra.mxu0 0
    %965 = vmatpush.bf16.msra.mxu0 %v661
    %966 = vmatpush.bf16.msra.mxu0 %v660
    %967 = vmatmul.bf16.gmra.mxu0 %v957
    %v968 = vpop.f32.mrf.mxu0
    %v969 = vadd.f32 0.0, %v968
    %v970 = vpop.f32.mrf.mxu0
    %971 = vdwg.mxu0
    %v973 = vsel %vm390, %v954, 0
    %975 = vmatpush.bf16.msra.mxu0 0
    %976 = vmatpush.bf16.msra.mxu0 0
    %977 = vmatpush.bf16.msra.mxu0 0
    %978 = vmatpush.bf16.msra.mxu0 0
    %979 = vmatpush.bf16.msra.mxu0 0
    %980 = vmatpush.bf16.msra.mxu0 0
    %981 = vmatpush.bf16.msra.mxu0 %v689
    %982 = vmatpush.bf16.msra.mxu0 %v688
    %983 = vmatmul.bf16.gmra.mxu0 %v973
    %v984 = vpop.f32.mrf.mxu0
    %v985 = vadd.f32 %v969, %v984
    %v986 = vpop.f32.mrf.mxu0
    %987 = vdwg.mxu0
    %v988 = vadd.f32 %v985, %v512
    %989 = vmatpush.bf16.msra.mxu0 0
    %990 = vmatpush.bf16.msra.mxu0 0
    %991 = vmatpush.bf16.msra.mxu0 0
    %992 = vmatpush.bf16.msra.mxu0 0
    %993 = vmatpush.bf16.msra.mxu0 0
    %994 = vmatpush.bf16.msra.mxu0 0
    %995 = vmatpush.bf16.msra.mxu0 %v718
    %996 = vmatpush.bf16.msra.mxu0 %v717
    %997 = vmatmul.bf16.gmra.mxu0 %v957
    %v998 = vpop.f32.mrf.mxu0
    %v999 = vadd.f32 0.0, %v998
    %v1000 = vpop.f32.mrf.mxu0
    %1001 = vdwg.mxu0
    %1002 = vmatpush.bf16.msra.mxu0 0
    %1003 = vmatpush.bf16.msra.mxu0 0
    %1004 = vmatpush.bf16.msra.mxu0 0
    %1005 = vmatpush.bf16.msra.mxu0 0
    %1006 = vmatpush.bf16.msra.mxu0 0
    %1007 = vmatpush.bf16.msra.mxu0 0
    %1008 = vmatpush.bf16.msra.mxu0 %v743
    %1009 = vmatpush.bf16.msra.mxu0 %v742
    %1010 = vmatmul.bf16.gmra.mxu0 %v973
    %v1011 = vpop.f32.mrf.mxu0
    %v1012 = vadd.f32 %v999, %v1011
    %v1013 = vpop.f32.mrf.mxu0
    %1014 = vdwg.mxu0
    %v1015 = vadd.f32 %v1012, %v513
    %v1016 = vxor.u32 %v988, 2147483648
    %v1017 = vmul.f32 %v1016, 1.442695
    %v1018 = vpow.pop %v1017
    %v1019 = vadd.f32 %v1018, 1.0
    %v1020 = vrcp.pop %v1019
    %v1021 = vmul.f32 %v1019, %v1020
    %v1022 = vsub.f32 1.0, %v1021
    %v1023 = vmul.f32 %v1020, %v1022
    %v1024 = vadd.f32 %v1020, %v1023
    %vm1025 = vweird.f32 %v1019
    %vm1026 = vweird.f32 %v1020
    %vm1027 = vmor %vm1025, %vm1026
    %v1028 = vsel %vm1027, %v1020, %v1024
    %v1029 = vand.u32 2147483647, %v1019
    %vm1030 = vcmp.eq.f32.partialorder %v1029, 8.507059e+37
    %v1031 = vand.u32 %v1019, 2147483648
    %v1032 = vor.u32 1.1754944e-38, %v1031
    %v1033 = vsel %vm1030, %v1032, %v1028
    %v1034 = vmul.f32 1.0, %v1033
    %v1035 = vxor.u32 %v1015, 2147483648
    %v1036 = vmul.f32 %v1035, 1.442695
    %v1037 = vpow.pop %v1036
    %v1038 = vadd.f32 %v1037, 1.0
    %v1039 = vrcp.pop %v1038
    %v1040 = vmul.f32 %v1038, %v1039
    %v1041 = vsub.f32 1.0, %v1040
    %v1042 = vmul.f32 %v1039, %v1041
    %v1043 = vadd.f32 %v1039, %v1042
    %vm1044 = vweird.f32 %v1038
    %vm1045 = vweird.f32 %v1039
    %vm1046 = vmor %vm1044, %vm1045
    %v1047 = vsel %vm1046, %v1039, %v1043
    %v1048 = vand.u32 2147483647, %v1038
    %vm1049 = vcmp.eq.f32.partialorder %v1048, 8.507059e+37
    %v1050 = vand.u32 %v1038, 2147483648
    %v1051 = vor.u32 1.1754944e-38, %v1050
    %v1052 = vsel %vm1049, %v1051, %v1047
    %v1053 = vmul.f32 1.0, %v1052
    %v1054 = vmul.f32 %v1053, %v858
    %v1055 = vpack.c.bf16 %v1054, %v1054
    %v1057 = vsel %vm390, %v1055, 0
    %1059 = vmatpush.bf16.msra.mxu0 0
    %1060 = vmatpush.bf16.msra.mxu0 0
    %1061 = vmatpush.bf16.msra.mxu0 0
    %1062 = vmatpush.bf16.msra.mxu0 0
    %1063 = vmatpush.bf16.msra.mxu0 0
    %1064 = vmatpush.bf16.msra.mxu0 0
    %1065 = vmatpush.bf16.msra.mxu0 %v809
    %1066 = vmatpush.bf16.msra.mxu0 %v808
    %1067 = vmatmul.bf16.gmra.mxu0 %v1057
    %v1068 = vpop.f32.mrf.mxu0
    %v1069 = vadd.f32 0.0, %v1068
    %v1070 = vpop.f32.mrf.mxu0
    %1071 = vdwg.mxu0
    %1072 = vmatpush.bf16.msra.mxu0 0
    %1073 = vmatpush.bf16.msra.mxu0 0
    %1074 = vmatpush.bf16.msra.mxu0 0
    %1075 = vmatpush.bf16.msra.mxu0 0
    %1076 = vmatpush.bf16.msra.mxu0 0
    %1077 = vmatpush.bf16.msra.mxu0 0
    %1078 = vmatpush.bf16.msra.mxu0 %v837
    %1079 = vmatpush.bf16.msra.mxu0 %v836
    %1080 = vmatmul.bf16.gmra.mxu0 %v973
    %v1081 = vpop.f32.mrf.mxu0
    %v1082 = vadd.f32 %v1069, %v1081
    %v1083 = vpop.f32.mrf.mxu0
    %1084 = vdwg.mxu0
    %v1085 = vadd.f32 %v1082, %v514
    %v1086 = vtanh.pop %v1085
    %v1087 = vsub.f32 1.0, %v1034
    %v1088 = vmul.f32 %v1087, %v858
    %v1089 = vmul.f32 %v1034, %v1086
    %v1090 = vadd.f32 %v1088, %v1089
    %1091 = vst.msk [vmem:[#allocation5 + $0x1] sm:$0x1] %vm859, %v1090
    %v1092 = vld [vmem:[#allocation2 + $0x2] sm:$0x1]
    %1093 = vmatpush.bf16.msra.mxu0 0
    %1094 = vmatpush.bf16.msra.mxu0 0
    %1095 = vmatpush.bf16.msra.mxu0 0
    %1096 = vmatpush.bf16.msra.mxu0 0
    %1097 = vmatpush.bf16.msra.mxu0 0
    %1098 = vmatpush.bf16.msra.mxu0 0
    %1099 = vmatpush.bf16.msra.mxu0 %v527
    %1100 = vmatpush.bf16.msra.mxu0 %v526
    %1101 = vmatmul.bf16.gmra.mxu0 %v973
    %v1102 = vpop.f32.mrf.mxu0
    %v1103 = vadd.f32 0.0, %v1102
    %v1104 = vpop.f32.mrf.mxu0
    %1105 = vdwg.mxu0
    %v1106 = vadd.f32 %v1092, %v1103
    %v1107 = vld [vmem:[#allocation3 + $0x2] sm:$0x1]
    %1108 = vmatpush.bf16.msra.mxu0 0
    %1109 = vmatpush.bf16.msra.mxu0 0
    %1110 = vmatpush.bf16.msra.mxu0 0
    %1111 = vmatpush.bf16.msra.mxu0 0
    %1112 = vmatpush.bf16.msra.mxu0 0
    %1113 = vmatpush.bf16.msra.mxu0 0
    %1114 = vmatpush.bf16.msra.mxu0 %v557
    %1115 = vmatpush.bf16.msra.mxu0 %v556
    %1116 = vmatmul.bf16.gmra.mxu0 %v973
    %v1117 = vpop.f32.mrf.mxu0
    %v1118 = vadd.f32 0.0, %v1117
    %v1119 = vpop.f32.mrf.mxu0
    %1120 = vdwg.mxu0
    %v1121 = vadd.f32 %v1107, %v1118
    %v1122 = vxor.u32 %v1106, 2147483648
    %v1123 = vmul.f32 %v1122, 1.442695
    %v1124 = vpow.pop %v1123
    %v1125 = vadd.f32 %v1124, 1.0
    %v1126 = vrcp.pop %v1125
    %v1127 = vmul.f32 %v1125, %v1126
    %v1128 = vsub.f32 1.0, %v1127
    %v1129 = vmul.f32 %v1126, %v1128
    %v1130 = vadd.f32 %v1126, %v1129
    %vm1131 = vweird.f32 %v1125
    %vm1132 = vweird.f32 %v1126
    %vm1133 = vmor %vm1131, %vm1132
    %v1134 = vsel %vm1133, %v1126, %v1130
    %v1135 = vand.u32 2147483647, %v1125
    %vm1136 = vcmp.eq.f32.partialorder %v1135, 8.507059e+37
    %v1137 = vand.u32 %v1125, 2147483648
    %v1138 = vor.u32 1.1754944e-38, %v1137
    %v1139 = vsel %vm1136, %v1138, %v1134
    %v1140 = vmul.f32 1.0, %v1139
    %v1141 = vxor.u32 %v1121, 2147483648
    %v1142 = vmul.f32 %v1141, 1.442695
    %v1143 = vpow.pop %v1142
    %v1144 = vadd.f32 %v1143, 1.0
    %v1145 = vrcp.pop %v1144
    %v1146 = vmul.f32 %v1144, %v1145
    %v1147 = vsub.f32 1.0, %v1146
    %v1148 = vmul.f32 %v1145, %v1147
    %v1149 = vadd.f32 %v1145, %v1148
    %vm1150 = vweird.f32 %v1144
    %vm1151 = vweird.f32 %v1145
    %vm1152 = vmor %vm1150, %vm1151
    %v1153 = vsel %vm1152, %v1145, %v1149
    %v1154 = vand.u32 2147483647, %v1144
    %vm1155 = vcmp.eq.f32.partialorder %v1154, 8.507059e+37
    %v1156 = vand.u32 %v1144, 2147483648
    %v1157 = vor.u32 1.1754944e-38, %v1156
    %v1158 = vsel %vm1155, %v1157, %v1153
    %v1159 = vmul.f32 1.0, %v1158
    %v1160 = vld [vmem:[#allocation4 + $0x2] sm:$0x1]
    %v1161 = vmul.f32 %v1159, %v953
    %v1162 = vpack.c.bf16 %v1161, %v1161
    %v1164 = vsel %vm390, %v1162, 0
    %1166 = vmatpush.bf16.msra.mxu0 0
    %1167 = vmatpush.bf16.msra.mxu0 0
    %1168 = vmatpush.bf16.msra.mxu0 0
    %1169 = vmatpush.bf16.msra.mxu0 0
    %1170 = vmatpush.bf16.msra.mxu0 0
    %1171 = vmatpush.bf16.msra.mxu0 0
    %1172 = vmatpush.bf16.msra.mxu0 %v624
    %1173 = vmatpush.bf16.msra.mxu0 %v623
    %1174 = vmatmul.bf16.gmra.mxu0 %v1164
    %v1175 = vpop.f32.mrf.mxu0
    %v1176 = vadd.f32 0.0, %v1175
    %v1177 = vpop.f32.mrf.mxu0
    %1178 = vdwg.mxu0
    %v1179 = vadd.f32 %v1160, %v1176
    %v1180 = vtanh.pop %v1179
    %v1181 = vsub.f32 1.0, %v1140
    %v1182 = vmul.f32 %v1181, %v953
    %v1183 = vmul.f32 %v1140, %v1180
    %v1184 = vadd.f32 %v1182, %v1183
    %v1185 = vpack.c.bf16 %v1184, %v1184
    %v1186 = vpack.c.bf16 %v1090, %v1090
    %v1188 = vsel %vm390, %v1186, 0
    %1190 = vmatpush.bf16.msra.mxu0 0
    %1191 = vmatpush.bf16.msra.mxu0 0
    %1192 = vmatpush.bf16.msra.mxu0 0
    %1193 = vmatpush.bf16.msra.mxu0 0
    %1194 = vmatpush.bf16.msra.mxu0 0
    %1195 = vmatpush.bf16.msra.mxu0 0
    %1196 = vmatpush.bf16.msra.mxu0 %v661
    %1197 = vmatpush.bf16.msra.mxu0 %v660
    %1198 = vmatmul.bf16.gmra.mxu0 %v1188
    %v1199 = vpop.f32.mrf.mxu0
    %v1200 = vadd.f32 0.0, %v1199
    %v1201 = vpop.f32.mrf.mxu0
    %1202 = vdwg.mxu0
    %v1204 = vsel %vm390, %v1185, 0
    %1206 = vmatpush.bf16.msra.mxu0 0
    %1207 = vmatpush.bf16.msra.mxu0 0
    %1208 = vmatpush.bf16.msra.mxu0 0
    %1209 = vmatpush.bf16.msra.mxu0 0
    %1210 = vmatpush.bf16.msra.mxu0 0
    %1211 = vmatpush.bf16.msra.mxu0 0
    %1212 = vmatpush.bf16.msra.mxu0 %v689
    %1213 = vmatpush.bf16.msra.mxu0 %v688
    %1214 = vmatmul.bf16.gmra.mxu0 %v1204
    %v1215 = vpop.f32.mrf.mxu0
    %v1216 = vadd.f32 %v1200, %v1215
    %v1217 = vpop.f32.mrf.mxu0
    %1218 = vdwg.mxu0
    %v1219 = vadd.f32 %v1216, %v512
    %1220 = vmatpush.bf16.msra.mxu0 0
    %1221 = vmatpush.bf16.msra.mxu0 0
    %1222 = vmatpush.bf16.msra.mxu0 0
    %1223 = vmatpush.bf16.msra.mxu0 0
    %1224 = vmatpush.bf16.msra.mxu0 0
    %1225 = vmatpush.bf16.msra.mxu0 0
    %1226 = vmatpush.bf16.msra.mxu0 %v718
    %1227 = vmatpush.bf16.msra.mxu0 %v717
    %1228 = vmatmul.bf16.gmra.mxu0 %v1188
    %v1229 = vpop.f32.mrf.mxu0
    %v1230 = vadd.f32 0.0, %v1229
    %v1231 = vpop.f32.mrf.mxu0
    %1232 = vdwg.mxu0
    %1233 = vmatpush.bf16.msra.mxu0 0
    %1234 = vmatpush.bf16.msra.mxu0 0
    %1235 = vmatpush.bf16.msra.mxu0 0
    %1236 = vmatpush.bf16.msra.mxu0 0
    %1237 = vmatpush.bf16.msra.mxu0 0
    %1238 = vmatpush.bf16.msra.mxu0 0
    %1239 = vmatpush.bf16.msra.mxu0 %v743
    %1240 = vmatpush.bf16.msra.mxu0 %v742
    %1241 = vmatmul.bf16.gmra.mxu0 %v1204
    %v1242 = vpop.f32.mrf.mxu0
    %v1243 = vadd.f32 %v1230, %v1242
    %v1244 = vpop.f32.mrf.mxu0
    %1245 = vdwg.mxu0
    %v1246 = vadd.f32 %v1243, %v513
    %v1247 = vxor.u32 %v1219, 2147483648
    %v1248 = vmul.f32 %v1247, 1.442695
    %v1249 = vpow.pop %v1248
    %v1250 = vadd.f32 %v1249, 1.0
    %v1251 = vrcp.pop %v1250
    %v1252 = vmul.f32 %v1250, %v1251
    %v1253 = vsub.f32 1.0, %v1252
    %v1254 = vmul.f32 %v1251, %v1253
    %v1255 = vadd.f32 %v1251, %v1254
    %vm1256 = vweird.f32 %v1250
    %vm1257 = vweird.f32 %v1251
    %vm1258 = vmor %vm1256, %vm1257
    %v1259 = vsel %vm1258, %v1251, %v1255
    %v1260 = vand.u32 2147483647, %v1250
    %vm1261 = vcmp.eq.f32.partialorder %v1260, 8.507059e+37
    %v1262 = vand.u32 %v1250, 2147483648
    %v1263 = vor.u32 1.1754944e-38, %v1262
    %v1264 = vsel %vm1261, %v1263, %v1259
    %v1265 = vmul.f32 1.0, %v1264
    %v1266 = vxor.u32 %v1246, 2147483648
    %v1267 = vmul.f32 %v1266, 1.442695
    %v1268 = vpow.pop %v1267
    %v1269 = vadd.f32 %v1268, 1.0
    %v1270 = vrcp.pop %v1269
    %v1271 = vmul.f32 %v1269, %v1270
    %v1272 = vsub.f32 1.0, %v1271
    %v1273 = vmul.f32 %v1270, %v1272
    %v1274 = vadd.f32 %v1270, %v1273
    %vm1275 = vweird.f32 %v1269
    %vm1276 = vweird.f32 %v1270
    %vm1277 = vmor %vm1275, %vm1276
    %v1278 = vsel %vm1277, %v1270, %v1274
    %v1279 = vand.u32 2147483647, %v1269
    %vm1280 = vcmp.eq.f32.partialorder %v1279, 8.507059e+37
    %v1281 = vand.u32 %v1269, 2147483648
    %v1282 = vor.u32 1.1754944e-38, %v1281
    %v1283 = vsel %vm1280, %v1282, %v1278
    %v1284 = vmul.f32 1.0, %v1283
    %v1285 = vmul.f32 %v1284, %v1090
    %v1286 = vpack.c.bf16 %v1285, %v1285
    %v1288 = vsel %vm390, %v1286, 0
    %1290 = vmatpush.bf16.msra.mxu0 0
    %1291 = vmatpush.bf16.msra.mxu0 0
    %1292 = vmatpush.bf16.msra.mxu0 0
    %1293 = vmatpush.bf16.msra.mxu0 0
    %1294 = vmatpush.bf16.msra.mxu0 0
    %1295 = vmatpush.bf16.msra.mxu0 0
    %1296 = vmatpush.bf16.msra.mxu0 %v809
    %1297 = vmatpush.bf16.msra.mxu0 %v808
    %1298 = vmatmul.bf16.gmra.mxu0 %v1288
    %v1299 = vpop.f32.mrf.mxu0
    %v1300 = vadd.f32 0.0, %v1299
    %v1301 = vpop.f32.mrf.mxu0
    %1302 = vdwg.mxu0
    %1303 = vmatpush.bf16.msra.mxu0 0
    %1304 = vmatpush.bf16.msra.mxu0 0
    %1305 = vmatpush.bf16.msra.mxu0 0
    %1306 = vmatpush.bf16.msra.mxu0 0
    %1307 = vmatpush.bf16.msra.mxu0 0
    %1308 = vmatpush.bf16.msra.mxu0 0
    %1309 = vmatpush.bf16.msra.mxu0 %v837
    %1310 = vmatpush.bf16.msra.mxu0 %v836
    %1311 = vmatmul.bf16.gmra.mxu0 %v1204
    %v1312 = vpop.f32.mrf.mxu0
    %v1313 = vadd.f32 %v1300, %v1312
    %v1314 = vpop.f32.mrf.mxu0
    %1315 = vdwg.mxu0
    %v1316 = vadd.f32 %v1313, %v514
    %v1317 = vtanh.pop %v1316
    %v1318 = vsub.f32 1.0, %v1265
    %v1319 = vmul.f32 %v1318, %v1090
    %v1320 = vmul.f32 %v1265, %v1317
    %v1321 = vadd.f32 %v1319, %v1320
    %1322 = vst.msk [vmem:[#allocation5 + $0x2] sm:$0x1] %vm859, %v1321
    %v1323 = vld [vmem:[#allocation2 + $0x3] sm:$0x1]
    %1324 = vmatpush.bf16.msra.mxu0 0
    %1325 = vmatpush.bf16.msra.mxu0 0
    %1326 = vmatpush.bf16.msra.mxu0 0
    %1327 = vmatpush.bf16.msra.mxu0 0
    %1328 = vmatpush.bf16.msra.mxu0 0
    %1329 = vmatpush.bf16.msra.mxu0 0
    %1330 = vmatpush.bf16.msra.mxu0 %v527
    %1331 = vmatpush.bf16.msra.mxu0 %v526
    %1332 = vmatmul.bf16.gmra.mxu0 %v1204
    %v1333 = vpop.f32.mrf.mxu0
    %v1334 = vadd.f32 0.0, %v1333
    %v1335 = vpop.f32.mrf.mxu0
    %1336 = vdwg.mxu0
    %v1337 = vadd.f32 %v1323, %v1334
    %v1338 = vld [vmem:[#allocation3 + $0x3] sm:$0x1]
    %1339 = vmatpush.bf16.msra.mxu0 0
    %1340 = vmatpush.bf16.msra.mxu0 0
    %1341 = vmatpush.bf16.msra.mxu0 0
    %1342 = vmatpush.bf16.msra.mxu0 0
    %1343 = vmatpush.bf16.msra.mxu0 0
    %1344 = vmatpush.bf16.msra.mxu0 0
    %1345 = vmatpush.bf16.msra.mxu0 %v557
    %1346 = vmatpush.bf16.msra.mxu0 %v556
    %1347 = vmatmul.bf16.gmra.mxu0 %v1204
    %v1348 = vpop.f32.mrf.mxu0
    %v1349 = vadd.f32 0.0, %v1348
    %v1350 = vpop.f32.mrf.mxu0
    %1351 = vdwg.mxu0
    %v1352 = vadd.f32 %v1338, %v1349
    %v1353 = vxor.u32 %v1337, 2147483648
    %v1354 = vmul.f32 %v1353, 1.442695
    %v1355 = vpow.pop %v1354
    %v1356 = vadd.f32 %v1355, 1.0
    %v1357 = vrcp.pop %v1356
    %v1358 = vmul.f32 %v1356, %v1357
    %v1359 = vsub.f32 1.0, %v1358
    %v1360 = vmul.f32 %v1357, %v1359
    %v1361 = vadd.f32 %v1357, %v1360
    %vm1362 = vweird.f32 %v1356
    %vm1363 = vweird.f32 %v1357
    %vm1364 = vmor %vm1362, %vm1363
    %v1365 = vsel %vm1364, %v1357, %v1361
    %v1366 = vand.u32 2147483647, %v1356
    %vm1367 = vcmp.eq.f32.partialorder %v1366, 8.507059e+37
    %v1368 = vand.u32 %v1356, 2147483648
    %v1369 = vor.u32 1.1754944e-38, %v1368
    %v1370 = vsel %vm1367, %v1369, %v1365
    %v1371 = vmul.f32 1.0, %v1370
    %v1372 = vxor.u32 %v1352, 2147483648
    %v1373 = vmul.f32 %v1372, 1.442695
    %v1374 = vpow.pop %v1373
    %v1375 = vadd.f32 %v1374, 1.0
    %v1376 = vrcp.pop %v1375
    %v1377 = vmul.f32 %v1375, %v1376
    %v1378 = vsub.f32 1.0, %v1377
    %v1379 = vmul.f32 %v1376, %v1378
    %v1380 = vadd.f32 %v1376, %v1379
    %vm1381 = vweird.f32 %v1375
    %vm1382 = vweird.f32 %v1376
    %vm1383 = vmor %vm1381, %vm1382
    %v1384 = vsel %vm1383, %v1376, %v1380
    %v1385 = vand.u32 2147483647, %v1375
    %vm1386 = vcmp.eq.f32.partialorder %v1385, 8.507059e+37
    %v1387 = vand.u32 %v1375, 2147483648
    %v1388 = vor.u32 1.1754944e-38, %v1387
    %v1389 = vsel %vm1386, %v1388, %v1384
    %v1390 = vmul.f32 1.0, %v1389
    %v1391 = vld [vmem:[#allocation4 + $0x3] sm:$0x1]
    %v1392 = vmul.f32 %v1390, %v1184
    %v1393 = vpack.c.bf16 %v1392, %v1392
    %v1395 = vsel %vm390, %v1393, 0
    %1397 = vmatpush.bf16.msra.mxu0 0
    %1398 = vmatpush.bf16.msra.mxu0 0
    %1399 = vmatpush.bf16.msra.mxu0 0
    %1400 = vmatpush.bf16.msra.mxu0 0
    %1401 = vmatpush.bf16.msra.mxu0 0
    %1402 = vmatpush.bf16.msra.mxu0 0
    %1403 = vmatpush.bf16.msra.mxu0 %v624
    %1404 = vmatpush.bf16.msra.mxu0 %v623
    %1405 = vmatmul.bf16.gmra.mxu0 %v1395
    %v1406 = vpop.f32.mrf.mxu0
    %v1407 = vadd.f32 0.0, %v1406
    %v1408 = vpop.f32.mrf.mxu0
    %1409 = vdwg.mxu0
    %v1410 = vadd.f32 %v1391, %v1407
    %v1411 = vtanh.pop %v1410
    %v1412 = vsub.f32 1.0, %v1371
    %v1413 = vmul.f32 %v1412, %v1184
    %v1414 = vmul.f32 %v1371, %v1411
    %v1415 = vadd.f32 %v1413, %v1414
    %v1416 = vpack.c.bf16 %v1415, %v1415
    %v1417 = vpack.c.bf16 %v1321, %v1321
    %v1419 = vsel %vm390, %v1417, 0
    %1421 = vmatpush.bf16.msra.mxu0 0
    %1422 = vmatpush.bf16.msra.mxu0 0
    %1423 = vmatpush.bf16.msra.mxu0 0
    %1424 = vmatpush.bf16.msra.mxu0 0
    %1425 = vmatpush.bf16.msra.mxu0 0
    %1426 = vmatpush.bf16.msra.mxu0 0
    %1427 = vmatpush.bf16.msra.mxu0 %v661
    %1428 = vmatpush.bf16.msra.mxu0 %v660
    %1429 = vmatmul.bf16.gmra.mxu0 %v1419
    %v1430 = vpop.f32.mrf.mxu0
    %v1431 = vadd.f32 0.0, %v1430
    %v1432 = vpop.f32.mrf.mxu0
    %1433 = vdwg.mxu0
    %v1435 = vsel %vm390, %v1416, 0
    %1437 = vmatpush.bf16.msra.mxu0 0
    %1438 = vmatpush.bf16.msra.mxu0 0
    %1439 = vmatpush.bf16.msra.mxu0 0
    %1440 = vmatpush.bf16.msra.mxu0 0
    %1441 = vmatpush.bf16.msra.mxu0 0
    %1442 = vmatpush.bf16.msra.mxu0 0
    %1443 = vmatpush.bf16.msra.mxu0 %v689
    %1444 = vmatpush.bf16.msra.mxu0 %v688
    %1445 = vmatmul.bf16.gmra.mxu0 %v1435
    %v1446 = vpop.f32.mrf.mxu0
    %v1447 = vadd.f32 %v1431, %v1446
    %v1448 = vpop.f32.mrf.mxu0
    %1449 = vdwg.mxu0
    %v1450 = vadd.f32 %v1447, %v512
    %1451 = vmatpush.bf16.msra.mxu0 0
    %1452 = vmatpush.bf16.msra.mxu0 0
    %1453 = vmatpush.bf16.msra.mxu0 0
    %1454 = vmatpush.bf16.msra.mxu0 0
    %1455 = vmatpush.bf16.msra.mxu0 0
    %1456 = vmatpush.bf16.msra.mxu0 0
    %1457 = vmatpush.bf16.msra.mxu0 %v718
    %1458 = vmatpush.bf16.msra.mxu0 %v717
    %1459 = vmatmul.bf16.gmra.mxu0 %v1419
    %v1460 = vpop.f32.mrf.mxu0
    %v1461 = vadd.f32 0.0, %v1460
    %v1462 = vpop.f32.mrf.mxu0
    %1463 = vdwg.mxu0
    %1464 = vmatpush.bf16.msra.mxu0 0
    %1465 = vmatpush.bf16.msra.mxu0 0
    %1466 = vmatpush.bf16.msra.mxu0 0
    %1467 = vmatpush.bf16.msra.mxu0 0
    %1468 = vmatpush.bf16.msra.mxu0 0
    %1469 = vmatpush.bf16.msra.mxu0 0
    %1470 = vmatpush.bf16.msra.mxu0 %v743
    %1471 = vmatpush.bf16.msra.mxu0 %v742
    %1472 = vmatmul.bf16.gmra.mxu0 %v1435
    %v1473 = vpop.f32.mrf.mxu0
    %v1474 = vadd.f32 %v1461, %v1473
    %v1475 = vpop.f32.mrf.mxu0
    %1476 = vdwg.mxu0
    %v1477 = vadd.f32 %v1474, %v513
    %v1478 = vxor.u32 %v1450, 2147483648
    %v1479 = vmul.f32 %v1478, 1.442695
    %v1480 = vpow.pop %v1479
    %v1481 = vadd.f32 %v1480, 1.0
    %v1482 = vrcp.pop %v1481
    %v1483 = vmul.f32 %v1481, %v1482
    %v1484 = vsub.f32 1.0, %v1483
    %v1485 = vmul.f32 %v1482, %v1484
    %v1486 = vadd.f32 %v1482, %v1485
    %vm1487 = vweird.f32 %v1481
    %vm1488 = vweird.f32 %v1482
    %vm1489 = vmor %vm1487, %vm1488
    %v1490 = vsel %vm1489, %v1482, %v1486
    %v1491 = vand.u32 2147483647, %v1481
    %vm1492 = vcmp.eq.f32.partialorder %v1491, 8.507059e+37
    %v1493 = vand.u32 %v1481, 2147483648
    %v1494 = vor.u32 1.1754944e-38, %v1493
    %v1495 = vsel %vm1492, %v1494, %v1490
    %v1496 = vmul.f32 1.0, %v1495
    %v1497 = vxor.u32 %v1477, 2147483648
    %v1498 = vmul.f32 %v1497, 1.442695
    %v1499 = vpow.pop %v1498
    %v1500 = vadd.f32 %v1499, 1.0
    %v1501 = vrcp.pop %v1500
    %v1502 = vmul.f32 %v1500, %v1501
    %v1503 = vsub.f32 1.0, %v1502
    %v1504 = vmul.f32 %v1501, %v1503
    %v1505 = vadd.f32 %v1501, %v1504
    %vm1506 = vweird.f32 %v1500
    %vm1507 = vweird.f32 %v1501
    %vm1508 = vmor %vm1506, %vm1507
    %v1509 = vsel %vm1508, %v1501, %v1505
    %v1510 = vand.u32 2147483647, %v1500
    %vm1511 = vcmp.eq.f32.partialorder %v1510, 8.507059e+37
    %v1512 = vand.u32 %v1500, 2147483648
    %v1513 = vor.u32 1.1754944e-38, %v1512
    %v1514 = vsel %vm1511, %v1513, %v1509
    %v1515 = vmul.f32 1.0, %v1514
    %v1516 = vmul.f32 %v1515, %v1321
    %v1517 = vpack.c.bf16 %v1516, %v1516
    %v1519 = vsel %vm390, %v1517, 0
    %1521 = vmatpush.bf16.msra.mxu0 0
    %1522 = vmatpush.bf16.msra.mxu0 0
    %1523 = vmatpush.bf16.msra.mxu0 0
    %1524 = vmatpush.bf16.msra.mxu0 0
    %1525 = vmatpush.bf16.msra.mxu0 0
    %1526 = vmatpush.bf16.msra.mxu0 0
    %1527 = vmatpush.bf16.msra.mxu0 %v809
    %1528 = vmatpush.bf16.msra.mxu0 %v808
    %1529 = vmatmul.bf16.gmra.mxu0 %v1519
    %v1530 = vpop.f32.mrf.mxu0
    %v1531 = vadd.f32 0.0, %v1530
    %v1532 = vpop.f32.mrf.mxu0
    %1533 = vdwg.mxu0
    %1534 = vmatpush.bf16.msra.mxu0 0
    %1535 = vmatpush.bf16.msra.mxu0 0
    %1536 = vmatpush.bf16.msra.mxu0 0
    %1537 = vmatpush.bf16.msra.mxu0 0
    %1538 = vmatpush.bf16.msra.mxu0 0
    %1539 = vmatpush.bf16.msra.mxu0 0
    %1540 = vmatpush.bf16.msra.mxu0 %v837
    %1541 = vmatpush.bf16.msra.mxu0 %v836
    %1542 = vmatmul.bf16.gmra.mxu0 %v1435
    %v1543 = vpop.f32.mrf.mxu0
    %v1544 = vadd.f32 %v1531, %v1543
    %v1545 = vpop.f32.mrf.mxu0
    %1546 = vdwg.mxu0
    %v1547 = vadd.f32 %v1544, %v514
    %v1548 = vtanh.pop %v1547
    %v1549 = vsub.f32 1.0, %v1496
    %v1550 = vmul.f32 %v1549, %v1321
    %v1551 = vmul.f32 %v1496, %v1548
    %v1552 = vadd.f32 %v1550, %v1551
    %1553 = vst.msk [vmem:[#allocation5 + $0x3] sm:$0x1] %vm859, %v1552
    %v1554 = vld [vmem:[#allocation2 + $0x4] sm:$0x1]
    %1555 = vmatpush.bf16.msra.mxu0 0
    %1556 = vmatpush.bf16.msra.mxu0 0
    %1557 = vmatpush.bf16.msra.mxu0 0
    %1558 = vmatpush.bf16.msra.mxu0 0
    %1559 = vmatpush.bf16.msra.mxu0 0
    %1560 = vmatpush.bf16.msra.mxu0 0
    %1561 = vmatpush.bf16.msra.mxu0 %v527
    %1562 = vmatpush.bf16.msra.mxu0 %v526
    %1563 = vmatmul.bf16.gmra.mxu0 %v1435
    %v1564 = vpop.f32.mrf.mxu0
    %v1565 = vadd.f32 0.0, %v1564
    %v1566 = vpop.f32.mrf.mxu0
    %1567 = vdwg.mxu0
    %v1568 = vadd.f32 %v1554, %v1565
    %v1569 = vld [vmem:[#allocation3 + $0x4] sm:$0x1]
    %1570 = vmatpush.bf16.msra.mxu0 0
    %1571 = vmatpush.bf16.msra.mxu0 0
    %1572 = vmatpush.bf16.msra.mxu0 0
    %1573 = vmatpush.bf16.msra.mxu0 0
    %1574 = vmatpush.bf16.msra.mxu0 0
    %1575 = vmatpush.bf16.msra.mxu0 0
    %1576 = vmatpush.bf16.msra.mxu0 %v557
    %1577 = vmatpush.bf16.msra.mxu0 %v556
    %1578 = vmatmul.bf16.gmra.mxu0 %v1435
    %v1579 = vpop.f32.mrf.mxu0
    %v1580 = vadd.f32 0.0, %v1579
    %v1581 = vpop.f32.mrf.mxu0
    %1582 = vdwg.mxu0
    %v1583 = vadd.f32 %v1569, %v1580
    %v1584 = vxor.u32 %v1568, 2147483648
    %v1585 = vmul.f32 %v1584, 1.442695
    %v1586 = vpow.pop %v1585
    %v1587 = vadd.f32 %v1586, 1.0
    %v1588 = vrcp.pop %v1587
    %v1589 = vmul.f32 %v1587, %v1588
    %v1590 = vsub.f32 1.0, %v1589
    %v1591 = vmul.f32 %v1588, %v1590
    %v1592 = vadd.f32 %v1588, %v1591
    %vm1593 = vweird.f32 %v1587
    %vm1594 = vweird.f32 %v1588
    %vm1595 = vmor %vm1593, %vm1594
    %v1596 = vsel %vm1595, %v1588, %v1592
    %v1597 = vand.u32 2147483647, %v1587
    %vm1598 = vcmp.eq.f32.partialorder %v1597, 8.507059e+37
    %v1599 = vand.u32 %v1587, 2147483648
    %v1600 = vor.u32 1.1754944e-38, %v1599
    %v1601 = vsel %vm1598, %v1600, %v1596
    %v1602 = vmul.f32 1.0, %v1601
    %v1603 = vxor.u32 %v1583, 2147483648
    %v1604 = vmul.f32 %v1603, 1.442695
    %v1605 = vpow.pop %v1604
    %v1606 = vadd.f32 %v1605, 1.0
    %v1607 = vrcp.pop %v1606
    %v1608 = vmul.f32 %v1606, %v1607
    %v1609 = vsub.f32 1.0, %v1608
    %v1610 = vmul.f32 %v1607, %v1609
    %v1611 = vadd.f32 %v1607, %v1610
    %vm1612 = vweird.f32 %v1606
    %vm1613 = vweird.f32 %v1607
    %vm1614 = vmor %vm1612, %vm1613
    %v1615 = vsel %vm1614, %v1607, %v1611
    %v1616 = vand.u32 2147483647, %v1606
    %vm1617 = vcmp.eq.f32.partialorder %v1616, 8.507059e+37
    %v1618 = vand.u32 %v1606, 2147483648
    %v1619 = vor.u32 1.1754944e-38, %v1618
    %v1620 = vsel %vm1617, %v1619, %v1615
    %v1621 = vmul.f32 1.0, %v1620
    %v1622 = vld [vmem:[#allocation4 + $0x4] sm:$0x1]
    %v1623 = vmul.f32 %v1621, %v1415
    %v1624 = vpack.c.bf16 %v1623, %v1623
    %v1626 = vsel %vm390, %v1624, 0
    %1628 = vmatpush.bf16.msra.mxu0 0
    %1629 = vmatpush.bf16.msra.mxu0 0
    %1630 = vmatpush.bf16.msra.mxu0 0
    %1631 = vmatpush.bf16.msra.mxu0 0
    %1632 = vmatpush.bf16.msra.mxu0 0
    %1633 = vmatpush.bf16.msra.mxu0 0
    %1634 = vmatpush.bf16.msra.mxu0 %v624
    %1635 = vmatpush.bf16.msra.mxu0 %v623
    %1636 = vmatmul.bf16.gmra.mxu0 %v1626
    %v1637 = vpop.f32.mrf.mxu0
    %v1638 = vadd.f32 0.0, %v1637
    %v1639 = vpop.f32.mrf.mxu0
    %1640 = vdwg.mxu0
    %v1641 = vadd.f32 %v1622, %v1638
    %v1642 = vtanh.pop %v1641
    %v1643 = vsub.f32 1.0, %v1602
    %v1644 = vmul.f32 %v1643, %v1415
    %v1645 = vmul.f32 %v1602, %v1642
    %v1646 = vadd.f32 %v1644, %v1645
    %v1647 = vpack.c.bf16 %v1646, %v1646
    %v1648 = vpack.c.bf16 %v1552, %v1552
    %v1650 = vsel %vm390, %v1648, 0
    %1652 = vmatpush.bf16.msra.mxu0 0
    %1653 = vmatpush.bf16.msra.mxu0 0
    %1654 = vmatpush.bf16.msra.mxu0 0
    %1655 = vmatpush.bf16.msra.mxu0 0
    %1656 = vmatpush.bf16.msra.mxu0 0
    %1657 = vmatpush.bf16.msra.mxu0 0
    %1658 = vmatpush.bf16.msra.mxu0 %v661
    %1659 = vmatpush.bf16.msra.mxu0 %v660
    %1660 = vmatmul.bf16.gmra.mxu0 %v1650
    %v1661 = vpop.f32.mrf.mxu0
    %v1662 = vadd.f32 0.0, %v1661
    %v1663 = vpop.f32.mrf.mxu0
    %1664 = vdwg.mxu0
    %v1666 = vsel %vm390, %v1647, 0
    %1668 = vmatpush.bf16.msra.mxu0 0
    %1669 = vmatpush.bf16.msra.mxu0 0
    %1670 = vmatpush.bf16.msra.mxu0 0
    %1671 = vmatpush.bf16.msra.mxu0 0
    %1672 = vmatpush.bf16.msra.mxu0 0
    %1673 = vmatpush.bf16.msra.mxu0 0
    %1674 = vmatpush.bf16.msra.mxu0 %v689
    %1675 = vmatpush.bf16.msra.mxu0 %v688
    %1676 = vmatmul.bf16.gmra.mxu0 %v1666
    %v1677 = vpop.f32.mrf.mxu0
    %v1678 = vadd.f32 %v1662, %v1677
    %v1679 = vpop.f32.mrf.mxu0
    %1680 = vdwg.mxu0
    %v1681 = vadd.f32 %v1678, %v512
    %1682 = vmatpush.bf16.msra.mxu0 0
    %1683 = vmatpush.bf16.msra.mxu0 0
    %1684 = vmatpush.bf16.msra.mxu0 0
    %1685 = vmatpush.bf16.msra.mxu0 0
    %1686 = vmatpush.bf16.msra.mxu0 0
    %1687 = vmatpush.bf16.msra.mxu0 0
    %1688 = vmatpush.bf16.msra.mxu0 %v718
    %1689 = vmatpush.bf16.msra.mxu0 %v717
    %1690 = vmatmul.bf16.gmra.mxu0 %v1650
    %v1691 = vpop.f32.mrf.mxu0
    %v1692 = vadd.f32 0.0, %v1691
    %v1693 = vpop.f32.mrf.mxu0
    %1694 = vdwg.mxu0
    %1695 = vmatpush.bf16.msra.mxu0 0
    %1696 = vmatpush.bf16.msra.mxu0 0
    %1697 = vmatpush.bf16.msra.mxu0 0
    %1698 = vmatpush.bf16.msra.mxu0 0
    %1699 = vmatpush.bf16.msra.mxu0 0
    %1700 = vmatpush.bf16.msra.mxu0 0
    %1701 = vmatpush.bf16.msra.mxu0 %v743
    %1702 = vmatpush.bf16.msra.mxu0 %v742
    %1703 = vmatmul.bf16.gmra.mxu0 %v1666
    %v1704 = vpop.f32.mrf.mxu0
    %v1705 = vadd.f32 %v1692, %v1704
    %v1706 = vpop.f32.mrf.mxu0
    %1707 = vdwg.mxu0
    %v1708 = vadd.f32 %v1705, %v513
    %v1709 = vxor.u32 %v1681, 2147483648
    %v1710 = vmul.f32 %v1709, 1.442695
    %v1711 = vpow.pop %v1710
    %v1712 = vadd.f32 %v1711, 1.0
    %v1713 = vrcp.pop %v1712
    %v1714 = vmul.f32 %v1712, %v1713
    %v1715 = vsub.f32 1.0, %v1714
    %v1716 = vmul.f32 %v1713, %v1715
    %v1717 = vadd.f32 %v1713, %v1716
    %vm1718 = vweird.f32 %v1712
    %vm1719 = vweird.f32 %v1713
    %vm1720 = vmor %vm1718, %vm1719
    %v1721 = vsel %vm1720, %v1713, %v1717
    %v1722 = vand.u32 2147483647, %v1712
    %vm1723 = vcmp.eq.f32.partialorder %v1722, 8.507059e+37
    %v1724 = vand.u32 %v1712, 2147483648
    %v1725 = vor.u32 1.1754944e-38, %v1724
    %v1726 = vsel %vm1723, %v1725, %v1721
    %v1727 = vmul.f32 1.0, %v1726
    %v1728 = vxor.u32 %v1708, 2147483648
    %v1729 = vmul.f32 %v1728, 1.442695
    %v1730 = vpow.pop %v1729
    %v1731 = vadd.f32 %v1730, 1.0
    %v1732 = vrcp.pop %v1731
    %v1733 = vmul.f32 %v1731, %v1732
    %v1734 = vsub.f32 1.0, %v1733
    %v1735 = vmul.f32 %v1732, %v1734
    %v1736 = vadd.f32 %v1732, %v1735
    %vm1737 = vweird.f32 %v1731
    %vm1738 = vweird.f32 %v1732
    %vm1739 = vmor %vm1737, %vm1738
    %v1740 = vsel %vm1739, %v1732, %v1736
    %v1741 = vand.u32 2147483647, %v1731
    %vm1742 = vcmp.eq.f32.partialorder %v1741, 8.507059e+37
    %v1743 = vand.u32 %v1731, 2147483648
    %v1744 = vor.u32 1.1754944e-38, %v1743
    %v1745 = vsel %vm1742, %v1744, %v1740
    %v1746 = vmul.f32 1.0, %v1745
    %v1747 = vmul.f32 %v1746, %v1552
    %v1748 = vpack.c.bf16 %v1747, %v1747
    %v1750 = vsel %vm390, %v1748, 0
    %1752 = vmatpush.bf16.msra.mxu0 0
    %1753 = vmatpush.bf16.msra.mxu0 0
    %1754 = vmatpush.bf16.msra.mxu0 0
    %1755 = vmatpush.bf16.msra.mxu0 0
    %1756 = vmatpush.bf16.msra.mxu0 0
    %1757 = vmatpush.bf16.msra.mxu0 0
    %1758 = vmatpush.bf16.msra.mxu0 %v809
    %1759 = vmatpush.bf16.msra.mxu0 %v808
    %1760 = vmatmul.bf16.gmra.mxu0 %v1750
    %v1761 = vpop.f32.mrf.mxu0
    %v1762 = vadd.f32 0.0, %v1761
    %v1763 = vpop.f32.mrf.mxu0
    %1764 = vdwg.mxu0
    %1765 = vmatpush.bf16.msra.mxu0 0
    %1766 = vmatpush.bf16.msra.mxu0 0
    %1767 = vmatpush.bf16.msra.mxu0 0
    %1768 = vmatpush.bf16.msra.mxu0 0
    %1769 = vmatpush.bf16.msra.mxu0 0
    %1770 = vmatpush.bf16.msra.mxu0 0
    %1771 = vmatpush.bf16.msra.mxu0 %v837
    %1772 = vmatpush.bf16.msra.mxu0 %v836
    %1773 = vmatmul.bf16.gmra.mxu0 %v1666
    %v1774 = vpop.f32.mrf.mxu0
    %v1775 = vadd.f32 %v1762, %v1774
    %v1776 = vpop.f32.mrf.mxu0
    %1777 = vdwg.mxu0
    %v1778 = vadd.f32 %v1775, %v514
    %v1779 = vtanh.pop %v1778
    %v1780 = vsub.f32 1.0, %v1727
    %v1781 = vmul.f32 %v1780, %v1552
    %v1782 = vmul.f32 %v1727, %v1779
    %v1783 = vadd.f32 %v1781, %v1782
    %1784 = vst.msk [vmem:[#allocation5 + $0x4] sm:$0x1] %vm859, %v1783
    %v1785 = vld [vmem:[#allocation2 + $0x5] sm:$0x1]
    %1786 = vmatpush.bf16.msra.mxu0 0
    %1787 = vmatpush.bf16.msra.mxu0 0
    %1788 = vmatpush.bf16.msra.mxu0 0
    %1789 = vmatpush.bf16.msra.mxu0 0
    %1790 = vmatpush.bf16.msra.mxu0 0
    %1791 = vmatpush.bf16.msra.mxu0 0
    %1792 = vmatpush.bf16.msra.mxu0 %v527
    %1793 = vmatpush.bf16.msra.mxu0 %v526
    %1794 = vmatmul.bf16.gmra.mxu0 %v1666
    %v1795 = vpop.f32.mrf.mxu0
    %v1796 = vadd.f32 0.0, %v1795
    %v1797 = vpop.f32.mrf.mxu0
    %1798 = vdwg.mxu0
    %v1799 = vadd.f32 %v1785, %v1796
    %v1800 = vld [vmem:[#allocation3 + $0x5] sm:$0x1]
    %1801 = vmatpush.bf16.msra.mxu0 0
    %1802 = vmatpush.bf16.msra.mxu0 0
    %1803 = vmatpush.bf16.msra.mxu0 0
    %1804 = vmatpush.bf16.msra.mxu0 0
    %1805 = vmatpush.bf16.msra.mxu0 0
    %1806 = vmatpush.bf16.msra.mxu0 0
    %1807 = vmatpush.bf16.msra.mxu0 %v557
    %1808 = vmatpush.bf16.msra.mxu0 %v556
    %1809 = vmatmul.bf16.gmra.mxu0 %v1666
    %v1810 = vpop.f32.mrf.mxu0
    %v1811 = vadd.f32 0.0, %v1810
    %v1812 = vpop.f32.mrf.mxu0
    %1813 = vdwg.mxu0
    %v1814 = vadd.f32 %v1800, %v1811
    %v1815 = vxor.u32 %v1799, 2147483648
    %v1816 = vmul.f32 %v1815, 1.442695
    %v1817 = vpow.pop %v1816
    %v1818 = vadd.f32 %v1817, 1.0
    %v1819 = vrcp.pop %v1818
    %v1820 = vmul.f32 %v1818, %v1819
    %v1821 = vsub.f32 1.0, %v1820
    %v1822 = vmul.f32 %v1819, %v1821
    %v1823 = vadd.f32 %v1819, %v1822
    %vm1824 = vweird.f32 %v1818
    %vm1825 = vweird.f32 %v1819
    %vm1826 = vmor %vm1824, %vm1825
    %v1827 = vsel %vm1826, %v1819, %v1823
    %v1828 = vand.u32 2147483647, %v1818
    %vm1829 = vcmp.eq.f32.partialorder %v1828, 8.507059e+37
    %v1830 = vand.u32 %v1818, 2147483648
    %v1831 = vor.u32 1.1754944e-38, %v1830
    %v1832 = vsel %vm1829, %v1831, %v1827
    %v1833 = vmul.f32 1.0, %v1832
    %v1834 = vxor.u32 %v1814, 2147483648
    %v1835 = vmul.f32 %v1834, 1.442695
    %v1836 = vpow.pop %v1835
    %v1837 = vadd.f32 %v1836, 1.0
    %v1838 = vrcp.pop %v1837
    %v1839 = vmul.f32 %v1837, %v1838
    %v1840 = vsub.f32 1.0, %v1839
    %v1841 = vmul.f32 %v1838, %v1840
    %v1842 = vadd.f32 %v1838, %v1841
    %vm1843 = vweird.f32 %v1837
    %vm1844 = vweird.f32 %v1838
    %vm1845 = vmor %vm1843, %vm1844
    %v1846 = vsel %vm1845, %v1838, %v1842
    %v1847 = vand.u32 2147483647, %v1837
    %vm1848 = vcmp.eq.f32.partialorder %v1847, 8.507059e+37
    %v1849 = vand.u32 %v1837, 2147483648
    %v1850 = vor.u32 1.1754944e-38, %v1849
    %v1851 = vsel %vm1848, %v1850, %v1846
    %v1852 = vmul.f32 1.0, %v1851
    %v1853 = vld [vmem:[#allocation4 + $0x5] sm:$0x1]
    %v1854 = vmul.f32 %v1852, %v1646
    %v1855 = vpack.c.bf16 %v1854, %v1854
    %v1857 = vsel %vm390, %v1855, 0
    %1859 = vmatpush.bf16.msra.mxu0 0
    %1860 = vmatpush.bf16.msra.mxu0 0
    %1861 = vmatpush.bf16.msra.mxu0 0
    %1862 = vmatpush.bf16.msra.mxu0 0
    %1863 = vmatpush.bf16.msra.mxu0 0
    %1864 = vmatpush.bf16.msra.mxu0 0
    %1865 = vmatpush.bf16.msra.mxu0 %v624
    %1866 = vmatpush.bf16.msra.mxu0 %v623
    %1867 = vmatmul.bf16.gmra.mxu0 %v1857
    %v1868 = vpop.f32.mrf.mxu0
    %v1869 = vadd.f32 0.0, %v1868
    %v1870 = vpop.f32.mrf.mxu0
    %1871 = vdwg.mxu0
    %v1872 = vadd.f32 %v1853, %v1869
    %v1873 = vtanh.pop %v1872
    %v1874 = vsub.f32 1.0, %v1833
    %v1875 = vmul.f32 %v1874, %v1646
    %v1876 = vmul.f32 %v1833, %v1873
    %v1877 = vadd.f32 %v1875, %v1876
    %v1878 = vpack.c.bf16 %v1877, %v1877
    %v1879 = vpack.c.bf16 %v1783, %v1783
    %v1881 = vsel %vm390, %v1879, 0
    %1883 = vmatpush.bf16.msra.mxu0 0
    %1884 = vmatpush.bf16.msra.mxu0 0
    %1885 = vmatpush.bf16.msra.mxu0 0
    %1886 = vmatpush.bf16.msra.mxu0 0
    %1887 = vmatpush.bf16.msra.mxu0 0
    %1888 = vmatpush.bf16.msra.mxu0 0
    %1889 = vmatpush.bf16.msra.mxu0 %v661
    %1890 = vmatpush.bf16.msra.mxu0 %v660
    %1891 = vmatmul.bf16.gmra.mxu0 %v1881
    %v1892 = vpop.f32.mrf.mxu0
    %v1893 = vadd.f32 0.0, %v1892
    %v1894 = vpop.f32.mrf.mxu0
    %1895 = vdwg.mxu0
    %v1897 = vsel %vm390, %v1878, 0
    %1899 = vmatpush.bf16.msra.mxu0 0
    %1900 = vmatpush.bf16.msra.mxu0 0
    %1901 = vmatpush.bf16.msra.mxu0 0
    %1902 = vmatpush.bf16.msra.mxu0 0
    %1903 = vmatpush.bf16.msra.mxu0 0
    %1904 = vmatpush.bf16.msra.mxu0 0
    %1905 = vmatpush.bf16.msra.mxu0 %v689
    %1906 = vmatpush.bf16.msra.mxu0 %v688
    %1907 = vmatmul.bf16.gmra.mxu0 %v1897
    %v1908 = vpop.f32.mrf.mxu0
    %v1909 = vadd.f32 %v1893, %v1908
    %v1910 = vpop.f32.mrf.mxu0
    %1911 = vdwg.mxu0
    %v1912 = vadd.f32 %v1909, %v512
    %1913 = vmatpush.bf16.msra.mxu0 0
    %1914 = vmatpush.bf16.msra.mxu0 0
    %1915 = vmatpush.bf16.msra.mxu0 0
    %1916 = vmatpush.bf16.msra.mxu0 0
    %1917 = vmatpush.bf16.msra.mxu0 0
    %1918 = vmatpush.bf16.msra.mxu0 0
    %1919 = vmatpush.bf16.msra.mxu0 %v718
    %1920 = vmatpush.bf16.msra.mxu0 %v717
    %1921 = vmatmul.bf16.gmra.mxu0 %v1881
    %v1922 = vpop.f32.mrf.mxu0
    %v1923 = vadd.f32 0.0, %v1922
    %v1924 = vpop.f32.mrf.mxu0
    %1925 = vdwg.mxu0
    %1926 = vmatpush.bf16.msra.mxu0 0
    %1927 = vmatpush.bf16.msra.mxu0 0
    %1928 = vmatpush.bf16.msra.mxu0 0
    %1929 = vmatpush.bf16.msra.mxu0 0
    %1930 = vmatpush.bf16.msra.mxu0 0
    %1931 = vmatpush.bf16.msra.mxu0 0
    %1932 = vmatpush.bf16.msra.mxu0 %v743
    %1933 = vmatpush.bf16.msra.mxu0 %v742
    %1934 = vmatmul.bf16.gmra.mxu0 %v1897
    %v1935 = vpop.f32.mrf.mxu0
    %v1936 = vadd.f32 %v1923, %v1935
    %v1937 = vpop.f32.mrf.mxu0
    %1938 = vdwg.mxu0
    %v1939 = vadd.f32 %v1936, %v513
    %v1940 = vxor.u32 %v1912, 2147483648
    %v1941 = vmul.f32 %v1940, 1.442695
    %v1942 = vpow.pop %v1941
    %v1943 = vadd.f32 %v1942, 1.0
    %v1944 = vrcp.pop %v1943
    %v1945 = vmul.f32 %v1943, %v1944
    %v1946 = vsub.f32 1.0, %v1945
    %v1947 = vmul.f32 %v1944, %v1946
    %v1948 = vadd.f32 %v1944, %v1947
    %vm1949 = vweird.f32 %v1943
    %vm1950 = vweird.f32 %v1944
    %vm1951 = vmor %vm1949, %vm1950
    %v1952 = vsel %vm1951, %v1944, %v1948
    %v1953 = vand.u32 2147483647, %v1943
    %vm1954 = vcmp.eq.f32.partialorder %v1953, 8.507059e+37
    %v1955 = vand.u32 %v1943, 2147483648
    %v1956 = vor.u32 1.1754944e-38, %v1955
    %v1957 = vsel %vm1954, %v1956, %v1952
    %v1958 = vmul.f32 1.0, %v1957
    %v1959 = vxor.u32 %v1939, 2147483648
    %v1960 = vmul.f32 %v1959, 1.442695
    %v1961 = vpow.pop %v1960
    %v1962 = vadd.f32 %v1961, 1.0
    %v1963 = vrcp.pop %v1962
    %v1964 = vmul.f32 %v1962, %v1963
    %v1965 = vsub.f32 1.0, %v1964
    %v1966 = vmul.f32 %v1963, %v1965
    %v1967 = vadd.f32 %v1963, %v1966
    %vm1968 = vweird.f32 %v1962
    %vm1969 = vweird.f32 %v1963
    %vm1970 = vmor %vm1968, %vm1969
    %v1971 = vsel %vm1970, %v1963, %v1967
    %v1972 = vand.u32 2147483647, %v1962
    %vm1973 = vcmp.eq.f32.partialorder %v1972, 8.507059e+37
    %v1974 = vand.u32 %v1962, 2147483648
    %v1975 = vor.u32 1.1754944e-38, %v1974
    %v1976 = vsel %vm1973, %v1975, %v1971
    %v1977 = vmul.f32 1.0, %v1976
    %v1978 = vmul.f32 %v1977, %v1783
    %v1979 = vpack.c.bf16 %v1978, %v1978
    %v1981 = vsel %vm390, %v1979, 0
    %1983 = vmatpush.bf16.msra.mxu0 0
    %1984 = vmatpush.bf16.msra.mxu0 0
    %1985 = vmatpush.bf16.msra.mxu0 0
    %1986 = vmatpush.bf16.msra.mxu0 0
    %1987 = vmatpush.bf16.msra.mxu0 0
    %1988 = vmatpush.bf16.msra.mxu0 0
    %1989 = vmatpush.bf16.msra.mxu0 %v809
    %1990 = vmatpush.bf16.msra.mxu0 %v808
    %1991 = vmatmul.bf16.gmra.mxu0 %v1981
    %v1992 = vpop.f32.mrf.mxu0
    %v1993 = vadd.f32 0.0, %v1992
    %v1994 = vpop.f32.mrf.mxu0
    %1995 = vdwg.mxu0
    %1996 = vmatpush.bf16.msra.mxu0 0
    %1997 = vmatpush.bf16.msra.mxu0 0
    %1998 = vmatpush.bf16.msra.mxu0 0
    %1999 = vmatpush.bf16.msra.mxu0 0
    %2000 = vmatpush.bf16.msra.mxu0 0
    %2001 = vmatpush.bf16.msra.mxu0 0
    %2002 = vmatpush.bf16.msra.mxu0 %v837
    %2003 = vmatpush.bf16.msra.mxu0 %v836
    %2004 = vmatmul.bf16.gmra.mxu0 %v1897
    %v2005 = vpop.f32.mrf.mxu0
    %v2006 = vadd.f32 %v1993, %v2005
    %v2007 = vpop.f32.mrf.mxu0
    %2008 = vdwg.mxu0
    %v2009 = vadd.f32 %v2006, %v514
    %v2010 = vtanh.pop %v2009
    %v2011 = vsub.f32 1.0, %v1958
    %v2012 = vmul.f32 %v2011, %v1783
    %v2013 = vmul.f32 %v1958, %v2010
    %v2014 = vadd.f32 %v2012, %v2013
    %2015 = vst.msk [vmem:[#allocation5 + $0x5] sm:$0x1] %vm859, %v2014
    %v2016 = vld [vmem:[#allocation2 + $0x6] sm:$0x1]
    %2017 = vmatpush.bf16.msra.mxu0 0
    %2018 = vmatpush.bf16.msra.mxu0 0
    %2019 = vmatpush.bf16.msra.mxu0 0
    %2020 = vmatpush.bf16.msra.mxu0 0
    %2021 = vmatpush.bf16.msra.mxu0 0
    %2022 = vmatpush.bf16.msra.mxu0 0
    %2023 = vmatpush.bf16.msra.mxu0 %v527
    %2024 = vmatpush.bf16.msra.mxu0 %v526
    %2025 = vmatmul.bf16.gmra.mxu0 %v1897
    %v2026 = vpop.f32.mrf.mxu0
    %v2027 = vadd.f32 0.0, %v2026
    %v2028 = vpop.f32.mrf.mxu0
    %2029 = vdwg.mxu0
    %v2030 = vadd.f32 %v2016, %v2027
    %v2031 = vld [vmem:[#allocation3 + $0x6] sm:$0x1]
    %2032 = vmatpush.bf16.msra.mxu0 0
    %2033 = vmatpush.bf16.msra.mxu0 0
    %2034 = vmatpush.bf16.msra.mxu0 0
    %2035 = vmatpush.bf16.msra.mxu0 0
    %2036 = vmatpush.bf16.msra.mxu0 0
    %2037 = vmatpush.bf16.msra.mxu0 0
    %2038 = vmatpush.bf16.msra.mxu0 %v557
    %2039 = vmatpush.bf16.msra.mxu0 %v556
    %2040 = vmatmul.bf16.gmra.mxu0 %v1897
    %v2041 = vpop.f32.mrf.mxu0
    %v2042 = vadd.f32 0.0, %v2041
    %v2043 = vpop.f32.mrf.mxu0
    %2044 = vdwg.mxu0
    %v2045 = vadd.f32 %v2031, %v2042
    %v2046 = vxor.u32 %v2030, 2147483648
    %v2047 = vmul.f32 %v2046, 1.442695
    %v2048 = vpow.pop %v2047
    %v2049 = vadd.f32 %v2048, 1.0
    %v2050 = vrcp.pop %v2049
    %v2051 = vmul.f32 %v2049, %v2050
    %v2052 = vsub.f32 1.0, %v2051
    %v2053 = vmul.f32 %v2050, %v2052
    %v2054 = vadd.f32 %v2050, %v2053
    %vm2055 = vweird.f32 %v2049
    %vm2056 = vweird.f32 %v2050
    %vm2057 = vmor %vm2055, %vm2056
    %v2058 = vsel %vm2057, %v2050, %v2054
    %v2059 = vand.u32 2147483647, %v2049
    %vm2060 = vcmp.eq.f32.partialorder %v2059, 8.507059e+37
    %v2061 = vand.u32 %v2049, 2147483648
    %v2062 = vor.u32 1.1754944e-38, %v2061
    %v2063 = vsel %vm2060, %v2062, %v2058
    %v2064 = vmul.f32 1.0, %v2063
    %v2065 = vxor.u32 %v2045, 2147483648
    %v2066 = vmul.f32 %v2065, 1.442695
    %v2067 = vpow.pop %v2066
    %v2068 = vadd.f32 %v2067, 1.0
    %v2069 = vrcp.pop %v2068
    %v2070 = vmul.f32 %v2068, %v2069
    %v2071 = vsub.f32 1.0, %v2070
    %v2072 = vmul.f32 %v2069, %v2071
    %v2073 = vadd.f32 %v2069, %v2072
    %vm2074 = vweird.f32 %v2068
    %vm2075 = vweird.f32 %v2069
    %vm2076 = vmor %vm2074, %vm2075
    %v2077 = vsel %vm2076, %v2069, %v2073
    %v2078 = vand.u32 2147483647, %v2068
    %vm2079 = vcmp.eq.f32.partialorder %v2078, 8.507059e+37
    %v2080 = vand.u32 %v2068, 2147483648
    %v2081 = vor.u32 1.1754944e-38, %v2080
    %v2082 = vsel %vm2079, %v2081, %v2077
    %v2083 = vmul.f32 1.0, %v2082
    %v2084 = vld [vmem:[#allocation4 + $0x6] sm:$0x1]
    %v2085 = vmul.f32 %v2083, %v1877
    %v2086 = vpack.c.bf16 %v2085, %v2085
    %v2088 = vsel %vm390, %v2086, 0
    %2090 = vmatpush.bf16.msra.mxu0 0
    %2091 = vmatpush.bf16.msra.mxu0 0
    %2092 = vmatpush.bf16.msra.mxu0 0
    %2093 = vmatpush.bf16.msra.mxu0 0
    %2094 = vmatpush.bf16.msra.mxu0 0
    %2095 = vmatpush.bf16.msra.mxu0 0
    %2096 = vmatpush.bf16.msra.mxu0 %v624
    %2097 = vmatpush.bf16.msra.mxu0 %v623
    %2098 = vmatmul.bf16.gmra.mxu0 %v2088
    %v2099 = vpop.f32.mrf.mxu0
    %v2100 = vadd.f32 0.0, %v2099
    %v2101 = vpop.f32.mrf.mxu0
    %2102 = vdwg.mxu0
    %v2103 = vadd.f32 %v2084, %v2100
    %v2104 = vtanh.pop %v2103
    %v2105 = vsub.f32 1.0, %v2064
    %v2106 = vmul.f32 %v2105, %v1877
    %v2107 = vmul.f32 %v2064, %v2104
    %v2108 = vadd.f32 %v2106, %v2107
    %v2109 = vpack.c.bf16 %v2108, %v2108
    %v2110 = vpack.c.bf16 %v2014, %v2014
    %v2112 = vsel %vm390, %v2110, 0
    %2114 = vmatpush.bf16.msra.mxu0 0
    %2115 = vmatpush.bf16.msra.mxu0 0
    %2116 = vmatpush.bf16.msra.mxu0 0
    %2117 = vmatpush.bf16.msra.mxu0 0
    %2118 = vmatpush.bf16.msra.mxu0 0
    %2119 = vmatpush.bf16.msra.mxu0 0
    %2120 = vmatpush.bf16.msra.mxu0 %v661
    %2121 = vmatpush.bf16.msra.mxu0 %v660
    %2122 = vmatmul.bf16.gmra.mxu0 %v2112
    %v2123 = vpop.f32.mrf.mxu0
    %v2124 = vadd.f32 0.0, %v2123
    %v2125 = vpop.f32.mrf.mxu0
    %2126 = vdwg.mxu0
    %v2128 = vsel %vm390, %v2109, 0
    %2130 = vmatpush.bf16.msra.mxu0 0
    %2131 = vmatpush.bf16.msra.mxu0 0
    %2132 = vmatpush.bf16.msra.mxu0 0
    %2133 = vmatpush.bf16.msra.mxu0 0
    %2134 = vmatpush.bf16.msra.mxu0 0
    %2135 = vmatpush.bf16.msra.mxu0 0
    %2136 = vmatpush.bf16.msra.mxu0 %v689
    %2137 = vmatpush.bf16.msra.mxu0 %v688
    %2138 = vmatmul.bf16.gmra.mxu0 %v2128
    %v2139 = vpop.f32.mrf.mxu0
    %v2140 = vadd.f32 %v2124, %v2139
    %v2141 = vpop.f32.mrf.mxu0
    %2142 = vdwg.mxu0
    %v2143 = vadd.f32 %v2140, %v512
    %2144 = vmatpush.bf16.msra.mxu0 0
    %2145 = vmatpush.bf16.msra.mxu0 0
    %2146 = vmatpush.bf16.msra.mxu0 0
    %2147 = vmatpush.bf16.msra.mxu0 0
    %2148 = vmatpush.bf16.msra.mxu0 0
    %2149 = vmatpush.bf16.msra.mxu0 0
    %2150 = vmatpush.bf16.msra.mxu0 %v718
    %2151 = vmatpush.bf16.msra.mxu0 %v717
    %2152 = vmatmul.bf16.gmra.mxu0 %v2112
    %v2153 = vpop.f32.mrf.mxu0
    %v2154 = vadd.f32 0.0, %v2153
    %v2155 = vpop.f32.mrf.mxu0
    %2156 = vdwg.mxu0
    %2157 = vmatpush.bf16.msra.mxu0 0
    %2158 = vmatpush.bf16.msra.mxu0 0
    %2159 = vmatpush.bf16.msra.mxu0 0
    %2160 = vmatpush.bf16.msra.mxu0 0
    %2161 = vmatpush.bf16.msra.mxu0 0
    %2162 = vmatpush.bf16.msra.mxu0 0
    %2163 = vmatpush.bf16.msra.mxu0 %v743
    %2164 = vmatpush.bf16.msra.mxu0 %v742
    %2165 = vmatmul.bf16.gmra.mxu0 %v2128
    %v2166 = vpop.f32.mrf.mxu0
    %v2167 = vadd.f32 %v2154, %v2166
    %v2168 = vpop.f32.mrf.mxu0
    %2169 = vdwg.mxu0
    %v2170 = vadd.f32 %v2167, %v513
    %v2171 = vxor.u32 %v2143, 2147483648
    %v2172 = vmul.f32 %v2171, 1.442695
    %v2173 = vpow.pop %v2172
    %v2174 = vadd.f32 %v2173, 1.0
    %v2175 = vrcp.pop %v2174
    %v2176 = vmul.f32 %v2174, %v2175
    %v2177 = vsub.f32 1.0, %v2176
    %v2178 = vmul.f32 %v2175, %v2177
    %v2179 = vadd.f32 %v2175, %v2178
    %vm2180 = vweird.f32 %v2174
    %vm2181 = vweird.f32 %v2175
    %vm2182 = vmor %vm2180, %vm2181
    %v2183 = vsel %vm2182, %v2175, %v2179
    %v2184 = vand.u32 2147483647, %v2174
    %vm2185 = vcmp.eq.f32.partialorder %v2184, 8.507059e+37
    %v2186 = vand.u32 %v2174, 2147483648
    %v2187 = vor.u32 1.1754944e-38, %v2186
    %v2188 = vsel %vm2185, %v2187, %v2183
    %v2189 = vmul.f32 1.0, %v2188
    %v2190 = vxor.u32 %v2170, 2147483648
    %v2191 = vmul.f32 %v2190, 1.442695
    %v2192 = vpow.pop %v2191
    %v2193 = vadd.f32 %v2192, 1.0
    %v2194 = vrcp.pop %v2193
    %v2195 = vmul.f32 %v2193, %v2194
    %v2196 = vsub.f32 1.0, %v2195
    %v2197 = vmul.f32 %v2194, %v2196
    %v2198 = vadd.f32 %v2194, %v2197
    %vm2199 = vweird.f32 %v2193
    %vm2200 = vweird.f32 %v2194
    %vm2201 = vmor %vm2199, %vm2200
    %v2202 = vsel %vm2201, %v2194, %v2198
    %v2203 = vand.u32 2147483647, %v2193
    %vm2204 = vcmp.eq.f32.partialorder %v2203, 8.507059e+37
    %v2205 = vand.u32 %v2193, 2147483648
    %v2206 = vor.u32 1.1754944e-38, %v2205
    %v2207 = vsel %vm2204, %v2206, %v2202
    %v2208 = vmul.f32 1.0, %v2207
    %v2209 = vmul.f32 %v2208, %v2014
    %v2210 = vpack.c.bf16 %v2209, %v2209
    %v2212 = vsel %vm390, %v2210, 0
    %2214 = vmatpush.bf16.msra.mxu0 0
    %2215 = vmatpush.bf16.msra.mxu0 0
    %2216 = vmatpush.bf16.msra.mxu0 0
    %2217 = vmatpush.bf16.msra.mxu0 0
    %2218 = vmatpush.bf16.msra.mxu0 0
    %2219 = vmatpush.bf16.msra.mxu0 0
    %2220 = vmatpush.bf16.msra.mxu0 %v809
    %2221 = vmatpush.bf16.msra.mxu0 %v808
    %2222 = vmatmul.bf16.gmra.mxu0 %v2212
    %v2223 = vpop.f32.mrf.mxu0
    %v2224 = vadd.f32 0.0, %v2223
    %v2225 = vpop.f32.mrf.mxu0
    %2226 = vdwg.mxu0
    %2227 = vmatpush.bf16.msra.mxu0 0
    %2228 = vmatpush.bf16.msra.mxu0 0
    %2229 = vmatpush.bf16.msra.mxu0 0
    %2230 = vmatpush.bf16.msra.mxu0 0
    %2231 = vmatpush.bf16.msra.mxu0 0
    %2232 = vmatpush.bf16.msra.mxu0 0
    %2233 = vmatpush.bf16.msra.mxu0 %v837
    %2234 = vmatpush.bf16.msra.mxu0 %v836
    %2235 = vmatmul.bf16.gmra.mxu0 %v2128
    %v2236 = vpop.f32.mrf.mxu0
    %v2237 = vadd.f32 %v2224, %v2236
    %v2238 = vpop.f32.mrf.mxu0
    %2239 = vdwg.mxu0
    %v2240 = vadd.f32 %v2237, %v514
    %v2241 = vtanh.pop %v2240
    %v2242 = vsub.f32 1.0, %v2189
    %v2243 = vmul.f32 %v2242, %v2014
    %v2244 = vmul.f32 %v2189, %v2241
    %v2245 = vadd.f32 %v2243, %v2244
    %2246 = vst.msk [vmem:[#allocation5 + $0x6] sm:$0x1] %vm859, %v2245
    %v2247 = vld [vmem:[#allocation2 + $0x7] sm:$0x1]
    %2248 = vmatpush.bf16.msra.mxu0 0
    %2249 = vmatpush.bf16.msra.mxu0 0
    %2250 = vmatpush.bf16.msra.mxu0 0
    %2251 = vmatpush.bf16.msra.mxu0 0
    %2252 = vmatpush.bf16.msra.mxu0 0
    %2253 = vmatpush.bf16.msra.mxu0 0
    %2254 = vmatpush.bf16.msra.mxu0 %v527
    %2255 = vmatpush.bf16.msra.mxu0 %v526
    %2256 = vmatmul.bf16.gmra.mxu0 %v2128
    %v2257 = vpop.f32.mrf.mxu0
    %v2258 = vadd.f32 0.0, %v2257
    %v2259 = vpop.f32.mrf.mxu0
    %2260 = vdwg.mxu0
    %v2261 = vadd.f32 %v2247, %v2258
    %v2262 = vld [vmem:[#allocation3 + $0x7] sm:$0x1]
    %2263 = vmatpush.bf16.msra.mxu0 0
    %2264 = vmatpush.bf16.msra.mxu0 0
    %2265 = vmatpush.bf16.msra.mxu0 0
    %2266 = vmatpush.bf16.msra.mxu0 0
    %2267 = vmatpush.bf16.msra.mxu0 0
    %2268 = vmatpush.bf16.msra.mxu0 0
    %2269 = vmatpush.bf16.msra.mxu0 %v557
    %2270 = vmatpush.bf16.msra.mxu0 %v556
    %2271 = vmatmul.bf16.gmra.mxu0 %v2128
    %v2272 = vpop.f32.mrf.mxu0
    %v2273 = vadd.f32 0.0, %v2272
    %v2274 = vpop.f32.mrf.mxu0
    %2275 = vdwg.mxu0
    %v2276 = vadd.f32 %v2262, %v2273
    %v2277 = vxor.u32 %v2261, 2147483648
    %v2278 = vmul.f32 %v2277, 1.442695
    %v2279 = vpow.pop %v2278
    %v2280 = vadd.f32 %v2279, 1.0
    %v2281 = vrcp.pop %v2280
    %v2282 = vmul.f32 %v2280, %v2281
    %v2283 = vsub.f32 1.0, %v2282
    %v2284 = vmul.f32 %v2281, %v2283
    %v2285 = vadd.f32 %v2281, %v2284
    %vm2286 = vweird.f32 %v2280
    %vm2287 = vweird.f32 %v2281
    %vm2288 = vmor %vm2286, %vm2287
    %v2289 = vsel %vm2288, %v2281, %v2285
    %v2290 = vand.u32 2147483647, %v2280
    %vm2291 = vcmp.eq.f32.partialorder %v2290, 8.507059e+37
    %v2292 = vand.u32 %v2280, 2147483648
    %v2293 = vor.u32 1.1754944e-38, %v2292
    %v2294 = vsel %vm2291, %v2293, %v2289
    %v2295 = vmul.f32 1.0, %v2294
    %v2296 = vxor.u32 %v2276, 2147483648
    %v2297 = vmul.f32 %v2296, 1.442695
    %v2298 = vpow.pop %v2297
    %v2299 = vadd.f32 %v2298, 1.0
    %v2300 = vrcp.pop %v2299
    %v2301 = vmul.f32 %v2299, %v2300
    %v2302 = vsub.f32 1.0, %v2301
    %v2303 = vmul.f32 %v2300, %v2302
    %v2304 = vadd.f32 %v2300, %v2303
    %vm2305 = vweird.f32 %v2299
    %vm2306 = vweird.f32 %v2300
    %vm2307 = vmor %vm2305, %vm2306
    %v2308 = vsel %vm2307, %v2300, %v2304
    %v2309 = vand.u32 2147483647, %v2299
    %vm2310 = vcmp.eq.f32.partialorder %v2309, 8.507059e+37
    %v2311 = vand.u32 %v2299, 2147483648
    %v2312 = vor.u32 1.1754944e-38, %v2311
    %v2313 = vsel %vm2310, %v2312, %v2308
    %v2314 = vmul.f32 1.0, %v2313
    %v2315 = vld [vmem:[#allocation4 + $0x7] sm:$0x1]
    %v2316 = vmul.f32 %v2314, %v2108
    %v2317 = vpack.c.bf16 %v2316, %v2316
    %v2319 = vsel %vm390, %v2317, 0
    %2321 = vmatpush.bf16.msra.mxu0 0
    %2322 = vmatpush.bf16.msra.mxu0 0
    %2323 = vmatpush.bf16.msra.mxu0 0
    %2324 = vmatpush.bf16.msra.mxu0 0
    %2325 = vmatpush.bf16.msra.mxu0 0
    %2326 = vmatpush.bf16.msra.mxu0 0
    %2327 = vmatpush.bf16.msra.mxu0 %v624
    %2328 = vmatpush.bf16.msra.mxu0 %v623
    %2329 = vmatmul.bf16.gmra.mxu0 %v2319
    %v2330 = vpop.f32.mrf.mxu0
    %v2331 = vadd.f32 0.0, %v2330
    %v2332 = vpop.f32.mrf.mxu0
    %2333 = vdwg.mxu0
    %v2334 = vadd.f32 %v2315, %v2331
    %v2335 = vtanh.pop %v2334
    %v2336 = vsub.f32 1.0, %v2295
    %v2337 = vmul.f32 %v2336, %v2108
    %v2338 = vmul.f32 %v2295, %v2335
    %v2339 = vadd.f32 %v2337, %v2338
    %v2340 = vpack.c.bf16 %v2339, %v2339
    %v2341 = vpack.c.bf16 %v2245, %v2245
    %v2343 = vsel %vm390, %v2341, 0
    %2345 = vmatpush.bf16.msra.mxu0 0
    %2346 = vmatpush.bf16.msra.mxu0 0
    %2347 = vmatpush.bf16.msra.mxu0 0
    %2348 = vmatpush.bf16.msra.mxu0 0
    %2349 = vmatpush.bf16.msra.mxu0 0
    %2350 = vmatpush.bf16.msra.mxu0 0
    %2351 = vmatpush.bf16.msra.mxu0 %v661
    %2352 = vmatpush.bf16.msra.mxu0 %v660
    %2353 = vmatmul.bf16.gmra.mxu0 %v2343
    %v2354 = vpop.f32.mrf.mxu0
    %v2355 = vadd.f32 0.0, %v2354
    %v2356 = vpop.f32.mrf.mxu0
    %2357 = vdwg.mxu0
    %v2359 = vsel %vm390, %v2340, 0
    %2361 = vmatpush.bf16.msra.mxu0 0
    %2362 = vmatpush.bf16.msra.mxu0 0
    %2363 = vmatpush.bf16.msra.mxu0 0
    %2364 = vmatpush.bf16.msra.mxu0 0
    %2365 = vmatpush.bf16.msra.mxu0 0
    %2366 = vmatpush.bf16.msra.mxu0 0
    %2367 = vmatpush.bf16.msra.mxu0 %v689
    %2368 = vmatpush.bf16.msra.mxu0 %v688
    %2369 = vmatmul.bf16.gmra.mxu0 %v2359
    %v2370 = vpop.f32.mrf.mxu0
    %v2371 = vadd.f32 %v2355, %v2370
    %v2372 = vpop.f32.mrf.mxu0
    %2373 = vdwg.mxu0
    %v2374 = vadd.f32 %v2371, %v512
    %2375 = vmatpush.bf16.msra.mxu0 0
    %2376 = vmatpush.bf16.msra.mxu0 0
    %2377 = vmatpush.bf16.msra.mxu0 0
    %2378 = vmatpush.bf16.msra.mxu0 0
    %2379 = vmatpush.bf16.msra.mxu0 0
    %2380 = vmatpush.bf16.msra.mxu0 0
    %2381 = vmatpush.bf16.msra.mxu0 %v718
    %2382 = vmatpush.bf16.msra.mxu0 %v717
    %2383 = vmatmul.bf16.gmra.mxu0 %v2343
    %v2384 = vpop.f32.mrf.mxu0
    %v2385 = vadd.f32 0.0, %v2384
    %v2386 = vpop.f32.mrf.mxu0
    %2387 = vdwg.mxu0
    %2388 = vmatpush.bf16.msra.mxu0 0
    %2389 = vmatpush.bf16.msra.mxu0 0
    %2390 = vmatpush.bf16.msra.mxu0 0
    %2391 = vmatpush.bf16.msra.mxu0 0
    %2392 = vmatpush.bf16.msra.mxu0 0
    %2393 = vmatpush.bf16.msra.mxu0 0
    %2394 = vmatpush.bf16.msra.mxu0 %v743
    %2395 = vmatpush.bf16.msra.mxu0 %v742
    %2396 = vmatmul.bf16.gmra.mxu0 %v2359
    %v2397 = vpop.f32.mrf.mxu0
    %v2398 = vadd.f32 %v2385, %v2397
    %v2399 = vpop.f32.mrf.mxu0
    %2400 = vdwg.mxu0
    %v2401 = vadd.f32 %v2398, %v513
    %v2402 = vxor.u32 %v2374, 2147483648
    %v2403 = vmul.f32 %v2402, 1.442695
    %v2404 = vpow.pop %v2403
    %v2405 = vadd.f32 %v2404, 1.0
    %v2406 = vrcp.pop %v2405
    %v2407 = vmul.f32 %v2405, %v2406
    %v2408 = vsub.f32 1.0, %v2407
    %v2409 = vmul.f32 %v2406, %v2408
    %v2410 = vadd.f32 %v2406, %v2409
    %vm2411 = vweird.f32 %v2405
    %vm2412 = vweird.f32 %v2406
    %vm2413 = vmor %vm2411, %vm2412
    %v2414 = vsel %vm2413, %v2406, %v2410
    %v2415 = vand.u32 2147483647, %v2405
    %vm2416 = vcmp.eq.f32.partialorder %v2415, 8.507059e+37
    %v2417 = vand.u32 %v2405, 2147483648
    %v2418 = vor.u32 1.1754944e-38, %v2417
    %v2419 = vsel %vm2416, %v2418, %v2414
    %v2420 = vmul.f32 1.0, %v2419
    %v2421 = vxor.u32 %v2401, 2147483648
    %v2422 = vmul.f32 %v2421, 1.442695
    %v2423 = vpow.pop %v2422
    %v2424 = vadd.f32 %v2423, 1.0
    %v2425 = vrcp.pop %v2424
    %v2426 = vmul.f32 %v2424, %v2425
    %v2427 = vsub.f32 1.0, %v2426
    %v2428 = vmul.f32 %v2425, %v2427
    %v2429 = vadd.f32 %v2425, %v2428
    %vm2430 = vweird.f32 %v2424
    %vm2431 = vweird.f32 %v2425
    %vm2432 = vmor %vm2430, %vm2431
    %v2433 = vsel %vm2432, %v2425, %v2429
    %v2434 = vand.u32 2147483647, %v2424
    %vm2435 = vcmp.eq.f32.partialorder %v2434, 8.507059e+37
    %v2436 = vand.u32 %v2424, 2147483648
    %v2437 = vor.u32 1.1754944e-38, %v2436
    %v2438 = vsel %vm2435, %v2437, %v2433
    %v2439 = vmul.f32 1.0, %v2438
    %v2440 = vmul.f32 %v2439, %v2245
    %v2441 = vpack.c.bf16 %v2440, %v2440
    %v2443 = vsel %vm390, %v2441, 0
    %2445 = vmatpush.bf16.msra.mxu0 0
    %2446 = vmatpush.bf16.msra.mxu0 0
    %2447 = vmatpush.bf16.msra.mxu0 0
    %2448 = vmatpush.bf16.msra.mxu0 0
    %2449 = vmatpush.bf16.msra.mxu0 0
    %2450 = vmatpush.bf16.msra.mxu0 0
    %2451 = vmatpush.bf16.msra.mxu0 %v809
    %2452 = vmatpush.bf16.msra.mxu0 %v808
    %2453 = vmatmul.bf16.gmra.mxu0 %v2443
    %v2454 = vpop.f32.mrf.mxu0
    %v2455 = vadd.f32 0.0, %v2454
    %v2456 = vpop.f32.mrf.mxu0
    %2457 = vdwg.mxu0
    %2458 = vmatpush.bf16.msra.mxu0 0
    %2459 = vmatpush.bf16.msra.mxu0 0
    %2460 = vmatpush.bf16.msra.mxu0 0
    %2461 = vmatpush.bf16.msra.mxu0 0
    %2462 = vmatpush.bf16.msra.mxu0 0
    %2463 = vmatpush.bf16.msra.mxu0 0
    %2464 = vmatpush.bf16.msra.mxu0 %v837
    %2465 = vmatpush.bf16.msra.mxu0 %v836
    %2466 = vmatmul.bf16.gmra.mxu0 %v2359
    %v2467 = vpop.f32.mrf.mxu0
    %v2468 = vadd.f32 %v2455, %v2467
    %v2469 = vpop.f32.mrf.mxu0
    %2470 = vdwg.mxu0
    %v2471 = vadd.f32 %v2468, %v514
    %v2472 = vtanh.pop %v2471
    %v2473 = vsub.f32 1.0, %v2420
    %v2474 = vmul.f32 %v2473, %v2245
    %v2475 = vmul.f32 %v2420, %v2472
    %v2476 = vadd.f32 %v2474, %v2475
    %2477 = vst.msk [vmem:[#allocation5 + $0x7] sm:$0x1] %vm859, %v2476
    %v2478 = vld [vmem:[#allocation5] sm:$0xff]
    %v2479 = vpack.c.bf16 %v2478, %v2478
    %v2480 = vld [vmem:[#allocation36] sm:$0xf]
    %v2481 = vld [vmem:[#allocation36 + $0x4] sm:$0xf]
    %v2482 = vld [vmem:[#allocation36 + $0x8] sm:$0xf]
    %v2483 = vld [vmem:[#allocation36 + $0xc] sm:$0xf]
    %v2488 = vunpack.c.l.b16 %v2480
    %v2489 = vunpack.c.l.b16 %v2481
    %v2490 = vunpack.c.l.b16 %v2482
    %v2491 = vunpack.c.l.b16 %v2483
    %v2492 = vpack.c.b16 %v2489, %v2488
    %v2493 = vpack.c.b16 %v2491, %v2490
    %v2497 = vsel %vm390, %v2479, 0
    %2499 = vmatpush.bf16.msra.mxu0 0
    %2500 = vmatpush.bf16.msra.mxu0 0
    %2501 = vmatpush.bf16.msra.mxu0 0
    %2502 = vmatpush.bf16.msra.mxu0 0
    %2503 = vmatpush.bf16.msra.mxu0 0
    %2504 = vmatpush.bf16.msra.mxu0 0
    %2505 = vmatpush.bf16.msra.mxu0 %v2493
    %2506 = vmatpush.bf16.msra.mxu0 %v2492
    %2507 = vmatmul.bf16.gmra.mxu0 %v2497
    %v2508 = vpop.f32.mrf.mxu0
    %v2509 = vadd.f32 0.0, %v2508
    %v2510 = vpop.f32.mrf.mxu0
    %2511 = vdwg.mxu0
    %2512 = vst.msk [vmem:[#allocation38] sm:$0xff] %vm390, %v2509
    // Predicated region
    $region170: #{tpu_custom_call.1} parent=1 // pred_check
      _
    $region171: #{tpu_custom_call.1} parent=1 // pred_check_branch
      %2514 = sbr.rel (0) target = $region173
    $region172: #{tpu_custom_call.1} parent=1 // pred_region
      %2516 = vsyncadd [#allocation8], 0
      %s2518 = sshll.u32 [#allocation38], 4
      %s2519 = int_to_ptr.vmem [resolvable:$true] %s2518
      %s2520 = sshll.u32 %s22, 4
      %s2521 = int_to_ptr.hbm [resolvable:$true] %s2520
      %2523 = dma.vmem_to_hbm [thread:$0]  %s2519, 128, %s2521, [#allocation8]
    $region173: #{tpu_custom_call.1} parent=1 // pred_fallthru
      _
    // Predicated region
    $region174: #{tpu_custom_call.1} parent=1 // pred_check
      _
    $region175: #{tpu_custom_call.1} parent=1 // pred_check_branch
      %2525 = sbr.rel (0) target = $region177
    $region176: #{tpu_custom_call.1} parent=1 // pred_region
      %2527 = dma.done [#allocation8], 128
    $region177: #{tpu_custom_call.1} parent=1 // pred_fallthru
      _
    %2528 = vsyncpa [#allocation7], 1
    %2529 = vsyncpa [#allocation10], 1
    %2530 = vsyncpa [#allocation13], 1
    %2531 = vsyncpa [#allocation16], 1
    %2532 = vsyncpa [#allocation19], 1
    %2533 = vsyncpa [#allocation22], 1
    %2534 = vsyncpa [#allocation25], 1
    %2535 = vsyncpa [#allocation28], 1
    %2536 = vsyncpa [#allocation31], 1
    %2537 = vsyncpa [#allocation34], 1
    %2538 = vsyncpa [#allocation37], 1
    %2539 = vsyncpa [#allocation8], 1

</llo_original>
